<compile_context>
chip_gen: v7x
topology: tpu7x:2x2x1
jax: 0.10.0
libtpu: 0.0.40
codegen_flags: <defaults>
</compile_context>

<pallas_src>
import functools

import jax
import jax.numpy as jnp
from jax import lax
from jax.experimental import pallas as pl
from jax.experimental.pallas import tpu as pltpu

_SUBLANE = 8     # f32 sublane tile (batch padding multiple)
_LANE = 128      # lane tile (hidden / output padding multiple)


def _round_up(x, m):
    return (x + m - 1) // m * m


# ---------------------------------------------------------------------------
# Kernel
# ---------------------------------------------------------------------------
def _lstm_predictor_kernel(
    x_ref,        # (T, TB, F)    f32  time-major input chunk
    wih1_ref,     # (F, 4H)       bf16 layer-0 input weights
    whh1_ref,     # (H, 4H)       bf16 layer-0 recurrent weights
    b1_ref,       # (1, 4H)       f32  layer-0 bias (b_ih + b_hh)
    wcat2_ref,    # (2H, 4H)      bf16 layer-1 [W_ih2 ; W_hh2] pre-concatenated
    b2_ref,       # (1, 4H)       f32  layer-1 bias (b_ih + b_hh)
    wout_ref,     # (H, Op)       bf16 final Linear weight (lane padded)
    bout_ref,     # (1, Op)       f32  final Linear bias (lane padded)
    out_ref,      # (TB, Op)      f32
    xp_ref,       # scratch (T, TB, 4H) bf16 : precomputed x@W_ih1 + b1
    hcat_ref,     # scratch (TB, 2H)    bf16 : persistent [h1 | h2]
    c1_ref,       # scratch (TB, H)     f32
    c2_ref,       # scratch (TB, H)     f32
    *, unroll,
):
    t_idx = pl.program_id(1)
    n_t = pl.num_programs(1)

    T, TB, F = x_ref.shape
    H = c1_ref.shape[1]          # lane-padded hidden size

    # ---- reset carries at the first time chunk of each batch block --------
    @pl.when(t_idx == 0)
    def _():
        hcat_ref[...] = jnp.zeros_like(hcat_ref)
        c1_ref[...] = jnp.zeros_like(c1_ref)
        c2_ref[...] = jnp.zeros_like(c2_ref)

    # ---- prologue: time-parallel input projection for the whole chunk -----
    # One (T*TB, F) x (F, 4H) matmul; b1 folded in here.  Stored bf16 (the
    # values come out of a bf16 matmul anyway; f32 cell state preserved).
    x_flat = x_ref[...].reshape(T * TB, F).astype(jnp.bfloat16)
    xp = jnp.dot(x_flat, wih1_ref[...], preferred_element_type=jnp.float32)
    xp_ref[...] = (xp + b1_ref[...]).reshape(T, TB, 4 * H).astype(jnp.bfloat16)

    # hoisted bias broadcast for layer 1 (JAX does not CSE broadcast_in_dim)
    b2b = jnp.broadcast_to(b2_ref[...], (TB, 4 * H))

    def gates_to_hc(gates, c):
        # gate order i | f | g | o (PyTorch); H is a lane multiple, so these
        # slices are free lane-aligned vreg views.
        i_g = jax.nn.sigmoid(gates[:, 0 * H:1 * H])
        f_g = jax.nn.sigmoid(gates[:, 1 * H:2 * H])
        g_g = jnp.tanh(gates[:, 2 * H:3 * H])
        o_g = jax.nn.sigmoid(gates[:, 3 * H:4 * H])
        c_new = f_g * c + i_g * g_g
        h_new = o_g * jnp.tanh(c_new)
        return h_new, c_new

    def step(s, carry):
        c1, c2 = carry
        # layer 0: input part precomputed; only the recurrent matmul remains.
        g1 = (xp_ref[s].astype(jnp.float32)
              + jnp.dot(hcat_ref[:, :H], whh1_ref[...],
                        preferred_element_type=jnp.float32))
        h1, c1 = gates_to_hc(g1, c1)
        hcat_ref[:, :H] = h1.astype(jnp.bfloat16)
        # layer 1: fused [h1_new | h2_prev] @ [W_ih2 ; W_hh2] -> one MXU op.
        g2 = jnp.dot(hcat_ref[...], wcat2_ref[...],
                     preferred_element_type=jnp.float32) + b2b
        h2, c2 = gates_to_hc(g2, c2)
        hcat_ref[:, H:2 * H] = h2.astype(jnp.bfloat16)
        return c1, c2

    c1, c2 = lax.fori_loop(0, T, step, (c1_ref[...], c2_ref[...]),
                           unroll=unroll)
    c1_ref[...] = c1
    c2_ref[...] = c2

    # ---- final Linear on hidden[-1] (layer-1 h) at the last time chunk ----
    @pl.when(t_idx == n_t - 1)
    def _():
        out_ref[...] = (
            jnp.dot(hcat_ref[:, H:2 * H], wout_ref[...],
                    preferred_element_type=jnp.float32)
            + bout_ref[...])


# ---------------------------------------------------------------------------
# Wrapper
# ---------------------------------------------------------------------------
def _pad_gate_cols(w, H, Hp):
    """Pad the (..., 4*H) gate axis to (..., 4*Hp), per gate block."""
    if Hp == H:
        return w
    lead = w.shape[:-1]
    w4 = w.reshape(lead + (4, H))
    pad = [(0, 0)] * (w4.ndim - 1) + [(0, Hp - H)]
    return jnp.pad(w4, pad).reshape(lead + (4 * Hp,))


def _vmem_cap_bytes():
    """Generation-aware VMEM ceiling (~25% headroom for compiler scratch)."""
    try:
        cap = int(getattr(pltpu.get_tpu_info(), "vmem_capacity_bytes", 0))
        if cap > 0:
            return cap * 3 // 4          # ~48 MiB on v7x, ~96 MiB on v5e/v6e
    except Exception:
        pass
    return 48 * 1024 * 1024              # conservative (v7x-safe) fallback


def lstm_predictor(x, params, *, time_block=None, batch_block=None):
    """x: (B, S, F) float32 -> (B, output_size) float32 (eval mode)."""
    wih1, whh1, b1, wih2, whh2, b2, wout, bout = params
    B, S, F = x.shape
    H = whh1.shape[0]
    O = wout.shape[1]
    Hp = _round_up(H, _LANE)             # lane-aligned hidden / gate slices
    Op = _round_up(O, _LANE)             # lane-dense final store

    # ---- batch tiling: TB is a real MXU-facing tile; 8 is only the pad ----
    B8 = _round_up(B, _SUBLANE)
    if batch_block is None:
        TB = min(B8, 64)
        # Prefer >=2 batch blocks so the "parallel" axis can span both
        # TensorCores on v7x (harmless on single-TC v5e/v6e).
        if B8 > _SUBLANE and B8 <= TB:
            TB = _round_up(B8 // 2, _SUBLANE)
    else:
        TB = batch_block
    B_pad = _round_up(B8, TB)
    n_b = B_pad // TB

    # ---- time chunking: large chunks amortize the ~0.35us/step overhead ---
    if time_block is None:
        cap = min(S, 64)
        # keep the bf16 xp scratch modest (v7x has 64 MiB VMEM per core)
        while cap > 8 and cap * TB * 4 * Hp * 2 > (8 << 20):
            cap //= 2
        # NOTE: prime S degrades to T=1 (correct but slow).
        time_block = max(t for t in range(1, cap + 1) if S % t == 0)
    T = time_block
    assert S % T == 0, "seq_len must be divisible by time_block"
    n_t = S // T
    unroll = max(1, min(T, 8))           # partial unroll of the recurrence

    # ---- weight prep: pad H->Hp per gate, fuse layer-1, bf16 for the MXU --
    pad_h_rows = lambda w: jnp.pad(w, ((0, Hp - H), (0, 0)))
    wih1_p = _pad_gate_cols(wih1, H, Hp).astype(jnp.bfloat16)           # (F,4Hp)
    whh1_p = _pad_gate_cols(pad_h_rows(whh1), H, Hp).astype(jnp.bfloat16)
    b1_p = _pad_gate_cols(b1, H, Hp)                                    # (1,4Hp)
    wih2_p = _pad_gate_cols(pad_h_rows(wih2), H, Hp)
    whh2_p = _pad_gate_cols(pad_h_rows(whh2), H, Hp)
    wcat2_p = jnp.concatenate([wih2_p, whh2_p], axis=0).astype(jnp.bfloat16)
    b2_p = _pad_gate_cols(b2, H, Hp)
    wout_p = jnp.pad(wout, ((0, Hp - H), (0, Op - O))).astype(jnp.bfloat16)
    bout_p = jnp.pad(bout, ((0, 0), (0, Op - O)))

    # Time-major input so each step is a leading-dim row of the chunk.
    x_tm = jnp.transpose(x, (1, 0, 2))                         # (S, B, F)
    x_tm = jnp.pad(x_tm, ((0, 0), (0, B_pad - B), (0, 0)))     # (S, B_pad, F)

    const = lambda b, t: (0, 0)
    grid_spec = pltpu.PrefetchScalarGridSpec(
        num_scalar_prefetch=0,
        grid=(n_b, n_t),
        in_specs=[
            pl.BlockSpec((T, TB, F), lambda b, t: (t, b, 0)),    # x chunk
            pl.BlockSpec((F, 4 * Hp), const),                    # W_ih1
            pl.BlockSpec((Hp, 4 * Hp), const),                   # W_hh1
            pl.BlockSpec((1, 4 * Hp), const),                    # b1
            pl.BlockSpec((2 * Hp, 4 * Hp), const),               # [W_ih2;W_hh2]
            pl.BlockSpec((1, 4 * Hp), const),                    # b2
            pl.BlockSpec((Hp, Op), const),                       # W_out
            pl.BlockSpec((1, Op), const),                        # b_out
        ],
        out_specs=pl.BlockSpec((TB, Op), lambda b, t: (b, 0)),
        scratch_shapes=[
            pltpu.VMEM((T, TB, 4 * Hp), jnp.bfloat16),           # xp (bf16)
            pltpu.VMEM((TB, 2 * Hp), jnp.bfloat16),              # [h1 | h2]
            pltpu.VMEM((TB, Hp), jnp.float32),                   # c1
            pltpu.VMEM((TB, Hp), jnp.float32),                   # c2
        ],
    )

    # ---- VMEM budget: request roughly what we use, generation-capped ------
    weight_bytes = 2 * 2 * (wih1_p.size + whh1_p.size + wcat2_p.size
                            + wout_p.size)                       # dbl-buffered
    bias_bytes = 2 * 4 * (b1_p.size + b2_p.size + bout_p.size)
    stream_bytes = 2 * (T * TB * F * 4) + 2 * (TB * Op * 4)
    scratch_bytes = (T * TB * 4 * Hp) * 2 + (TB * 2 * Hp) * 2 + 2 * (TB * Hp) * 4
    need = weight_bytes + bias_bytes + stream_bytes + scratch_bytes
    vmem_bytes = int(min(max(2 * need, 32 * 1024 * 1024), _vmem_cap_bytes()))

    kernel = functools.partial(_lstm_predictor_kernel, unroll=unroll)
    out_padded = pl.pallas_call(
        kernel,
        out_shape=jax.ShapeDtypeStruct((B_pad, Op), jnp.float32),
        grid_spec=grid_spec,
        compiler_params=pltpu.CompilerParams(
            dimension_semantics=("parallel", "arbitrary"),
            vmem_limit_bytes=vmem_bytes,
        ),
    )(x_tm, wih1_p, whh1_p, b1_p, wcat2_p, b2_p, wout_p, bout_p)

    return out_padded[:B, :O]


# ---------------------------------------------------------------------------
# Parameters & pure-JAX reference
# ---------------------------------------------------------------------------
def init_params(key, n_features, hidden_dim, output_size):
    """Deterministic init mirroring PyTorch shapes (weights stored transposed)."""
    k = 1.0 / jnp.sqrt(hidden_dim)
    keys = jax.random.split(key, 12)

    def u(kk, shape, bound):
        return jax.random.uniform(kk, shape, jnp.float32, -bound, bound)

    wih1 = u(keys[0], (n_features, 4 * hidden_dim), k)
    whh1 = u(keys[1], (hidden_dim, 4 * hidden_dim), k)
    b1 = u(keys[2], (1, 4 * hidden_dim), k) + u(keys[3], (1, 4 * hidden_dim), k)
    wih2 = u(keys[4], (hidden_dim, 4 * hidden_dim), k)
    whh2 = u(keys[5], (hidden_dim, 4 * hidden_dim), k)
    b2 = u(keys[6], (1, 4 * hidden_dim), k) + u(keys[7], (1, 4 * hidden_dim), k)
    wout = u(keys[8], (hidden_dim, output_size), k)
    bout = u(keys[9], (1, output_size), k)
    return (wih1, whh1, b1, wih2, whh2, b2, wout, bout)


def reference_forward(x, params, matmul_dtype=jnp.float32):
    """Pure-JAX reference of the PyTorch forward (eval mode, dropout off)."""
    wih1, whh1, b1, wih2, whh2, b2, wout, bout = params
    B, S, F = x.shape
    H = whh1.shape[0]

    def mm(a, b):
        return jnp.dot(a.astype(matmul_dtype), b.astype(matmul_dtype),
                       preferred_element_type=jnp.float32)

    def cell(x_t, h, c, wih, whh, b):
        gates = mm(x_t, wih) + mm(h, whh) + b
        i_g = jax.nn.sigmoid(gates[:, 0 * H:1 * H])
        f_g = jax.nn.sigmoid(gates[:, 1 * H:2 * H])
        g_g = jnp.tanh(gates[:, 2 * H:3 * H])
        o_g = jax.nn.sigmoid(gates[:, 3 * H:4 * H])
        c_new = f_g * c + i_g * g_g
        return o_g * jnp.tanh(c_new), c_new

    h1 = c1 = h2 = c2 = jnp.zeros((B, H), jnp.float32)
    for t in range(S):
        h1, c1 = cell(x[:, t, :], h1, c1, wih1, whh1, b1)
        h2, c2 = cell(h1, h2, c2, wih2, whh2, b2)
    return mm(h2, wout) + bout


if __name__ == "__main__":
    # small shapes; hidden_dim=64 (PyTorch default) exercises the lane padding
    batch, seq_len, n_features = 2, 8, 4
    hidden_dim, output_size = 64, 4

    key = jax.random.PRNGKey(0)
    kx, kp = jax.random.split(key)
    x = jax.random.normal(kx, (batch, seq_len, n_features), jnp.float32)
    params = init_params(kp, n_features, hidden_dim, output_size)

    # time_block=4 -> two time chunks, exercises the cross-chunk carry path
    out = lstm_predictor(x, params, time_block=4)
    out = jax.block_until_ready(out)
    assert out.shape == (batch, output_size)

    # logic check: reference using bf16 matmul operands (same regime as kernel)
    ref_bf16 = reference_forward(x, params, matmul_dtype=jnp.bfloat16)
    assert jnp.allclose(out, ref_bf16, atol=1e-2, rtol=1e-2), \
        "mismatch vs bf16-matmul JAX reference"

    # fidelity check: pure-f32 (PyTorch-equivalent) reference, bf16 tolerance
    ref_f32 = reference_forward(x, params, matmul_dtype=jnp.float32)
    assert jnp.allclose(out, ref_f32, atol=5e-2, rtol=5e-2), \
        "mismatch vs f32 JAX reference"

    print("KERNEL_OK")
</pallas_src>

<mosaic_0001>
module attributes {stable_mosaic.version = 11 : i64} {
  func.func @_lstm_predictor_kernel(%arg0: i32, %arg1: i32, %arg2: memref<4x8x4xf32, #tpu.memory_space<vmem>>, %arg3: memref<4x512xbf16, #tpu.memory_space<vmem>>, %arg4: memref<128x512xbf16, #tpu.memory_space<vmem>>, %arg5: memref<1x512xf32, #tpu.memory_space<vmem>>, %arg6: memref<256x512xbf16, #tpu.memory_space<vmem>>, %arg7: memref<1x512xf32, #tpu.memory_space<vmem>>, %arg8: memref<128x128xbf16, #tpu.memory_space<vmem>>, %arg9: memref<1x128xf32, #tpu.memory_space<vmem>>, %arg10: memref<8x128xf32, #tpu.memory_space<vmem>>, %arg11: memref<4x8x512xbf16, #tpu.memory_space<vmem>>, %arg12: memref<8x256xbf16, #tpu.memory_space<vmem>>, %arg13: memref<8x128xf32, #tpu.memory_space<vmem>>, %arg14: memref<8x128xf32, #tpu.memory_space<vmem>>) attributes {dimension_semantics = [#tpu.dimension_semantics<parallel>, #tpu.dimension_semantics<arbitrary>], iteration_bounds = array<i64: 1, 2>, scalar_prefetch = 0 : i64, scratch_operands = 4 : i64, tpu.core_type = #tpu.core_type<tc>, window_params = [{transform_indices = @transform_0, window_bounds = array<i64: 4, 8, 4>}, {pipeline_mode = #tpu.pipeline_mode<synchronous>, transform_indices = @transform_1, window_bounds = array<i64: 4, 512>}, {pipeline_mode = #tpu.pipeline_mode<synchronous>, transform_indices = @transform_2, window_bounds = array<i64: 128, 512>}, {pipeline_mode = #tpu.pipeline_mode<synchronous>, transform_indices = @transform_3, window_bounds = array<i64: 1, 512>}, {pipeline_mode = #tpu.pipeline_mode<synchronous>, transform_indices = @transform_4, window_bounds = array<i64: 256, 512>}, {pipeline_mode = #tpu.pipeline_mode<synchronous>, transform_indices = @transform_5, window_bounds = array<i64: 1, 512>}, {pipeline_mode = #tpu.pipeline_mode<synchronous>, transform_indices = @transform_6, window_bounds = array<i64: 128, 128>}, {pipeline_mode = #tpu.pipeline_mode<synchronous>, transform_indices = @transform_7, window_bounds = array<i64: 1, 128>}, {transform_indices = @transform_8, window_bounds = array<i64: 8, 128>}]} {
    %c0_i32 = arith.constant 0 : i32
    %0 = arith.cmpi eq, %arg1, %c0_i32 : i32
    %1 = arith.extui %0 : i1 to i32
    %c0_i32_0 = arith.constant 0 : i32
    %2 = arith.cmpi ne, %1, %c0_i32_0 : i32
    scf.if %2 {
      %cst_110 = arith.constant 0.000000e+00 : bf16
      %288 = vector.broadcast %cst_110 : bf16 to vector<8x256xbf16>
      %c0_111 = arith.constant 0 : index
      %c0_112 = arith.constant 0 : index
      %289 = vector.load %arg12[%c0_111, %c0_112] : memref<8x256xbf16, #tpu.memory_space<vmem>>, vector<8x256xbf16>
      tpu.vector_store %arg12[%c0_111, %c0_112], %288 {strides = array<i32>} : memref<8x256xbf16, #tpu.memory_space<vmem>>, vector<8x256xbf16>,
      %cst_113 = arith.constant 0.000000e+00 : f32
      %290 = vector.broadcast %cst_113 : f32 to vector<8x128xf32>
      %c0_114 = arith.constant 0 : index
      %c0_115 = arith.constant 0 : index
      %291 = vector.load %arg13[%c0_114, %c0_115] : memref<8x128xf32, #tpu.memory_space<vmem>>, vector<8x128xf32>
      tpu.vector_store %arg13[%c0_114, %c0_115], %290 {strides = array<i32>} : memref<8x128xf32, #tpu.memory_space<vmem>>, vector<8x128xf32>,
      %cst_116 = arith.constant 0.000000e+00 : f32
      %292 = vector.broadcast %cst_116 : f32 to vector<8x128xf32>
      %c0_117 = arith.constant 0 : index
      %c0_118 = arith.constant 0 : index
      %293 = vector.load %arg14[%c0_117, %c0_118] : memref<8x128xf32, #tpu.memory_space<vmem>>, vector<8x128xf32>
      tpu.vector_store %arg14[%c0_117, %c0_118], %292 {strides = array<i32>} : memref<8x128xf32, #tpu.memory_space<vmem>>, vector<8x128xf32>,
    } else {
    }
    %c0 = arith.constant 0 : index
    %c0_1 = arith.constant 0 : index
    %c0_2 = arith.constant 0 : index
    %3 = vector.load %arg2[%c0, %c0_1, %c0_2] : memref<4x8x4xf32, #tpu.memory_space<vmem>>, vector<4x8x4xf32>
    %4 = vector.shape_cast %3 : vector<4x8x4xf32> to vector<32x4xf32>
    %5 = arith.truncf %4 : vector<32x4xf32> to vector<32x4xbf16>
    %c0_3 = arith.constant 0 : index
    %c0_4 = arith.constant 0 : index
    %6 = vector.load %arg3[%c0_3, %c0_4] : memref<4x512xbf16, #tpu.memory_space<vmem>>, vector<4x512xbf16>
    %cst = arith.constant dense<0.000000e+00> : vector<32x512xf32>
    %7 = tpu.matmul %5, %6, %cst {dimension_numbers = #tpu.dot_dimension_numbers<[1], [0], [0], [1], [0, 0, 1, 1], [], []>} : vector<32x4xbf16>, vector<4x512xbf16>, vector<32x512xf32> -> vector<32x512xf32>
    %c0_5 = arith.constant 0 : index
    %c0_6 = arith.constant 0 : index
    %8 = vector.load %arg5[%c0_5, %c0_6] : memref<1x512xf32, #tpu.memory_space<vmem>>, vector<1x512xf32>
    %9 = vector.broadcast %8 : vector<1x512xf32> to vector<32x512xf32>
    %10 = arith.addf %7, %9 : vector<32x512xf32>
    %11 = vector.shape_cast %10 : vector<32x512xf32> to vector<4x8x512xf32>
    %12 = arith.truncf %11 : vector<4x8x512xf32> to vector<4x8x512xbf16>
    %c0_7 = arith.constant 0 : index
    %c0_8 = arith.constant 0 : index
    %c0_9 = arith.constant 0 : index
    %13 = vector.load %arg11[%c0_7, %c0_8, %c0_9] : memref<4x8x512xbf16, #tpu.memory_space<vmem>>, vector<4x8x512xbf16>
    tpu.vector_store %arg11[%c0_7, %c0_8, %c0_9], %12 {strides = array<i32>} : memref<4x8x512xbf16, #tpu.memory_space<vmem>>, vector<4x8x512xbf16>,
    %c0_10 = arith.constant 0 : index
    %c0_11 = arith.constant 0 : index
    %14 = vector.load %arg7[%c0_10, %c0_11] : memref<1x512xf32, #tpu.memory_space<vmem>>, vector<1x512xf32>
    %15 = vector.shape_cast %14 : vector<1x512xf32> to vector<1x512xf32>
    %16 = vector.broadcast %15 : vector<1x512xf32> to vector<8x512xf32>
    %c0_12 = arith.constant 0 : index
    %c0_13 = arith.constant 0 : index
    %17 = vector.load %arg13[%c0_12, %c0_13] : memref<8x128xf32, #tpu.memory_space<vmem>>, vector<8x128xf32>
    %c0_14 = arith.constant 0 : index
    %c0_15 = arith.constant 0 : index
    %18 = vector.load %arg14[%c0_14, %c0_15] : memref<8x128xf32, #tpu.memory_space<vmem>>, vector<8x128xf32>
    %c0_i32_16 = arith.constant 0 : i32
    %19 = arith.index_cast %c0_i32_16 : i32 to index
    %c0_17 = arith.constant 0 : index
    %c0_18 = arith.constant 0 : index
    %20 = vector.load %arg11[%19, %c0_17, %c0_18] : memref<4x8x512xbf16, #tpu.memory_space<vmem>>, vector<1x8x512xbf16>
    %21 = vector.shape_cast %20 : vector<1x8x512xbf16> to vector<8x512xbf16>
    %22 = arith.extf %21 : vector<8x512xbf16> to vector<8x512xf32>
    %c0_19 = arith.constant 0 : index
    %c0_20 = arith.constant 0 : index
    %23 = vector.load %arg12[%c0_19, %c0_20] : memref<8x256xbf16, #tpu.memory_space<vmem>>, vector<8x128xbf16>
    %c0_21 = arith.constant 0 : index
    %c0_22 = arith.constant 0 : index
    %24 = vector.load %arg4[%c0_21, %c0_22] : memref<128x512xbf16, #tpu.memory_space<vmem>>, vector<128x512xbf16>
    %cst_23 = arith.constant dense<0.000000e+00> : vector<8x512xf32>
    %25 = tpu.matmul %23, %24, %cst_23 {dimension_numbers = #tpu.dot_dimension_numbers<[1], [0], [0], [1], [0, 0, 1, 1], [], []>} : vector<8x128xbf16>, vector<128x512xbf16>, vector<8x512xf32> -> vector<8x512xf32>
    %26 = arith.addf %22, %25 : vector<8x512xf32>
    %27 = vector.extract_strided_slice %26 {offsets = [0, 0], sizes = [8, 128], strides = [1, 1]} : vector<8x512xf32> to vector<8x128xf32>
    %28 = arith.negf %27 : vector<8x128xf32>
    %29 = math.exp %28 : vector<8x128xf32>
    %cst_24 = arith.constant 1.000000e+00 : f32
    %30 = vector.broadcast %cst_24 : f32 to vector<8x128xf32>
    %31 = arith.addf %30, %29 : vector<8x128xf32>
    %32 = arith.divf %30, %31 : vector<8x128xf32>
    %33 = vector.extract_strided_slice %26 {offsets = [0, 128], sizes = [8, 128], strides = [1, 1]} : vector<8x512xf32> to vector<8x128xf32>
    %34 = arith.negf %33 : vector<8x128xf32>
    %35 = math.exp %34 : vector<8x128xf32>
    %cst_25 = arith.constant 1.000000e+00 : f32
    %36 = vector.broadcast %cst_25 : f32 to vector<8x128xf32>
    %37 = arith.addf %36, %35 : vector<8x128xf32>
    %38 = arith.divf %36, %37 : vector<8x128xf32>
    %39 = vector.extract_strided_slice %26 {offsets = [0, 256], sizes = [8, 128], strides = [1, 1]} : vector<8x512xf32> to vector<8x128xf32>
    %40 = math.tanh %39 : vector<8x128xf32>
    %41 = vector.extract_strided_slice %26 {offsets = [0, 384], sizes = [8, 128], strides = [1, 1]} : vector<8x512xf32> to vector<8x128xf32>
    %42 = arith.negf %41 : vector<8x128xf32>
    %43 = math.exp %42 : vector<8x128xf32>
    %cst_26 = arith.constant 1.000000e+00 : f32
    %44 = vector.broadcast %cst_26 : f32 to vector<8x128xf32>
    %45 = arith.addf %44, %43 : vector<8x128xf32>
    %46 = arith.divf %44, %45 : vector<8x128xf32>
    %47 = arith.mulf %38, %17 : vector<8x128xf32>
    %48 = arith.mulf %32, %40 : vector<8x128xf32>
    %49 = arith.addf %47, %48 : vector<8x128xf32>
    %50 = math.tanh %49 : vector<8x128xf32>
    %51 = arith.mulf %46, %50 : vector<8x128xf32>
    %52 = arith.truncf %51 : vector<8x128xf32> to vector<8x128xbf16>
    %c0_27 = arith.constant 0 : index
    %c0_28 = arith.constant 0 : index
    %53 = vector.load %arg12[%c0_27, %c0_28] : memref<8x256xbf16, #tpu.memory_space<vmem>>, vector<8x128xbf16>
    tpu.vector_store %arg12[%c0_27, %c0_28], %52 {strides = array<i32>} : memref<8x256xbf16, #tpu.memory_space<vmem>>, vector<8x128xbf16>,
    %c0_29 = arith.constant 0 : index
    %c0_30 = arith.constant 0 : index
    %54 = vector.load %arg12[%c0_29, %c0_30] : memref<8x256xbf16, #tpu.memory_space<vmem>>, vector<8x256xbf16>
    %c0_31 = arith.constant 0 : index
    %c0_32 = arith.constant 0 : index
    %55 = vector.load %arg6[%c0_31, %c0_32] : memref<256x512xbf16, #tpu.memory_space<vmem>>, vector<256x512xbf16>
    %cst_33 = arith.constant dense<0.000000e+00> : vector<8x512xf32>
    %56 = tpu.matmul %54, %55, %cst_33 {dimension_numbers = #tpu.dot_dimension_numbers<[1], [0], [0], [1], [0, 0, 1, 1], [], []>} : vector<8x256xbf16>, vector<256x512xbf16>, vector<8x512xf32> -> vector<8x512xf32>
    %57 = arith.addf %56, %16 : vector<8x512xf32>
    %58 = vector.extract_strided_slice %57 {offsets = [0, 0], sizes = [8, 128], strides = [1, 1]} : vector<8x512xf32> to vector<8x128xf32>
    %59 = arith.negf %58 : vector<8x128xf32>
    %60 = math.exp %59 : vector<8x128xf32>
    %cst_34 = arith.constant 1.000000e+00 : f32
    %61 = vector.broadcast %cst_34 : f32 to vector<8x128xf32>
    %62 = arith.addf %61, %60 : vector<8x128xf32>
    %63 = arith.divf %61, %62 : vector<8x128xf32>
    %64 = vector.extract_strided_slice %57 {offsets = [0, 128], sizes = [8, 128], strides = [1, 1]} : vector<8x512xf32> to vector<8x128xf32>
    %65 = arith.negf %64 : vector<8x128xf32>
    %66 = math.exp %65 : vector<8x128xf32>
    %cst_35 = arith.constant 1.000000e+00 : f32
    %67 = vector.broadcast %cst_35 : f32 to vector<8x128xf32>
    %68 = arith.addf %67, %66 : vector<8x128xf32>
    %69 = arith.divf %67, %68 : vector<8x128xf32>
    %70 = vector.extract_strided_slice %57 {offsets = [0, 256], sizes = [8, 128], strides = [1, 1]} : vector<8x512xf32> to vector<8x128xf32>
    %71 = math.tanh %70 : vector<8x128xf32>
    %72 = vector.extract_strided_slice %57 {offsets = [0, 384], sizes = [8, 128], strides = [1, 1]} : vector<8x512xf32> to vector<8x128xf32>
    %73 = arith.negf %72 : vector<8x128xf32>
    %74 = math.exp %73 : vector<8x128xf32>
    %cst_36 = arith.constant 1.000000e+00 : f32
    %75 = vector.broadcast %cst_36 : f32 to vector<8x128xf32>
    %76 = arith.addf %75, %74 : vector<8x128xf32>
    %77 = arith.divf %75, %76 : vector<8x128xf32>
    %78 = arith.mulf %69, %18 : vector<8x128xf32>
    %79 = arith.mulf %63, %71 : vector<8x128xf32>
    %80 = arith.addf %78, %79 : vector<8x128xf32>
    %81 = math.tanh %80 : vector<8x128xf32>
    %82 = arith.mulf %77, %81 : vector<8x128xf32>
    %83 = arith.truncf %82 : vector<8x128xf32> to vector<8x128xbf16>
    %c0_37 = arith.constant 0 : index
    %c128 = arith.constant 128 : index
    %84 = vector.load %arg12[%c0_37, %c128] : memref<8x256xbf16, #tpu.memory_space<vmem>>, vector<8x128xbf16>
    tpu.vector_store %arg12[%c0_37, %c128], %83 {strides = array<i32>} : memref<8x256xbf16, #tpu.memory_space<vmem>>, vector<8x128xbf16>,
    %c1_i32 = arith.constant 1 : i32
    %85 = arith.index_cast %c1_i32 : i32 to index
    %c0_38 = arith.constant 0 : index
    %c0_39 = arith.constant 0 : index
    %86 = vector.load %arg11[%85, %c0_38, %c0_39] : memref<4x8x512xbf16, #tpu.memory_space<vmem>>, vector<1x8x512xbf16>
    %87 = vector.shape_cast %86 : vector<1x8x512xbf16> to vector<8x512xbf16>
    %88 = arith.extf %87 : vector<8x512xbf16> to vector<8x512xf32>
    %c0_40 = arith.constant 0 : index
    %c0_41 = arith.constant 0 : index
    %89 = vector.load %arg12[%c0_40, %c0_41] : memref<8x256xbf16, #tpu.memory_space<vmem>>, vector<8x128xbf16>
    %c0_42 = arith.constant 0 : index
    %c0_43 = arith.constant 0 : index
    %90 = vector.load %arg4[%c0_42, %c0_43] : memref<128x512xbf16, #tpu.memory_space<vmem>>, vector<128x512xbf16>
    %cst_44 = arith.constant dense<0.000000e+00> : vector<8x512xf32>
    %91 = tpu.matmul %89, %90, %cst_44 {dimension_numbers = #tpu.dot_dimension_numbers<[1], [0], [0], [1], [0, 0, 1, 1], [], []>} : vector<8x128xbf16>, vector<128x512xbf16>, vector<8x512xf32> -> vector<8x512xf32>
    %92 = arith.addf %88, %91 : vector<8x512xf32>
    %93 = vector.extract_strided_slice %92 {offsets = [0, 0], sizes = [8, 128], strides = [1, 1]} : vector<8x512xf32> to vector<8x128xf32>
    %94 = arith.negf %93 : vector<8x128xf32>
    %95 = math.exp %94 : vector<8x128xf32>
    %cst_45 = arith.constant 1.000000e+00 : f32
    %96 = vector.broadcast %cst_45 : f32 to vector<8x128xf32>
    %97 = arith.addf %96, %95 : vector<8x128xf32>
    %98 = arith.divf %96, %97 : vector<8x128xf32>
    %99 = vector.extract_strided_slice %92 {offsets = [0, 128], sizes = [8, 128], strides = [1, 1]} : vector<8x512xf32> to vector<8x128xf32>
    %100 = arith.negf %99 : vector<8x128xf32>
    %101 = math.exp %100 : vector<8x128xf32>
    %cst_46 = arith.constant 1.000000e+00 : f32
    %102 = vector.broadcast %cst_46 : f32 to vector<8x128xf32>
    %103 = arith.addf %102, %101 : vector<8x128xf32>
    %104 = arith.divf %102, %103 : vector<8x128xf32>
    %105 = vector.extract_strided_slice %92 {offsets = [0, 256], sizes = [8, 128], strides = [1, 1]} : vector<8x512xf32> to vector<8x128xf32>
    %106 = math.tanh %105 : vector<8x128xf32>
    %107 = vector.extract_strided_slice %92 {offsets = [0, 384], sizes = [8, 128], strides = [1, 1]} : vector<8x512xf32> to vector<8x128xf32>
    %108 = arith.negf %107 : vector<8x128xf32>
    %109 = math.exp %108 : vector<8x128xf32>
    %cst_47 = arith.constant 1.000000e+00 : f32
    %110 = vector.broadcast %cst_47 : f32 to vector<8x128xf32>
    %111 = arith.addf %110, %109 : vector<8x128xf32>
    %112 = arith.divf %110, %111 : vector<8x128xf32>
    %113 = arith.mulf %104, %49 : vector<8x128xf32>
    %114 = arith.mulf %98, %106 : vector<8x128xf32>
    %115 = arith.addf %113, %114 : vector<8x128xf32>
    %116 = math.tanh %115 : vector<8x128xf32>
    %117 = arith.mulf %112, %116 : vector<8x128xf32>
    %118 = arith.truncf %117 : vector<8x128xf32> to vector<8x128xbf16>
    %c0_48 = arith.constant 0 : index
    %c0_49 = arith.constant 0 : index
    %119 = vector.load %arg12[%c0_48, %c0_49] : memref<8x256xbf16, #tpu.memory_space<vmem>>, vector<8x128xbf16>
    tpu.vector_store %arg12[%c0_48, %c0_49], %118 {strides = array<i32>} : memref<8x256xbf16, #tpu.memory_space<vmem>>, vector<8x128xbf16>,
    %c0_50 = arith.constant 0 : index
    %c0_51 = arith.constant 0 : index
    %120 = vector.load %arg12[%c0_50, %c0_51] : memref<8x256xbf16, #tpu.memory_space<vmem>>, vector<8x256xbf16>
    %c0_52 = arith.constant 0 : index
    %c0_53 = arith.constant 0 : index
    %121 = vector.load %arg6[%c0_52, %c0_53] : memref<256x512xbf16, #tpu.memory_space<vmem>>, vector<256x512xbf16>
    %cst_54 = arith.constant dense<0.000000e+00> : vector<8x512xf32>
    %122 = tpu.matmul %120, %121, %cst_54 {dimension_numbers = #tpu.dot_dimension_numbers<[1], [0], [0], [1], [0, 0, 1, 1], [], []>} : vector<8x256xbf16>, vector<256x512xbf16>, vector<8x512xf32> -> vector<8x512xf32>
    %123 = arith.addf %122, %16 : vector<8x512xf32>
    %124 = vector.extract_strided_slice %123 {offsets = [0, 0], sizes = [8, 128], strides = [1, 1]} : vector<8x512xf32> to vector<8x128xf32>
    %125 = arith.negf %124 : vector<8x128xf32>
    %126 = math.exp %125 : vector<8x128xf32>
    %cst_55 = arith.constant 1.000000e+00 : f32
    %127 = vector.broadcast %cst_55 : f32 to vector<8x128xf32>
    %128 = arith.addf %127, %126 : vector<8x128xf32>
    %129 = arith.divf %127, %128 : vector<8x128xf32>
    %130 = vector.extract_strided_slice %123 {offsets = [0, 128], sizes = [8, 128], strides = [1, 1]} : vector<8x512xf32> to vector<8x128xf32>
    %131 = arith.negf %130 : vector<8x128xf32>
    %132 = math.exp %131 : vector<8x128xf32>
    %cst_56 = arith.constant 1.000000e+00 : f32
    %133 = vector.broadcast %cst_56 : f32 to vector<8x128xf32>
    %134 = arith.addf %133, %132 : vector<8x128xf32>
    %135 = arith.divf %133, %134 : vector<8x128xf32>
    %136 = vector.extract_strided_slice %123 {offsets = [0, 256], sizes = [8, 128], strides = [1, 1]} : vector<8x512xf32> to vector<8x128xf32>
    %137 = math.tanh %136 : vector<8x128xf32>
    %138 = vector.extract_strided_slice %123 {offsets = [0, 384], sizes = [8, 128], strides = [1, 1]} : vector<8x512xf32> to vector<8x128xf32>
    %139 = arith.negf %138 : vector<8x128xf32>
    %140 = math.exp %139 : vector<8x128xf32>
    %cst_57 = arith.constant 1.000000e+00 : f32
    %141 = vector.broadcast %cst_57 : f32 to vector<8x128xf32>
    %142 = arith.addf %141, %140 : vector<8x128xf32>
    %143 = arith.divf %141, %142 : vector<8x128xf32>
    %144 = arith.mulf %135, %80 : vector<8x128xf32>
    %145 = arith.mulf %129, %137 : vector<8x128xf32>
    %146 = arith.addf %144, %145 : vector<8x128xf32>
    %147 = math.tanh %146 : vector<8x128xf32>
    %148 = arith.mulf %143, %147 : vector<8x128xf32>
    %149 = arith.truncf %148 : vector<8x128xf32> to vector<8x128xbf16>
    %c0_58 = arith.constant 0 : index
    %c128_59 = arith.constant 128 : index
    %150 = vector.load %arg12[%c0_58, %c128_59] : memref<8x256xbf16, #tpu.memory_space<vmem>>, vector<8x128xbf16>
    tpu.vector_store %arg12[%c0_58, %c128_59], %149 {strides = array<i32>} : memref<8x256xbf16, #tpu.memory_space<vmem>>, vector<8x128xbf16>,
    %c2_i32 = arith.constant 2 : i32
    %151 = arith.index_cast %c2_i32 : i32 to index
    %c0_60 = arith.constant 0 : index
    %c0_61 = arith.constant 0 : index
    %152 = vector.load %arg11[%151, %c0_60, %c0_61] : memref<4x8x512xbf16, #tpu.memory_space<vmem>>, vector<1x8x512xbf16>
    %153 = vector.shape_cast %152 : vector<1x8x512xbf16> to vector<8x512xbf16>
    %154 = arith.extf %153 : vector<8x512xbf16> to vector<8x512xf32>
    %c0_62 = arith.constant 0 : index
    %c0_63 = arith.constant 0 : index
    %155 = vector.load %arg12[%c0_62, %c0_63] : memref<8x256xbf16, #tpu.memory_space<vmem>>, vector<8x128xbf16>
    %c0_64 = arith.constant 0 : index
    %c0_65 = arith.constant 0 : index
    %156 = vector.load %arg4[%c0_64, %c0_65] : memref<128x512xbf16, #tpu.memory_space<vmem>>, vector<128x512xbf16>
    %cst_66 = arith.constant dense<0.000000e+00> : vector<8x512xf32>
    %157 = tpu.matmul %155, %156, %cst_66 {dimension_numbers = #tpu.dot_dimension_numbers<[1], [0], [0], [1], [0, 0, 1, 1], [], []>} : vector<8x128xbf16>, vector<128x512xbf16>, vector<8x512xf32> -> vector<8x512xf32>
    %158 = arith.addf %154, %157 : vector<8x512xf32>
    %159 = vector.extract_strided_slice %158 {offsets = [0, 0], sizes = [8, 128], strides = [1, 1]} : vector<8x512xf32> to vector<8x128xf32>
    %160 = arith.negf %159 : vector<8x128xf32>
    %161 = math.exp %160 : vector<8x128xf32>
    %cst_67 = arith.constant 1.000000e+00 : f32
    %162 = vector.broadcast %cst_67 : f32 to vector<8x128xf32>
    %163 = arith.addf %162, %161 : vector<8x128xf32>
    %164 = arith.divf %162, %163 : vector<8x128xf32>
    %165 = vector.extract_strided_slice %158 {offsets = [0, 128], sizes = [8, 128], strides = [1, 1]} : vector<8x512xf32> to vector<8x128xf32>
    %166 = arith.negf %165 : vector<8x128xf32>
    %167 = math.exp %166 : vector<8x128xf32>
    %cst_68 = arith.constant 1.000000e+00 : f32
    %168 = vector.broadcast %cst_68 : f32 to vector<8x128xf32>
    %169 = arith.addf %168, %167 : vector<8x128xf32>
    %170 = arith.divf %168, %169 : vector<8x128xf32>
    %171 = vector.extract_strided_slice %158 {offsets = [0, 256], sizes = [8, 128], strides = [1, 1]} : vector<8x512xf32> to vector<8x128xf32>
    %172 = math.tanh %171 : vector<8x128xf32>
    %173 = vector.extract_strided_slice %158 {offsets = [0, 384], sizes = [8, 128], strides = [1, 1]} : vector<8x512xf32> to vector<8x128xf32>
    %174 = arith.negf %173 : vector<8x128xf32>
    %175 = math.exp %174 : vector<8x128xf32>
    %cst_69 = arith.constant 1.000000e+00 : f32
    %176 = vector.broadcast %cst_69 : f32 to vector<8x128xf32>
    %177 = arith.addf %176, %175 : vector<8x128xf32>
    %178 = arith.divf %176, %177 : vector<8x128xf32>
    %179 = arith.mulf %170, %115 : vector<8x128xf32>
    %180 = arith.mulf %164, %172 : vector<8x128xf32>
    %181 = arith.addf %179, %180 : vector<8x128xf32>
    %182 = math.tanh %181 : vector<8x128xf32>
    %183 = arith.mulf %178, %182 : vector<8x128xf32>
    %184 = arith.truncf %183 : vector<8x128xf32> to vector<8x128xbf16>
    %c0_70 = arith.constant 0 : index
    %c0_71 = arith.constant 0 : index
    %185 = vector.load %arg12[%c0_70, %c0_71] : memref<8x256xbf16, #tpu.memory_space<vmem>>, vector<8x128xbf16>
    tpu.vector_store %arg12[%c0_70, %c0_71], %184 {strides = array<i32>} : memref<8x256xbf16, #tpu.memory_space<vmem>>, vector<8x128xbf16>,
    %c0_72 = arith.constant 0 : index
    %c0_73 = arith.constant 0 : index
    %186 = vector.load %arg12[%c0_72, %c0_73] : memref<8x256xbf16, #tpu.memory_space<vmem>>, vector<8x256xbf16>
    %c0_74 = arith.constant 0 : index
    %c0_75 = arith.constant 0 : index
    %187 = vector.load %arg6[%c0_74, %c0_75] : memref<256x512xbf16, #tpu.memory_space<vmem>>, vector<256x512xbf16>
    %cst_76 = arith.constant dense<0.000000e+00> : vector<8x512xf32>
    %188 = tpu.matmul %186, %187, %cst_76 {dimension_numbers = #tpu.dot_dimension_numbers<[1], [0], [0], [1], [0, 0, 1, 1], [], []>} : vector<8x256xbf16>, vector<256x512xbf16>, vector<8x512xf32> -> vector<8x512xf32>
    %189 = arith.addf %188, %16 : vector<8x512xf32>
    %190 = vector.extract_strided_slice %189 {offsets = [0, 0], sizes = [8, 128], strides = [1, 1]} : vector<8x512xf32> to vector<8x128xf32>
    %191 = arith.negf %190 : vector<8x128xf32>
    %192 = math.exp %191 : vector<8x128xf32>
    %cst_77 = arith.constant 1.000000e+00 : f32
    %193 = vector.broadcast %cst_77 : f32 to vector<8x128xf32>
    %194 = arith.addf %193, %192 : vector<8x128xf32>
    %195 = arith.divf %193, %194 : vector<8x128xf32>
    %196 = vector.extract_strided_slice %189 {offsets = [0, 128], sizes = [8, 128], strides = [1, 1]} : vector<8x512xf32> to vector<8x128xf32>
    %197 = arith.negf %196 : vector<8x128xf32>
    %198 = math.exp %197 : vector<8x128xf32>
    %cst_78 = arith.constant 1.000000e+00 : f32
    %199 = vector.broadcast %cst_78 : f32 to vector<8x128xf32>
    %200 = arith.addf %199, %198 : vector<8x128xf32>
    %201 = arith.divf %199, %200 : vector<8x128xf32>
    %202 = vector.extract_strided_slice %189 {offsets = [0, 256], sizes = [8, 128], strides = [1, 1]} : vector<8x512xf32> to vector<8x128xf32>
    %203 = math.tanh %202 : vector<8x128xf32>
    %204 = vector.extract_strided_slice %189 {offsets = [0, 384], sizes = [8, 128], strides = [1, 1]} : vector<8x512xf32> to vector<8x128xf32>
    %205 = arith.negf %204 : vector<8x128xf32>
    %206 = math.exp %205 : vector<8x128xf32>
    %cst_79 = arith.constant 1.000000e+00 : f32
    %207 = vector.broadcast %cst_79 : f32 to vector<8x128xf32>
    %208 = arith.addf %207, %206 : vector<8x128xf32>
    %209 = arith.divf %207, %208 : vector<8x128xf32>
    %210 = arith.mulf %201, %146 : vector<8x128xf32>
    %211 = arith.mulf %195, %203 : vector<8x128xf32>
    %212 = arith.addf %210, %211 : vector<8x128xf32>
    %213 = math.tanh %212 : vector<8x128xf32>
    %214 = arith.mulf %209, %213 : vector<8x128xf32>
    %215 = arith.truncf %214 : vector<8x128xf32> to vector<8x128xbf16>
    %c0_80 = arith.constant 0 : index
    %c128_81 = arith.constant 128 : index
    %216 = vector.load %arg12[%c0_80, %c128_81] : memref<8x256xbf16, #tpu.memory_space<vmem>>, vector<8x128xbf16>
    tpu.vector_store %arg12[%c0_80, %c128_81], %215 {strides = array<i32>} : memref<8x256xbf16, #tpu.memory_space<vmem>>, vector<8x128xbf16>,
    %c3_i32 = arith.constant 3 : i32
    %217 = arith.index_cast %c3_i32 : i32 to index
    %c0_82 = arith.constant 0 : index
    %c0_83 = arith.constant 0 : index
    %218 = vector.load %arg11[%217, %c0_82, %c0_83] : memref<4x8x512xbf16, #tpu.memory_space<vmem>>, vector<1x8x512xbf16>
    %219 = vector.shape_cast %218 : vector<1x8x512xbf16> to vector<8x512xbf16>
    %220 = arith.extf %219 : vector<8x512xbf16> to vector<8x512xf32>
    %c0_84 = arith.constant 0 : index
    %c0_85 = arith.constant 0 : index
    %221 = vector.load %arg12[%c0_84, %c0_85] : memref<8x256xbf16, #tpu.memory_space<vmem>>, vector<8x128xbf16>
    %c0_86 = arith.constant 0 : index
    %c0_87 = arith.constant 0 : index
    %222 = vector.load %arg4[%c0_86, %c0_87] : memref<128x512xbf16, #tpu.memory_space<vmem>>, vector<128x512xbf16>
    %cst_88 = arith.constant dense<0.000000e+00> : vector<8x512xf32>
    %223 = tpu.matmul %221, %222, %cst_88 {dimension_numbers = #tpu.dot_dimension_numbers<[1], [0], [0], [1], [0, 0, 1, 1], [], []>} : vector<8x128xbf16>, vector<128x512xbf16>, vector<8x512xf32> -> vector<8x512xf32>
    %224 = arith.addf %220, %223 : vector<8x512xf32>
    %225 = vector.extract_strided_slice %224 {offsets = [0, 0], sizes = [8, 128], strides = [1, 1]} : vector<8x512xf32> to vector<8x128xf32>
    %226 = arith.negf %225 : vector<8x128xf32>
    %227 = math.exp %226 : vector<8x128xf32>
    %cst_89 = arith.constant 1.000000e+00 : f32
    %228 = vector.broadcast %cst_89 : f32 to vector<8x128xf32>
    %229 = arith.addf %228, %227 : vector<8x128xf32>
    %230 = arith.divf %228, %229 : vector<8x128xf32>
    %231 = vector.extract_strided_slice %224 {offsets = [0, 128], sizes = [8, 128], strides = [1, 1]} : vector<8x512xf32> to vector<8x128xf32>
    %232 = arith.negf %231 : vector<8x128xf32>
    %233 = math.exp %232 : vector<8x128xf32>
    %cst_90 = arith.constant 1.000000e+00 : f32
    %234 = vector.broadcast %cst_90 : f32 to vector<8x128xf32>
    %235 = arith.addf %234, %233 : vector<8x128xf32>
    %236 = arith.divf %234, %235 : vector<8x128xf32>
    %237 = vector.extract_strided_slice %224 {offsets = [0, 256], sizes = [8, 128], strides = [1, 1]} : vector<8x512xf32> to vector<8x128xf32>
    %238 = math.tanh %237 : vector<8x128xf32>
    %239 = vector.extract_strided_slice %224 {offsets = [0, 384], sizes = [8, 128], strides = [1, 1]} : vector<8x512xf32> to vector<8x128xf32>
    %240 = arith.negf %239 : vector<8x128xf32>
    %241 = math.exp %240 : vector<8x128xf32>
    %cst_91 = arith.constant 1.000000e+00 : f32
    %242 = vector.broadcast %cst_91 : f32 to vector<8x128xf32>
    %243 = arith.addf %242, %241 : vector<8x128xf32>
    %244 = arith.divf %242, %243 : vector<8x128xf32>
    %245 = arith.mulf %236, %181 : vector<8x128xf32>
    %246 = arith.mulf %230, %238 : vector<8x128xf32>
    %247 = arith.addf %245, %246 : vector<8x128xf32>
    %248 = math.tanh %247 : vector<8x128xf32>
    %249 = arith.mulf %244, %248 : vector<8x128xf32>
    %250 = arith.truncf %249 : vector<8x128xf32> to vector<8x128xbf16>
    %c0_92 = arith.constant 0 : index
    %c0_93 = arith.constant 0 : index
    %251 = vector.load %arg12[%c0_92, %c0_93] : memref<8x256xbf16, #tpu.memory_space<vmem>>, vector<8x128xbf16>
    tpu.vector_store %arg12[%c0_92, %c0_93], %250 {strides = array<i32>} : memref<8x256xbf16, #tpu.memory_space<vmem>>, vector<8x128xbf16>,
    %c0_94 = arith.constant 0 : index
    %c0_95 = arith.constant 0 : index
    %252 = vector.load %arg12[%c0_94, %c0_95] : memref<8x256xbf16, #tpu.memory_space<vmem>>, vector<8x256xbf16>
    %c0_96 = arith.constant 0 : index
    %c0_97 = arith.constant 0 : index
    %253 = vector.load %arg6[%c0_96, %c0_97] : memref<256x512xbf16, #tpu.memory_space<vmem>>, vector<256x512xbf16>
    %cst_98 = arith.constant dense<0.000000e+00> : vector<8x512xf32>
    %254 = tpu.matmul %252, %253, %cst_98 {dimension_numbers = #tpu.dot_dimension_numbers<[1], [0], [0], [1], [0, 0, 1, 1], [], []>} : vector<8x256xbf16>, vector<256x512xbf16>, vector<8x512xf32> -> vector<8x512xf32>
    %255 = arith.addf %254, %16 : vector<8x512xf32>
    %256 = vector.extract_strided_slice %255 {offsets = [0, 0], sizes = [8, 128], strides = [1, 1]} : vector<8x512xf32> to vector<8x128xf32>
    %257 = arith.negf %256 : vector<8x128xf32>
    %258 = math.exp %257 : vector<8x128xf32>
    %cst_99 = arith.constant 1.000000e+00 : f32
    %259 = vector.broadcast %cst_99 : f32 to vector<8x128xf32>
    %260 = arith.addf %259, %258 : vector<8x128xf32>
    %261 = arith.divf %259, %260 : vector<8x128xf32>
    %262 = vector.extract_strided_slice %255 {offsets = [0, 128], sizes = [8, 128], strides = [1, 1]} : vector<8x512xf32> to vector<8x128xf32>
    %263 = arith.negf %262 : vector<8x128xf32>
    %264 = math.exp %263 : vector<8x128xf32>
    %cst_100 = arith.constant 1.000000e+00 : f32
    %265 = vector.broadcast %cst_100 : f32 to vector<8x128xf32>
    %266 = arith.addf %265, %264 : vector<8x128xf32>
    %267 = arith.divf %265, %266 : vector<8x128xf32>
    %268 = vector.extract_strided_slice %255 {offsets = [0, 256], sizes = [8, 128], strides = [1, 1]} : vector<8x512xf32> to vector<8x128xf32>
    %269 = math.tanh %268 : vector<8x128xf32>
    %270 = vector.extract_strided_slice %255 {offsets = [0, 384], sizes = [8, 128], strides = [1, 1]} : vector<8x512xf32> to vector<8x128xf32>
    %271 = arith.negf %270 : vector<8x128xf32>
    %272 = math.exp %271 : vector<8x128xf32>
    %cst_101 = arith.constant 1.000000e+00 : f32
    %273 = vector.broadcast %cst_101 : f32 to vector<8x128xf32>
    %274 = arith.addf %273, %272 : vector<8x128xf32>
    %275 = arith.divf %273, %274 : vector<8x128xf32>
    %276 = arith.mulf %267, %212 : vector<8x128xf32>
    %277 = arith.mulf %261, %269 : vector<8x128xf32>
    %278 = arith.addf %276, %277 : vector<8x128xf32>
    %279 = math.tanh %278 : vector<8x128xf32>
    %280 = arith.mulf %275, %279 : vector<8x128xf32>
    %281 = arith.truncf %280 : vector<8x128xf32> to vector<8x128xbf16>
    %c0_102 = arith.constant 0 : index
    %c128_103 = arith.constant 128 : index
    %282 = vector.load %arg12[%c0_102, %c128_103] : memref<8x256xbf16, #tpu.memory_space<vmem>>, vector<8x128xbf16>
    tpu.vector_store %arg12[%c0_102, %c128_103], %281 {strides = array<i32>} : memref<8x256xbf16, #tpu.memory_space<vmem>>, vector<8x128xbf16>,
    %c4_i32 = arith.constant 4 : i32
    %c0_104 = arith.constant 0 : index
    %c0_105 = arith.constant 0 : index
    %283 = vector.load %arg13[%c0_104, %c0_105] : memref<8x128xf32, #tpu.memory_space<vmem>>, vector<8x128xf32>
    tpu.vector_store %arg13[%c0_104, %c0_105], %247 {strides = array<i32>} : memref<8x128xf32, #tpu.memory_space<vmem>>, vector<8x128xf32>,
    %c0_106 = arith.constant 0 : index
    %c0_107 = arith.constant 0 : index
    %284 = vector.load %arg14[%c0_106, %c0_107] : memref<8x128xf32, #tpu.memory_space<vmem>>, vector<8x128xf32>
    tpu.vector_store %arg14[%c0_106, %c0_107], %278 {strides = array<i32>} : memref<8x128xf32, #tpu.memory_space<vmem>>, vector<8x128xf32>,
    %c1_i32_108 = arith.constant 1 : i32
    %285 = arith.cmpi eq, %arg1, %c1_i32_108 : i32
    %286 = arith.extui %285 : i1 to i32
    %c0_i32_109 = arith.constant 0 : i32
    %287 = arith.cmpi ne, %286, %c0_i32_109 : i32
    scf.if %287 {
      %c0_110 = arith.constant 0 : index
      %c128_111 = arith.constant 128 : index
      %288 = vector.load %arg12[%c0_110, %c128_111] : memref<8x256xbf16, #tpu.memory_space<vmem>>, vector<8x128xbf16>
      %c0_112 = arith.constant 0 : index
      %c0_113 = arith.constant 0 : index
      %289 = vector.load %arg8[%c0_112, %c0_113] : memref<128x128xbf16, #tpu.memory_space<vmem>>, vector<128x128xbf16>
      %cst_114 = arith.constant dense<0.000000e+00> : vector<8x128xf32>
      %290 = tpu.matmul %288, %289, %cst_114 {dimension_numbers = #tpu.dot_dimension_numbers<[1], [0], [0], [1], [0, 0, 1, 1], [], []>} : vector<8x128xbf16>, vector<128x128xbf16>, vector<8x128xf32> -> vector<8x128xf32>
      %c0_115 = arith.constant 0 : index
      %c0_116 = arith.constant 0 : index
      %291 = vector.load %arg9[%c0_115, %c0_116] : memref<1x128xf32, #tpu.memory_space<vmem>>, vector<1x128xf32>
      %292 = vector.broadcast %291 : vector<1x128xf32> to vector<8x128xf32>
      %293 = arith.addf %290, %292 : vector<8x128xf32>
      %c0_117 = arith.constant 0 : index
      %c0_118 = arith.constant 0 : index
      %294 = vector.load %arg10[%c0_117, %c0_118] : memref<8x128xf32, #tpu.memory_space<vmem>>, vector<8x128xf32>
      tpu.vector_store %arg10[%c0_117, %c0_118], %293 {strides = array<i32>} : memref<8x128xf32, #tpu.memory_space<vmem>>, vector<8x128xf32>,
    } else {
    }
    return
  }
  func.func @transform_0(%arg0: i32, %arg1: i32) -> (i32, i32, i32) {
    %c0_i32 = arith.constant 0 : i32
    %c0_i32_0 = arith.constant 0 : i32
    return %arg1, %arg0, %c0_i32 : i32, i32, i32
  }
  func.func @transform_1(%arg0: i32, %arg1: i32) -> (i32, i32) {
    %c0_i32 = arith.constant 0 : i32
    %c0_i32_0 = arith.constant 0 : i32
    %c0_i32_1 = arith.constant 0 : i32
    return %c0_i32, %c0_i32_0 : i32, i32
  }
  func.func @transform_2(%arg0: i32, %arg1: i32) -> (i32, i32) {
    %c0_i32 = arith.constant 0 : i32
    %c0_i32_0 = arith.constant 0 : i32
    %c0_i32_1 = arith.constant 0 : i32
    return %c0_i32, %c0_i32_0 : i32, i32
  }
  func.func @transform_3(%arg0: i32, %arg1: i32) -> (i32, i32) {
    %c0_i32 = arith.constant 0 : i32
    %c0_i32_0 = arith.constant 0 : i32
    %c0_i32_1 = arith.constant 0 : i32
    return %c0_i32, %c0_i32_0 : i32, i32
  }
  func.func @transform_4(%arg0: i32, %arg1: i32) -> (i32, i32) {
    %c0_i32 = arith.constant 0 : i32
    %c0_i32_0 = arith.constant 0 : i32
    %c0_i32_1 = arith.constant 0 : i32
    return %c0_i32, %c0_i32_0 : i32, i32
  }
  func.func @transform_5(%arg0: i32, %arg1: i32) -> (i32, i32) {
    %c0_i32 = arith.constant 0 : i32
    %c0_i32_0 = arith.constant 0 : i32
    %c0_i32_1 = arith.constant 0 : i32
    return %c0_i32, %c0_i32_0 : i32, i32
  }
  func.func @transform_6(%arg0: i32, %arg1: i32) -> (i32, i32) {
    %c0_i32 = arith.constant 0 : i32
    %c0_i32_0 = arith.constant 0 : i32
    %c0_i32_1 = arith.constant 0 : i32
    return %c0_i32, %c0_i32_0 : i32, i32
  }
  func.func @transform_7(%arg0: i32, %arg1: i32) -> (i32, i32) {
    %c0_i32 = arith.constant 0 : i32
    %c0_i32_0 = arith.constant 0 : i32
    %c0_i32_1 = arith.constant 0 : i32
    return %c0_i32, %c0_i32_0 : i32, i32
  }
  func.func @transform_8(%arg0: i32, %arg1: i32) -> (i32, i32) {
    %c0_i32 = arith.constant 0 : i32
    %c0_i32_0 = arith.constant 0 : i32
    return %arg0, %c0_i32 : i32, i32
  }
}

</mosaic_0001>

<llo_original>
// kernel: tpu_custom_call.1
$region0: #{tpu_custom_call.1}
  #allocation0 [shape = 'u32[]', space=smem, size = 0x4, offset = 0x4, fixed_abs, tag = 'smem constant byte address 0x4 - core index']
  #allocation1 [shape = 'u32[144,128]{1,0:T(1,128)}', space=vmem, size = 0x12000, scoped, tag = 'internal scratch']
  #allocation2 [shape = 'bf16[4,8,512]{2,1,0:T(8,128)(2,1)}', space=vmem, size = 0x8000, scoped, tag = 'scratch operand']
  #allocation3 [shape = 'bf16[8,256]{1,0:T(8,128)(2,1)}', space=vmem, size = 0x1000, scoped, tag = 'scratch operand']
  #allocation4 [shape = 'f32[8,128]{1,0:T(8,128)}', space=vmem, size = 0x1000, scoped, tag = 'scratch operand']
  #allocation5 [shape = 'f32[8,128]{1,0:T(8,128)}', space=vmem, size = 0x1000, scoped, tag = 'scratch operand']
  %s0 = inlined_call_operand.vmem [shape: f32[8,8,4], index: 0, kind: input, shape index: {}]
  %s1 = inlined_call_operand.vmem [shape: bf16[4,512], index: 1, kind: input, shape index: {}]
  %s2 = inlined_call_operand.hbm [shape: bf16[128,512], index: 2, kind: input, shape index: {}]
  %s3 = inlined_call_operand.vmem [shape: f32[1,512], index: 3, kind: input, shape index: {}]
  %s4 = inlined_call_operand.hbm [shape: bf16[256,512], index: 4, kind: input, shape index: {}]
  %s5 = inlined_call_operand.vmem [shape: f32[1,512], index: 5, kind: input, shape index: {}]
  %s6 = inlined_call_operand.vmem [shape: bf16[128,128], index: 6, kind: input, shape index: {}]
  %s7 = inlined_call_operand.vmem [shape: f32[1,128], index: 7, kind: input, shape index: {}]
  %s8 = inlined_call_operand.hbm [shape: f32[8,128], index: 8, kind: output, shape index: {}]
  %s9 = sld [smem:[#allocation0]]
  $region81: #{tpu_custom_call.1} parent=0
    _
  %s11 = ssub.s32 1, %s9
  %s12 = scalar_select 0, %s11, %s9
  $region1: #{tpu_custom_call.1} parent=0
    #allocation6 [shape = 'u8[131072]{0}', space=vmem, size = 0x20000, scoped, tag = 'input window, operand 2, single buffered']
    #allocation7 [shape = 's32[2]{0}', space=sflag, size = 0x8, scoped, tag = 'scoped memory for tpu_custom_call.1']
    #allocation8 [shape = 's32[2]{0}', space=sflag, size = 0x8, scoped, tag = 'scoped memory for tpu_custom_call.1']
    #allocation9 [shape = 'u8[262144]{0}', space=vmem, size = 0x40000, scoped, tag = 'input window, operand 4, single buffered']
    #allocation10 [shape = 's32[1]{0}', space=sflag, size = 0x4, scoped, tag = 'scoped memory for tpu_custom_call.1']
    #allocation11 [shape = 'u8[4096]{0}', space=vmem, size = 0x1000, scoped, tag = 'output window, operand 0, single buffered']
    %13 = vsyncpa [#allocation7], 0
    %14 = vsyncpa [#allocation10], 0
    %15 = vsyncpa [#allocation8], 0
    loop: start=0, step=1, limit=4
    $region2: #{tpu_custom_call.1} parent=1 // loop_pre_header
      _
    $region3: #{tpu_custom_call.1} parent=1 // loop_header
      %s17 = sphi 0, %s21
      %p18 = scmp.ge.s32.totalorder %s17, 4
      %s24 = sphi 0, %s36
      %s25 = sphi 0, %s32
      %s26 = sphi 0, %s24
      %s27 = sphi 0, %s25
      %s28 = sphi 0, %s26
      %s29 = sphi 0, %s27
      %s41 = sphi 0, %s43
      %s44 = sphi 0, %s41
      %s45 = sphi 0, %s44
      %s61 = sphi 0, %s45
      %s65 = sphi 0, %s65
      %s67 = sphi 0, %s65
      %s68 = sphi 0, %s67
      %s82 = sphi 0, %s68
      %s86 = sphi 0, %s86
      %s88 = sphi 0, %s86
      %s89 = sphi 0, %s88
      %s103 = sphi 0, %s89
      %s107 = sphi 0, %s107
      %s109 = sphi 0, %s107
      %s110 = sphi 0, %s109
      %s124 = sphi 0, %s110
      %s128 = sphi 0, %s128
      %s130 = sphi 0, %s128
      %s131 = sphi 0, %s130
      %s145 = sphi 0, %s131
      %s149 = sphi 0, %s149
      %s151 = sphi 0, %s149
      %s152 = sphi 0, %s151
      %s166 = sphi 0, %s152
      %s170 = sphi 0, %s170
      %s172 = sphi 0, %s170
      %s173 = sphi 0, %s172
      %s187 = sphi 0, %s173
      %s191 = sphi 0, %s191
      %s193 = sphi 0, %s191
      %s194 = sphi 0, %s193
      %s208 = sphi 0, %s194
      %s214 = sphi 0, %s216
      %s217 = sphi 0, %s214
      %s218 = sphi 0, %s217
      %s234 = sphi 0, %s218
    $region4: #{tpu_custom_call.1} parent=1 // loop_header_branch
      %20 = sbr.rel (%p18) target = $region8
    $region5: #{tpu_custom_call.1} parent=1 // loop_body
      %s22 = ssub.s32 %s17, 1
      %s23 = ssub.s32 %s17, 2
      %s30 = sadd.s32 1, %s25
      %p31 = scmp.ge.s32.totalorder %s30, 2
      %s32 = scalar_select %p31, 0, %s30
      %s33 = sadd.s32 1, %s24
      %s34 = scalar_select %p31, %s33, %s24
      %p35 = scmp.ge.s32.totalorder %s34, 1
      %s36 = scalar_select %p35, 0, %s34
      %s37 = ssub.s32 %s25, %s32
      %s38 = ssub.s32 %s24, %s36
      %s39 = sor.u32 %s37, %s38
      %p40 = scmp.eq.s32.totalorder %s39, 0
      %s42 = sadd.s32 %s41, 1
      %s43 = scalar_select %p40, %s41, %s42
      %p46 = pneg %p40
      %p47 = scmp.eq.s32.totalorder %s17, 1
      %p48 = por %p46, %p47
      %p49 = scmp.ne.s32.totalorder %s41, %s44
      %p50 = scmp.eq.s32.totalorder %s17, 0
      %p51 = por %p49, %p50
      %p52 = scmp.ne.s32.totalorder %s41, %s44
      %p53 = scmp.eq.s32.totalorder %s22, 1
      %p54 = por %p52, %p53
      %p55 = scmp.ne.s32.totalorder %s44, %s45
      %p56 = scmp.eq.s32.totalorder %s22, 0
      %p57 = por %p55, %p56
      %p58 = scmp.ne.s32.totalorder %s44, %s45
      %p59 = scmp.eq.s32.totalorder %s23, 1
      %p60 = por %p58, %p59
      %p62 = scmp.ne.s32.totalorder %s45, %s61
      %p63 = scmp.eq.s32.totalorder %s23, 0
      %p64 = por %p62, %p63
      %s66 = sadd.s32 %s65, 1
      %p69 = scmp.eq.s32.totalorder %s17, 1
      %p70 = scmp.ne.s32.totalorder %s65, %s67
      %p71 = scmp.eq.s32.totalorder %s17, 0
      %p72 = por %p70, %p71
      %p73 = scmp.ne.s32.totalorder %s65, %s67
      %p74 = scmp.eq.s32.totalorder %s22, 1
      %p75 = por %p73, %p74
      %p76 = scmp.ne.s32.totalorder %s67, %s68
      %p77 = scmp.eq.s32.totalorder %s22, 0
      %p78 = por %p76, %p77
      %p79 = scmp.ne.s32.totalorder %s67, %s68
      %p80 = scmp.eq.s32.totalorder %s23, 1
      %p81 = por %p79, %p80
      %p83 = scmp.ne.s32.totalorder %s68, %s82
      %p84 = scmp.eq.s32.totalorder %s23, 0
      %p85 = por %p83, %p84
      %s87 = sadd.s32 %s86, 1
      %p90 = scmp.eq.s32.totalorder %s17, 1
      %p91 = scmp.ne.s32.totalorder %s86, %s88
      %p92 = scmp.eq.s32.totalorder %s17, 0
      %p93 = por %p91, %p92
      %p94 = scmp.ne.s32.totalorder %s86, %s88
      %p95 = scmp.eq.s32.totalorder %s22, 1
      %p96 = por %p94, %p95
      %p97 = scmp.ne.s32.totalorder %s88, %s89
      %p98 = scmp.eq.s32.totalorder %s22, 0
      %p99 = por %p97, %p98
      %p100 = scmp.ne.s32.totalorder %s88, %s89
      %p101 = scmp.eq.s32.totalorder %s23, 1
      %p102 = por %p100, %p101
      %p104 = scmp.ne.s32.totalorder %s89, %s103
      %p105 = scmp.eq.s32.totalorder %s23, 0
      %p106 = por %p104, %p105
      %s108 = sadd.s32 %s107, 1
      %p111 = scmp.eq.s32.totalorder %s17, 1
      %p112 = scmp.ne.s32.totalorder %s107, %s109
      %p113 = scmp.eq.s32.totalorder %s17, 0
      %p114 = por %p112, %p113
      %p115 = scmp.ne.s32.totalorder %s107, %s109
      %p116 = scmp.eq.s32.totalorder %s22, 1
      %p117 = por %p115, %p116
      %p118 = scmp.ne.s32.totalorder %s109, %s110
      %p119 = scmp.eq.s32.totalorder %s22, 0
      %p120 = por %p118, %p119
      %p121 = scmp.ne.s32.totalorder %s109, %s110
      %p122 = scmp.eq.s32.totalorder %s23, 1
      %p123 = por %p121, %p122
      %p125 = scmp.ne.s32.totalorder %s110, %s124
      %p126 = scmp.eq.s32.totalorder %s23, 0
      %p127 = por %p125, %p126
      %s129 = sadd.s32 %s128, 1
      %p132 = scmp.eq.s32.totalorder %s17, 1
      %p133 = scmp.ne.s32.totalorder %s128, %s130
      %p134 = scmp.eq.s32.totalorder %s17, 0
      %p135 = por %p133, %p134
      %p136 = scmp.ne.s32.totalorder %s128, %s130
      %p137 = scmp.eq.s32.totalorder %s22, 1
      %p138 = por %p136, %p137
      %p139 = scmp.ne.s32.totalorder %s130, %s131
      %p140 = scmp.eq.s32.totalorder %s22, 0
      %p141 = por %p139, %p140
      %p142 = scmp.ne.s32.totalorder %s130, %s131
      %p143 = scmp.eq.s32.totalorder %s23, 1
      %p144 = por %p142, %p143
      %p146 = scmp.ne.s32.totalorder %s131, %s145
      %p147 = scmp.eq.s32.totalorder %s23, 0
      %p148 = por %p146, %p147
      %s150 = sadd.s32 %s149, 1
      %p153 = scmp.eq.s32.totalorder %s17, 1
      %p154 = scmp.ne.s32.totalorder %s149, %s151
      %p155 = scmp.eq.s32.totalorder %s17, 0
      %p156 = por %p154, %p155
      %p157 = scmp.ne.s32.totalorder %s149, %s151
      %p158 = scmp.eq.s32.totalorder %s22, 1
      %p159 = por %p157, %p158
      %p160 = scmp.ne.s32.totalorder %s151, %s152
      %p161 = scmp.eq.s32.totalorder %s22, 0
      %p162 = por %p160, %p161
      %p163 = scmp.ne.s32.totalorder %s151, %s152
      %p164 = scmp.eq.s32.totalorder %s23, 1
      %p165 = por %p163, %p164
      %p167 = scmp.ne.s32.totalorder %s152, %s166
      %p168 = scmp.eq.s32.totalorder %s23, 0
      %p169 = por %p167, %p168
      %s171 = sadd.s32 %s170, 1
      %p174 = scmp.eq.s32.totalorder %s17, 1
      %p175 = scmp.ne.s32.totalorder %s170, %s172
      %p176 = scmp.eq.s32.totalorder %s17, 0
      %p177 = por %p175, %p176
      %p178 = scmp.ne.s32.totalorder %s170, %s172
      %p179 = scmp.eq.s32.totalorder %s22, 1
      %p180 = por %p178, %p179
      %p181 = scmp.ne.s32.totalorder %s172, %s173
      %p182 = scmp.eq.s32.totalorder %s22, 0
      %p183 = por %p181, %p182
      %p184 = scmp.ne.s32.totalorder %s172, %s173
      %p185 = scmp.eq.s32.totalorder %s23, 1
      %p186 = por %p184, %p185
      %p188 = scmp.ne.s32.totalorder %s173, %s187
      %p189 = scmp.eq.s32.totalorder %s23, 0
      %p190 = por %p188, %p189
      %s192 = sadd.s32 %s191, 1
      %p195 = scmp.eq.s32.totalorder %s17, 1
      %p196 = scmp.ne.s32.totalorder %s191, %s193
      %p197 = scmp.eq.s32.totalorder %s17, 0
      %p198 = por %p196, %p197
      %p199 = scmp.ne.s32.totalorder %s191, %s193
      %p200 = scmp.eq.s32.totalorder %s22, 1
      %p201 = por %p199, %p200
      %p202 = scmp.ne.s32.totalorder %s193, %s194
      %p203 = scmp.eq.s32.totalorder %s22, 0
      %p204 = por %p202, %p203
      %p205 = scmp.ne.s32.totalorder %s193, %s194
      %p206 = scmp.eq.s32.totalorder %s23, 1
      %p207 = por %p205, %p206
      %p209 = scmp.ne.s32.totalorder %s194, %s208
      %p210 = scmp.eq.s32.totalorder %s23, 0
      %p211 = por %p209, %p210
      %s212 = ssub.s32 %s24, %s36
      %p213 = scmp.eq.s32.totalorder %s212, 0
      %s215 = sadd.s32 %s214, 1
      %s216 = scalar_select %p213, %s214, %s215
      %p219 = pneg %p213
      %p220 = scmp.eq.s32.totalorder %s17, 1
      %p221 = por %p219, %p220
      %p222 = scmp.ne.s32.totalorder %s214, %s217
      %p223 = scmp.eq.s32.totalorder %s17, 0
      %p224 = por %p222, %p223
      %p225 = scmp.ne.s32.totalorder %s214, %s217
      %p226 = scmp.eq.s32.totalorder %s22, 1
      %p227 = por %p225, %p226
      %p228 = scmp.ne.s32.totalorder %s217, %s218
      %p229 = scmp.eq.s32.totalorder %s22, 0
      %p230 = por %p228, %p229
      %p231 = scmp.ne.s32.totalorder %s217, %s218
      %p232 = scmp.eq.s32.totalorder %s23, 1
      %p233 = por %p231, %p232
      %p235 = scmp.ne.s32.totalorder %s218, %s234
      %p236 = scmp.eq.s32.totalorder %s23, 0
      %p237 = por %p235, %p236
      %p238 = scmp.le.s32.totalorder 1, %s17
      %p239 = scmp.lt.s32.totalorder %s17, 3
      %p240 = pnand %p238, %p239
      %p241 = pneg %p240
      // Predicated region
      $region9: #{tpu_custom_call.1} parent=5 // pred_check
        _
      $region10: #{tpu_custom_call.1} parent=5 // pred_check_branch
        %243 = sbr.rel (%p240) target = $region12
      $region11: #{tpu_custom_call.1} parent=5 // pred_region
        %s244 = ssub.s32 %s17, 1
        // Predicated region
        $region13: #{tpu_custom_call.1} parent=11 // pred_check
          %p245 = pneg %p78
        $region14: #{tpu_custom_call.1} parent=11 // pred_check_branch
          %247 = sbr.rel (%p245) target = $region16
        $region15: #{tpu_custom_call.1} parent=11 // pred_region
          _
        $region16: #{tpu_custom_call.1} parent=11 // pred_fallthru
          _
        // Predicated region
        $region17: #{tpu_custom_call.1} parent=11 // pred_check
          %p248 = pneg %p99
        $region18: #{tpu_custom_call.1} parent=11 // pred_check_branch
          %250 = sbr.rel (%p248) target = $region20
        $region19: #{tpu_custom_call.1} parent=11 // pred_region
          %s252 = ssub.s32 4096, 4096
          %253 = vsyncadd [#allocation7], %s252
          %s254 = sshll.u32 [#allocation6], 4
          %s255 = int_to_ptr.vmem [resolvable:$true] %s254
          %260 = dma.hbm_to_vmem [thread:$0]  %s2, 4096, %s255, [#allocation7], 256, 256, 16
        $region20: #{tpu_custom_call.1} parent=11 // pred_fallthru
          _
        // Predicated region
        $region21: #{tpu_custom_call.1} parent=11 // pred_check
          %p261 = pneg %p120
        $region22: #{tpu_custom_call.1} parent=11 // pred_check_branch
          %263 = sbr.rel (%p261) target = $region24
        $region23: #{tpu_custom_call.1} parent=11 // pred_region
          _
        $region24: #{tpu_custom_call.1} parent=11 // pred_fallthru
          _
        // Predicated region
        $region25: #{tpu_custom_call.1} parent=11 // pred_check
          %p264 = pneg %p141
        $region26: #{tpu_custom_call.1} parent=11 // pred_check_branch
          %266 = sbr.rel (%p264) target = $region28
        $region27: #{tpu_custom_call.1} parent=11 // pred_region
          %s268 = ssub.s32 8192, 8192
          %269 = vsyncadd [#allocation10], %s268
          %s270 = sshll.u32 [#allocation9], 4
          %s271 = int_to_ptr.vmem [resolvable:$true] %s270
          %276 = dma.hbm_to_vmem [thread:$0]  %s4, 8192, %s271, [#allocation10], 256, 256, 16
        $region28: #{tpu_custom_call.1} parent=11 // pred_fallthru
          _
        // Predicated region
        $region29: #{tpu_custom_call.1} parent=11 // pred_check
          %p277 = pneg %p162
        $region30: #{tpu_custom_call.1} parent=11 // pred_check_branch
          %279 = sbr.rel (%p277) target = $region32
        $region31: #{tpu_custom_call.1} parent=11 // pred_region
          _
        $region32: #{tpu_custom_call.1} parent=11 // pred_fallthru
          _
        // Predicated region
        $region33: #{tpu_custom_call.1} parent=11 // pred_check
          %p280 = pneg %p183
        $region34: #{tpu_custom_call.1} parent=11 // pred_check_branch
          %282 = sbr.rel (%p280) target = $region36
        $region35: #{tpu_custom_call.1} parent=11 // pred_region
          _
        $region36: #{tpu_custom_call.1} parent=11 // pred_fallthru
          _
        // Predicated region
        $region37: #{tpu_custom_call.1} parent=11 // pred_check
          %p283 = pneg %p204
        $region38: #{tpu_custom_call.1} parent=11 // pred_check_branch
          %285 = sbr.rel (%p283) target = $region40
        $region39: #{tpu_custom_call.1} parent=11 // pred_region
          _
        $region40: #{tpu_custom_call.1} parent=11 // pred_fallthru
          _
      $region12: #{tpu_custom_call.1} parent=5 // pred_fallthru
        _
      %p286 = scmp.lt.s32.totalorder %s17, 2
      // Predicated region
      $region41: #{tpu_custom_call.1} parent=5 // pred_check
        %p287 = pneg %p286
      $region42: #{tpu_custom_call.1} parent=5 // pred_check_branch
        %289 = sbr.rel (%p287) target = $region44
      $region43: #{tpu_custom_call.1} parent=5 // pred_region
        // Predicated region
        $region45: #{tpu_custom_call.1} parent=43 // pred_check
          %p290 = pneg %p51
        $region46: #{tpu_custom_call.1} parent=43 // pred_check_branch
          %292 = sbr.rel (%p290) target = $region48
        $region47: #{tpu_custom_call.1} parent=43 // pred_region
          %s293 = smul.u32 4, %s25
          %p294 = scmp.lt.s32.totalorder %s293, 7
          %s295 = scalar_select %p294, %s293, 7
          %p296 = scmp.lt.s32.totalorder %s24, 0
          %s297 = scalar_select %p296, %s24, 0
          %s298 = sadd.s32 %s297, %s295
          %s299 = smul.addr %s298, 8
          %s300 = scalar_lea.vmem %s0, %s299
          %s301 = smul.u32 4, %s25
        $region48: #{tpu_custom_call.1} parent=43 // pred_fallthru
          _
      $region44: #{tpu_custom_call.1} parent=5 // pred_fallthru
        _
      %p302 = scmp.le.s32.totalorder 1, %s17
      %p303 = scmp.lt.s32.totalorder %s17, 3
      %p304 = pnand %p302, %p303
      %p305 = pneg %p304
      // Predicated region
      $region49: #{tpu_custom_call.1} parent=5 // pred_check
        _
      $region50: #{tpu_custom_call.1} parent=5 // pred_check_branch
        %307 = sbr.rel (%p304) target = $region52
      $region51: #{tpu_custom_call.1} parent=5 // pred_region
        %s308 = ssub.s32 %s17, 1
        // Predicated region
        $region53: #{tpu_custom_call.1} parent=51 // pred_check
          %p309 = pneg %p99
        $region54: #{tpu_custom_call.1} parent=51 // pred_check_branch
          %311 = sbr.rel (%p309) target = $region56
        $region55: #{tpu_custom_call.1} parent=51 // pred_region
          %312 = dma.done [#allocation7], 4096
        $region56: #{tpu_custom_call.1} parent=51 // pred_fallthru
          _
        // Predicated region
        $region57: #{tpu_custom_call.1} parent=51 // pred_check
          %p313 = pneg %p141
        $region58: #{tpu_custom_call.1} parent=51 // pred_check_branch
          %315 = sbr.rel (%p313) target = $region60
        $region59: #{tpu_custom_call.1} parent=51 // pred_region
          %316 = dma.done [#allocation10], 8192
        $region60: #{tpu_custom_call.1} parent=51 // pred_fallthru
          _
        %s317 = smul.u32 4, %s27
        %p318 = scmp.lt.s32.totalorder %s317, 7
        %s319 = scalar_select %p318, %s317, 7
        %p320 = scmp.lt.s32.totalorder %s26, 0
        %s321 = scalar_select %p320, %s26, 0
        %s322 = sadd.s32 %s321, %s319
        %s323 = smul.addr %s322, 8
        %s324 = scalar_lea.vmem %s0, %s323
        %p325 = pneg %p57
        %p326 = pneg %p54
        %p327 = pneg %p78
        %p328 = pneg %p75
        %p329 = pneg %p99
        %p330 = pneg %p96
        %p331 = pneg %p120
        %p332 = pneg %p117
        %p333 = pneg %p141
        %p334 = pneg %p138
        %p335 = pneg %p162
        %p336 = pneg %p159
        %p337 = pneg %p183
        %p338 = pneg %p180
        %p339 = pneg %p204
        %p340 = pneg %p201
        %p341 = pneg %p230
        %p342 = pneg %p227
        %s343 = smul.u32 4, %s27
        %p344 = scmp.lt.s32.totalorder %s343, 7
        %s345 = scalar_select %p344, %s343, 7
        %p346 = scmp.lt.s32.totalorder %s26, 0
        %s347 = scalar_select %p346, %s26, 0
        %s348 = sadd.s32 %s347, %s345
        %s349 = smul.addr %s348, 8
        %s350 = scalar_lea.vmem %s0, %s349
        %s351 = smul.u32 4, %s27
        %p353 = scmp.eq.s32.totalorder %s27, 0
        // Predicated region
        $region61: #{tpu_custom_call.1} parent=51 // pred_check
          %p354 = pneg %p353
        $region62: #{tpu_custom_call.1} parent=51 // pred_check_branch
          %356 = sbr.rel (%p354) target = $region64
        $region63: #{tpu_custom_call.1} parent=51 // pred_region
          %357 = vst [vmem:[#allocation3] sm:$0xff] 0
          %358 = vst [vmem:[#allocation4] sm:$0xff] 0.0
          %359 = vst [vmem:[#allocation5] sm:$0xff] 0.0
        $region64: #{tpu_custom_call.1} parent=51 // pred_fallthru
          _
        %v360 = vld [vmem:[%s350] sm:$0xff]
        %v361 = vld [vmem:[%s350 + $0x8] sm:$0xff]
        %v362 = vld [vmem:[%s350 + $0x10] sm:$0xff]
        %v363 = vld [vmem:[%s350 + $0x18] sm:$0xff]
        %v364 = vpack.c.bf16 %v361, %v360
        %v365 = vpack.c.bf16 %v363, %v362
        %v366 = vld [vmem:[%s1] sm:$0xff]
        %v367 = vld [vmem:[%s3] sm:$0xf]
        %v369 = vlaneseq
        %v370 = vshrl.u32 %v369, 7
        %v371 = vsub.s32 0, %v370
        %v372 = vrot.slane %v367, %v371
        %v373 = vlaneseq
        %v374 = vshrl.u32 %v373, 7
        %v375 = vsub.s32 1, %v374
        %v376 = vrot.slane %v367, %v375
        %v377 = vlaneseq
        %v378 = vshrl.u32 %v377, 7
        %v379 = vsub.s32 2, %v378
        %v380 = vrot.slane %v367, %v379
        %v381 = vlaneseq
        %v382 = vshrl.u32 %v381, 7
        %v383 = vsub.s32 3, %v382
        %v384 = vrot.slane %v367, %v383
        %v390 = vcombine.high %v366, %v366
        %v392 = vunpack.c.l.s4 1983009808
        %v393 = vunpack.c.0.s8 %v392
        %v394 = vlaneseq
        %v395 = vshrl.u32 %v394, 7
        %v396 = vsub.s32 %v393, %v395
        %v397 = vrot.slane %v366, %v396
        %v399 = vunpack.c.l.s4 1983009808
        %v400 = vunpack.c.0.s8 %v399
        %v401 = vlaneseq
        %v402 = vshrl.u32 %v401, 7
        %v403 = vsub.s32 %v400, %v402
        %v404 = vrot.slane %v390, %v403
        %v405 = vcombine.high %v397, %v397
        %v406 = vcombine.high %v404, %v404
        %vm407 = vcmask 31744
        %v409 = vsel %vm407, %v364, 0
        %v412 = vsel %vm407, %v365, 0
        %vm414 = vcmask 1041408
        %v416 = vsel %vm414, %v397, 0
        %v419 = vsel %vm414, %v405, 0
        %v422 = vsel %vm414, %v404, 0
        %v425 = vsel %vm414, %v406, 0
        %427 = vmatprep.subr.bf16.mxu0 %v419
        %428 = vmatpush1.bf16.msra.mxu0 %v416
        %429 = vmatprep.subr.bf16.mxu0 0
        %430 = vmatpush1.bf16.msra.mxu0 0
        %431 = vmatprep.subr.bf16.mxu0 0
        %432 = vmatpush1.bf16.msra.mxu0 0
        %433 = vmatprep.subr.bf16.mxu0 0
        %434 = vmatpush1.bf16.msra.mxu0 0
        %435 = vmatprep.subr.bf16.mxu0 0
        %436 = vmatpush1.bf16.msra.mxu0 0
        %437 = vmatprep.subr.bf16.mxu0 0
        %438 = vmatpush1.bf16.msra.mxu0 0
        %439 = vmatprep.subr.bf16.mxu0 0
        %440 = vmatpush1.bf16.msra.mxu0 0
        %441 = vmatprep.subr.bf16.mxu0 0
        %442 = vmatpush1.bf16.msra.mxu0 0
        %443 = vmatprep.subr.bf16.mxu0 0
        %444 = vmatpush1.bf16.msra.mxu0 0
        %445 = vmatprep.subr.bf16.mxu0 0
        %446 = vmatpush1.bf16.msra.mxu0 0
        %447 = vmatprep.subr.bf16.mxu0 0
        %448 = vmatpush1.bf16.msra.mxu0 0
        %449 = vmatprep.subr.bf16.mxu0 0
        %450 = vmatpush1.bf16.msra.mxu0 0
        %451 = vmatprep.subr.bf16.mxu0 0
        %452 = vmatpush1.bf16.msra.mxu0 0
        %453 = vmatprep.subr.bf16.mxu0 0
        %454 = vmatpush1.bf16.msra.mxu0 0
        %455 = vmatprep.subr.bf16.mxu0 0
        %456 = vmatpush1.bf16.msra.mxu0 0
        %457 = vmatprep.subr.bf16.mxu0 0
        %458 = vmatpush1.bf16.msra.mxu0 0
        %459 = vmatprep.mubr.bf16.mxu0 0
        %460 = vmatmul.mubr.bf16.gmra.mrb[0].mxu0 %v409
        %v461 = vpop.f32.mrb[0].mxu0
        %v462 = vadd.f32 %v372, %v461
        %v463 = vpop.f32.mrb[0].mxu0
        %v464 = vadd.f32 %v376, %v463
        %v465 = vpop.f32.mrb[0].mxu0
        %v466 = vadd.f32 %v372, %v465
        %v467 = vpop.f32.mrb[0].mxu0
        %v468 = vadd.f32 %v376, %v467
        %469 = vmatprep.mubr.bf16.mxu0 0
        %470 = vmatmul.mubr.bf16.gmra.mrb[0].mxu0 %v412
        %v471 = vpop.f32.mrb[0].mxu0
        %v472 = vadd.f32 %v372, %v471
        %v473 = vpop.f32.mrb[0].mxu0
        %v474 = vadd.f32 %v376, %v473
        %v475 = vpop.f32.mrb[0].mxu0
        %v476 = vadd.f32 %v372, %v475
        %v477 = vpop.f32.mrb[0].mxu0
        %v478 = vadd.f32 %v376, %v477
        %479 = vdwg.mxu0
        %480 = vmatprep.subr.bf16.mxu0 %v425
        %481 = vmatpush1.bf16.msra.mxu0 %v422
        %482 = vmatprep.subr.bf16.mxu0 0
        %483 = vmatpush1.bf16.msra.mxu0 0
        %484 = vmatprep.subr.bf16.mxu0 0
        %485 = vmatpush1.bf16.msra.mxu0 0
        %486 = vmatprep.subr.bf16.mxu0 0
        %487 = vmatpush1.bf16.msra.mxu0 0
        %488 = vmatprep.subr.bf16.mxu0 0
        %489 = vmatpush1.bf16.msra.mxu0 0
        %490 = vmatprep.subr.bf16.mxu0 0
        %491 = vmatpush1.bf16.msra.mxu0 0
        %492 = vmatprep.subr.bf16.mxu0 0
        %493 = vmatpush1.bf16.msra.mxu0 0
        %494 = vmatprep.subr.bf16.mxu0 0
        %495 = vmatpush1.bf16.msra.mxu0 0
        %496 = vmatprep.subr.bf16.mxu0 0
        %497 = vmatpush1.bf16.msra.mxu0 0
        %498 = vmatprep.subr.bf16.mxu0 0
        %499 = vmatpush1.bf16.msra.mxu0 0
        %500 = vmatprep.subr.bf16.mxu0 0
        %501 = vmatpush1.bf16.msra.mxu0 0
        %502 = vmatprep.subr.bf16.mxu0 0
        %503 = vmatpush1.bf16.msra.mxu0 0
        %504 = vmatprep.subr.bf16.mxu0 0
        %505 = vmatpush1.bf16.msra.mxu0 0
        %506 = vmatprep.subr.bf16.mxu0 0
        %507 = vmatpush1.bf16.msra.mxu0 0
        %508 = vmatprep.subr.bf16.mxu0 0
        %509 = vmatpush1.bf16.msra.mxu0 0
        %510 = vmatprep.subr.bf16.mxu0 0
        %511 = vmatpush1.bf16.msra.mxu0 0
        %512 = vmatprep.mubr.bf16.mxu0 0
        %513 = vmatmul.mubr.bf16.gmra.mrb[0].mxu0 %v409
        %v514 = vpop.f32.mrb[0].mxu0
        %v515 = vadd.f32 %v380, %v514
        %v516 = vpop.f32.mrb[0].mxu0
        %v517 = vadd.f32 %v384, %v516
        %v518 = vpop.f32.mrb[0].mxu0
        %v519 = vadd.f32 %v380, %v518
        %v520 = vpop.f32.mrb[0].mxu0
        %v521 = vadd.f32 %v384, %v520
        %522 = vmatprep.mubr.bf16.mxu0 0
        %523 = vmatmul.mubr.bf16.gmra.mrb[0].mxu0 %v412
        %v524 = vpop.f32.mrb[0].mxu0
        %v525 = vadd.f32 %v380, %v524
        %v526 = vpop.f32.mrb[0].mxu0
        %v527 = vadd.f32 %v384, %v526
        %v528 = vpop.f32.mrb[0].mxu0
        %v529 = vadd.f32 %v380, %v528
        %v530 = vpop.f32.mrb[0].mxu0
        %v531 = vadd.f32 %v384, %v530
        %532 = vdwg.mxu0
        %v533 = vpack.c.bf16 %v462, %v462
        %v534 = vpack.c.bf16 %v464, %v464
        %v535 = vpack.c.bf16 %v515, %v515
        %v536 = vpack.c.bf16 %v517, %v517
        %v537 = vpack.c.bf16 %v466, %v466
        %v538 = vpack.c.bf16 %v468, %v468
        %v539 = vpack.c.bf16 %v519, %v519
        %v540 = vpack.c.bf16 %v521, %v521
        %v541 = vpack.c.bf16 %v472, %v472
        %v542 = vpack.c.bf16 %v474, %v474
        %v543 = vpack.c.bf16 %v525, %v525
        %v544 = vpack.c.bf16 %v527, %v527
        %v545 = vpack.c.bf16 %v476, %v476
        %v546 = vpack.c.bf16 %v478, %v478
        %v547 = vpack.c.bf16 %v529, %v529
        %v548 = vpack.c.bf16 %v531, %v531
        %v565 = vunpack.c.l.b16 %v533
        %v566 = vunpack.c.l.b16 %v534
        %v567 = vunpack.c.l.b16 %v535
        %v568 = vunpack.c.l.b16 %v536
        %v569 = vunpack.c.l.b16 %v537
        %v570 = vunpack.c.l.b16 %v538
        %v571 = vunpack.c.l.b16 %v539
        %v572 = vunpack.c.l.b16 %v540
        %v573 = vunpack.c.l.b16 %v541
        %v574 = vunpack.c.l.b16 %v542
        %v575 = vunpack.c.l.b16 %v543
        %v576 = vunpack.c.l.b16 %v544
        %v577 = vunpack.c.l.b16 %v545
        %v578 = vunpack.c.l.b16 %v546
        %v579 = vunpack.c.l.b16 %v547
        %v580 = vunpack.c.l.b16 %v548
        %v581 = vpack.c.b16 %v566, %v565
        %v582 = vpack.c.b16 %v568, %v567
        %v583 = vpack.c.b16 %v570, %v569
        %v584 = vpack.c.b16 %v572, %v571
        %v585 = vpack.c.b16 %v574, %v573
        %v586 = vpack.c.b16 %v576, %v575
        %v587 = vpack.c.b16 %v578, %v577
        %v588 = vpack.c.b16 %v580, %v579
        %597 = vst [vmem:[#allocation2] sm:$0xff] %v581
        %598 = vst [vmem:[#allocation2 + $0x8] sm:$0xff] %v582
        %599 = vst [vmem:[#allocation2 + $0x10] sm:$0xff] %v583
        %600 = vst [vmem:[#allocation2 + $0x18] sm:$0xff] %v584
        %601 = vst [vmem:[#allocation2 + $0x20] sm:$0xff] %v585
        %602 = vst [vmem:[#allocation2 + $0x28] sm:$0xff] %v586
        %603 = vst [vmem:[#allocation2 + $0x30] sm:$0xff] %v587
        %604 = vst [vmem:[#allocation2 + $0x38] sm:$0xff] %v588
        %v605 = vld [vmem:[%s5] sm:$0xf]
        %v607 = vlaneseq
        %v608 = vshrl.u32 %v607, 7
        %v609 = vsub.s32 0, %v608
        %v610 = vrot.slane %v605, %v609
        %v611 = vlaneseq
        %v612 = vshrl.u32 %v611, 7
        %v613 = vsub.s32 1, %v612
        %v614 = vrot.slane %v605, %v613
        %v615 = vlaneseq
        %v616 = vshrl.u32 %v615, 7
        %v617 = vsub.s32 2, %v616
        %v618 = vrot.slane %v605, %v617
        %v619 = vlaneseq
        %v620 = vshrl.u32 %v619, 7
        %v621 = vsub.s32 3, %v620
        %v622 = vrot.slane %v605, %v621
        %v627 = vld [vmem:[#allocation4] sm:$0xff]
        %v628 = vld [vmem:[#allocation5] sm:$0xff]
        %v629 = vld [vmem:[#allocation2] sm:$0xff]
        %v630 = vld [vmem:[#allocation2 + $0x8] sm:$0xff]
        %v631 = vunpack.c.l.bf16 %v629
        %v632 = vunpack.c.h.bf16 %v629
        %v633 = vunpack.c.l.bf16 %v630
        %v634 = vunpack.c.h.bf16 %v630
        %v635 = vld [vmem:[#allocation3] sm:$0xf]
        %v636 = vld [vmem:[#allocation6] sm:$0xff]
        %v637 = vld [vmem:[#allocation6 + $0x8] sm:$0xff]
        %v638 = vld [vmem:[#allocation6 + $0x10] sm:$0xff]
        %v639 = vld [vmem:[#allocation6 + $0x18] sm:$0xff]
        %v640 = vld [vmem:[#allocation6 + $0x20] sm:$0xff]
        %v641 = vld [vmem:[#allocation6 + $0x28] sm:$0xff]
        %v642 = vld [vmem:[#allocation6 + $0x30] sm:$0xff]
        %v643 = vld [vmem:[#allocation6 + $0x38] sm:$0xff]
        %v644 = vld [vmem:[#allocation6 + $0x40] sm:$0xff]
        %v645 = vld [vmem:[#allocation6 + $0x48] sm:$0xff]
        %v646 = vld [vmem:[#allocation6 + $0x50] sm:$0xff]
        %v647 = vld [vmem:[#allocation6 + $0x58] sm:$0xff]
        %v648 = vld [vmem:[#allocation6 + $0x60] sm:$0xff]
        %v649 = vld [vmem:[#allocation6 + $0x68] sm:$0xff]
        %v650 = vld [vmem:[#allocation6 + $0x70] sm:$0xff]
        %v651 = vld [vmem:[#allocation6 + $0x78] sm:$0xff]
        %v652 = vld [vmem:[#allocation6 + $0x80] sm:$0xff]
        %v653 = vld [vmem:[#allocation6 + $0x88] sm:$0xff]
        %v654 = vld [vmem:[#allocation6 + $0x90] sm:$0xff]
        %v655 = vld [vmem:[#allocation6 + $0x98] sm:$0xff]
        %v656 = vld [vmem:[#allocation6 + $0xa0] sm:$0xff]
        %v657 = vld [vmem:[#allocation6 + $0xa8] sm:$0xff]
        %v658 = vld [vmem:[#allocation6 + $0xb0] sm:$0xff]
        %v659 = vld [vmem:[#allocation6 + $0xb8] sm:$0xff]
        %v660 = vld [vmem:[#allocation6 + $0xc0] sm:$0xff]
        %v661 = vld [vmem:[#allocation6 + $0xc8] sm:$0xff]
        %v662 = vld [vmem:[#allocation6 + $0xd0] sm:$0xff]
        %v663 = vld [vmem:[#allocation6 + $0xd8] sm:$0xff]
        %v664 = vld [vmem:[#allocation6 + $0xe0] sm:$0xff]
        %v665 = vld [vmem:[#allocation6 + $0xe8] sm:$0xff]
        %v666 = vld [vmem:[#allocation6 + $0xf0] sm:$0xff]
        %v667 = vld [vmem:[#allocation6 + $0xf8] sm:$0xff]
        %v700 = vunpack.c.l.b16 %v636
        %v701 = vunpack.c.h.b16 %v636
        %v702 = vunpack.c.l.b16 %v637
        %v703 = vunpack.c.h.b16 %v637
        %v704 = vunpack.c.l.b16 %v638
        %v705 = vunpack.c.h.b16 %v638
        %v706 = vunpack.c.l.b16 %v639
        %v707 = vunpack.c.h.b16 %v639
        %v708 = vunpack.c.l.b16 %v640
        %v709 = vunpack.c.h.b16 %v640
        %v710 = vunpack.c.l.b16 %v641
        %v711 = vunpack.c.h.b16 %v641
        %v712 = vunpack.c.l.b16 %v642
        %v713 = vunpack.c.h.b16 %v642
        %v714 = vunpack.c.l.b16 %v643
        %v715 = vunpack.c.h.b16 %v643
        %v716 = vunpack.c.l.b16 %v644
        %v717 = vunpack.c.h.b16 %v644
        %v718 = vunpack.c.l.b16 %v645
        %v719 = vunpack.c.h.b16 %v645
        %v720 = vunpack.c.l.b16 %v646
        %v721 = vunpack.c.h.b16 %v646
        %v722 = vunpack.c.l.b16 %v647
        %v723 = vunpack.c.h.b16 %v647
        %v724 = vunpack.c.l.b16 %v648
        %v725 = vunpack.c.h.b16 %v648
        %v726 = vunpack.c.l.b16 %v649
        %v727 = vunpack.c.h.b16 %v649
        %v728 = vunpack.c.l.b16 %v650
        %v729 = vunpack.c.h.b16 %v650
        %v730 = vunpack.c.l.b16 %v651
        %v731 = vunpack.c.h.b16 %v651
        %v732 = vunpack.c.l.b16 %v652
        %v733 = vunpack.c.h.b16 %v652
        %v734 = vunpack.c.l.b16 %v653
        %v735 = vunpack.c.h.b16 %v653
        %v736 = vunpack.c.l.b16 %v654
        %v737 = vunpack.c.h.b16 %v654
        %v738 = vunpack.c.l.b16 %v655
        %v739 = vunpack.c.h.b16 %v655
        %v740 = vunpack.c.l.b16 %v656
        %v741 = vunpack.c.h.b16 %v656
        %v742 = vunpack.c.l.b16 %v657
        %v743 = vunpack.c.h.b16 %v657
        %v744 = vunpack.c.l.b16 %v658
        %v745 = vunpack.c.h.b16 %v658
        %v746 = vunpack.c.l.b16 %v659
        %v747 = vunpack.c.h.b16 %v659
        %v748 = vunpack.c.l.b16 %v660
        %v749 = vunpack.c.h.b16 %v660
        %v750 = vunpack.c.l.b16 %v661
        %v751 = vunpack.c.h.b16 %v661
        %v752 = vunpack.c.l.b16 %v662
        %v753 = vunpack.c.h.b16 %v662
        %v754 = vunpack.c.l.b16 %v663
        %v755 = vunpack.c.h.b16 %v663
        %v756 = vunpack.c.l.b16 %v664
        %v757 = vunpack.c.h.b16 %v664
        %v758 = vunpack.c.l.b16 %v665
        %v759 = vunpack.c.h.b16 %v665
        %v760 = vunpack.c.l.b16 %v666
        %v761 = vunpack.c.h.b16 %v666
        %v762 = vunpack.c.l.b16 %v667
        %v763 = vunpack.c.h.b16 %v667
        %v764 = vpack.c.b16 %v704, %v700
        %v765 = vpack.c.b16 %v705, %v701
        %v766 = vpack.c.b16 %v706, %v702
        %v767 = vpack.c.b16 %v707, %v703
        %v768 = vpack.c.b16 %v712, %v708
        %v769 = vpack.c.b16 %v713, %v709
        %v770 = vpack.c.b16 %v714, %v710
        %v771 = vpack.c.b16 %v715, %v711
        %v772 = vpack.c.b16 %v720, %v716
        %v773 = vpack.c.b16 %v721, %v717
        %v774 = vpack.c.b16 %v722, %v718
        %v775 = vpack.c.b16 %v723, %v719
        %v776 = vpack.c.b16 %v728, %v724
        %v777 = vpack.c.b16 %v729, %v725
        %v778 = vpack.c.b16 %v730, %v726
        %v779 = vpack.c.b16 %v731, %v727
        %v780 = vpack.c.b16 %v736, %v732
        %v781 = vpack.c.b16 %v737, %v733
        %v782 = vpack.c.b16 %v738, %v734
        %v783 = vpack.c.b16 %v739, %v735
        %v784 = vpack.c.b16 %v744, %v740
        %v785 = vpack.c.b16 %v745, %v741
        %v786 = vpack.c.b16 %v746, %v742
        %v787 = vpack.c.b16 %v747, %v743
        %v788 = vpack.c.b16 %v752, %v748
        %v789 = vpack.c.b16 %v753, %v749
        %v790 = vpack.c.b16 %v754, %v750
        %v791 = vpack.c.b16 %v755, %v751
        %v792 = vpack.c.b16 %v760, %v756
        %v793 = vpack.c.b16 %v761, %v757
        %v794 = vpack.c.b16 %v762, %v758
        %v795 = vpack.c.b16 %v763, %v759
        %828 = vmatprep.subr.bf16.mxu0 %v765
        %829 = vmatpush1.bf16.msra.mxu0 %v764
        %830 = vmatprep.subr.bf16.mxu0 %v769
        %831 = vmatpush1.bf16.msra.mxu0 %v768
        %832 = vmatprep.subr.bf16.mxu0 %v773
        %833 = vmatpush1.bf16.msra.mxu0 %v772
        %834 = vmatprep.subr.bf16.mxu0 %v777
        %835 = vmatpush1.bf16.msra.mxu0 %v776
        %836 = vmatprep.subr.bf16.mxu0 %v781
        %837 = vmatpush1.bf16.msra.mxu0 %v780
        %838 = vmatprep.subr.bf16.mxu0 %v785
        %839 = vmatpush1.bf16.msra.mxu0 %v784
        %840 = vmatprep.subr.bf16.mxu0 %v789
        %841 = vmatpush1.bf16.msra.mxu0 %v788
        %842 = vmatprep.subr.bf16.mxu0 %v793
        %843 = vmatpush1.bf16.msra.mxu0 %v792
        %844 = vmatprep.subr.bf16.mxu0 0
        %845 = vmatpush1.bf16.msra.mxu0 0
        %846 = vmatprep.subr.bf16.mxu0 0
        %847 = vmatpush1.bf16.msra.mxu0 0
        %848 = vmatprep.subr.bf16.mxu0 0
        %849 = vmatpush1.bf16.msra.mxu0 0
        %850 = vmatprep.subr.bf16.mxu0 0
        %851 = vmatpush1.bf16.msra.mxu0 0
        %852 = vmatprep.subr.bf16.mxu0 0
        %853 = vmatpush1.bf16.msra.mxu0 0
        %854 = vmatprep.subr.bf16.mxu0 0
        %855 = vmatpush1.bf16.msra.mxu0 0
        %856 = vmatprep.subr.bf16.mxu0 0
        %857 = vmatpush1.bf16.msra.mxu0 0
        %858 = vmatprep.subr.bf16.mxu0 0
        %859 = vmatpush1.bf16.msra.mxu0 0
        %860 = vmatprep.mubr.bf16.mxu0 0
        %861 = vmatmul.mubr.bf16.gmra.mrb[0].mxu0 %v635
        %v862 = vpop.f32.mrb[0].mxu0
        %v863 = vadd.f32 0.0, %v862
        %v864 = vpop.f32.mrb[0].mxu0
        %v865 = vadd.f32 0.0, %v864
        %v866 = vpop.f32.mrb[0].mxu0
        %v867 = vpop.f32.mrb[0].mxu0
        %868 = vdwg.mxu0
        %869 = vmatprep.subr.bf16.mxu0 %v767
        %870 = vmatpush1.bf16.msra.mxu0 %v766
        %871 = vmatprep.subr.bf16.mxu0 %v771
        %872 = vmatpush1.bf16.msra.mxu0 %v770
        %873 = vmatprep.subr.bf16.mxu0 %v775
        %874 = vmatpush1.bf16.msra.mxu0 %v774
        %875 = vmatprep.subr.bf16.mxu0 %v779
        %876 = vmatpush1.bf16.msra.mxu0 %v778
        %877 = vmatprep.subr.bf16.mxu0 %v783
        %878 = vmatpush1.bf16.msra.mxu0 %v782
        %879 = vmatprep.subr.bf16.mxu0 %v787
        %880 = vmatpush1.bf16.msra.mxu0 %v786
        %881 = vmatprep.subr.bf16.mxu0 %v791
        %882 = vmatpush1.bf16.msra.mxu0 %v790
        %883 = vmatprep.subr.bf16.mxu0 %v795
        %884 = vmatpush1.bf16.msra.mxu0 %v794
        %885 = vmatprep.subr.bf16.mxu0 0
        %886 = vmatpush1.bf16.msra.mxu0 0
        %887 = vmatprep.subr.bf16.mxu0 0
        %888 = vmatpush1.bf16.msra.mxu0 0
        %889 = vmatprep.subr.bf16.mxu0 0
        %890 = vmatpush1.bf16.msra.mxu0 0
        %891 = vmatprep.subr.bf16.mxu0 0
        %892 = vmatpush1.bf16.msra.mxu0 0
        %893 = vmatprep.subr.bf16.mxu0 0
        %894 = vmatpush1.bf16.msra.mxu0 0
        %895 = vmatprep.subr.bf16.mxu0 0
        %896 = vmatpush1.bf16.msra.mxu0 0
        %897 = vmatprep.subr.bf16.mxu0 0
        %898 = vmatpush1.bf16.msra.mxu0 0
        %899 = vmatprep.subr.bf16.mxu0 0
        %900 = vmatpush1.bf16.msra.mxu0 0
        %901 = vmatprep.mubr.bf16.mxu0 0
        %902 = vmatmul.mubr.bf16.gmra.mrb[0].mxu0 %v635
        %v903 = vpop.f32.mrb[0].mxu0
        %v904 = vadd.f32 0.0, %v903
        %v905 = vpop.f32.mrb[0].mxu0
        %v906 = vadd.f32 0.0, %v905
        %v907 = vpop.f32.mrb[0].mxu0
        %v908 = vpop.f32.mrb[0].mxu0
        %909 = vdwg.mxu0
        %v910 = vadd.f32 %v631, %v863
        %v911 = vadd.f32 %v632, %v865
        %v912 = vadd.f32 %v633, %v904
        %v913 = vadd.f32 %v634, %v906
        %v914 = vxor.u32 %v910, 2147483648
        %v915 = vmul.f32 %v914, 1.442695
        %v916 = vpow.pop %v915
        %v917 = vadd.f32 %v916, 1.0
        %v918 = vrcp.pop %v917
        %v919 = vmul.f32 1.0, %v918
        %v920 = vxor.u32 %v911, 2147483648
        %v921 = vmul.f32 %v920, 1.442695
        %v922 = vpow.pop %v921
        %v923 = vadd.f32 %v922, 1.0
        %v924 = vrcp.pop %v923
        %v925 = vmul.f32 1.0, %v924
        %v926 = vtanh.pop %v912
        %v927 = vxor.u32 %v913, 2147483648
        %v928 = vmul.f32 %v927, 1.442695
        %v929 = vpow.pop %v928
        %v930 = vadd.f32 %v929, 1.0
        %v931 = vrcp.pop %v930
        %v932 = vmul.f32 1.0, %v931
        %v933 = vmul.f32 %v925, %v627
        %v934 = vmul.f32 %v919, %v926
        %v935 = vadd.f32 %v933, %v934
        %v936 = vtanh.pop %v935
        %v937 = vmul.f32 %v932, %v936
        %v938 = vpack.c.bf16 %v937, %v937
        %939 = vst [vmem:[#allocation3] sm:$0xf] %v938
        %v940 = vld [vmem:[#allocation3] sm:$0xff]
        %v941 = vld [vmem:[#allocation9] sm:$0xff]
        %v942 = vld [vmem:[#allocation9 + $0x8] sm:$0xff]
        %v943 = vld [vmem:[#allocation9 + $0x10] sm:$0xff]
        %v944 = vld [vmem:[#allocation9 + $0x18] sm:$0xff]
        %v945 = vld [vmem:[#allocation9 + $0x20] sm:$0xff]
        %v946 = vld [vmem:[#allocation9 + $0x28] sm:$0xff]
        %v947 = vld [vmem:[#allocation9 + $0x30] sm:$0xff]
        %v948 = vld [vmem:[#allocation9 + $0x38] sm:$0xff]
        %v949 = vld [vmem:[#allocation9 + $0x40] sm:$0xff]
        %v950 = vld [vmem:[#allocation9 + $0x48] sm:$0xff]
        %v951 = vld [vmem:[#allocation9 + $0x50] sm:$0xff]
        %v952 = vld [vmem:[#allocation9 + $0x58] sm:$0xff]
        %v953 = vld [vmem:[#allocation9 + $0x60] sm:$0xff]
        %v954 = vld [vmem:[#allocation9 + $0x68] sm:$0xff]
        %v955 = vld [vmem:[#allocation9 + $0x70] sm:$0xff]
        %v956 = vld [vmem:[#allocation9 + $0x78] sm:$0xff]
        %v957 = vld [vmem:[#allocation9 + $0x80] sm:$0xff]
        %v958 = vld [vmem:[#allocation9 + $0x88] sm:$0xff]
        %v959 = vld [vmem:[#allocation9 + $0x90] sm:$0xff]
        %v960 = vld [vmem:[#allocation9 + $0x98] sm:$0xff]
        %v961 = vld [vmem:[#allocation9 + $0xa0] sm:$0xff]
        %v962 = vld [vmem:[#allocation9 + $0xa8] sm:$0xff]
        %v963 = vld [vmem:[#allocation9 + $0xb0] sm:$0xff]
        %v964 = vld [vmem:[#allocation9 + $0xb8] sm:$0xff]
        %v965 = vld [vmem:[#allocation9 + $0xc0] sm:$0xff]
        %v966 = vld [vmem:[#allocation9 + $0xc8] sm:$0xff]
        %v967 = vld [vmem:[#allocation9 + $0xd0] sm:$0xff]
        %v968 = vld [vmem:[#allocation9 + $0xd8] sm:$0xff]
        %v969 = vld [vmem:[#allocation9 + $0xe0] sm:$0xff]
        %v970 = vld [vmem:[#allocation9 + $0xe8] sm:$0xff]
        %v971 = vld [vmem:[#allocation9 + $0xf0] sm:$0xff]
        %v972 = vld [vmem:[#allocation9 + $0xf8] sm:$0xff]
        %v973 = vld [vmem:[#allocation9 + $0x100] sm:$0xff]
        %v974 = vld [vmem:[#allocation9 + $0x108] sm:$0xff]
        %v975 = vld [vmem:[#allocation9 + $0x110] sm:$0xff]
        %v976 = vld [vmem:[#allocation9 + $0x118] sm:$0xff]
        %v977 = vld [vmem:[#allocation9 + $0x120] sm:$0xff]
        %v978 = vld [vmem:[#allocation9 + $0x128] sm:$0xff]
        %v979 = vld [vmem:[#allocation9 + $0x130] sm:$0xff]
        %v980 = vld [vmem:[#allocation9 + $0x138] sm:$0xff]
        %v981 = vld [vmem:[#allocation9 + $0x140] sm:$0xff]
        %v982 = vld [vmem:[#allocation9 + $0x148] sm:$0xff]
        %v983 = vld [vmem:[#allocation9 + $0x150] sm:$0xff]
        %v984 = vld [vmem:[#allocation9 + $0x158] sm:$0xff]
        %v985 = vld [vmem:[#allocation9 + $0x160] sm:$0xff]
        %v986 = vld [vmem:[#allocation9 + $0x168] sm:$0xff]
        %v987 = vld [vmem:[#allocation9 + $0x170] sm:$0xff]
        %v988 = vld [vmem:[#allocation9 + $0x178] sm:$0xff]
        %v989 = vld [vmem:[#allocation9 + $0x180] sm:$0xff]
        %v990 = vld [vmem:[#allocation9 + $0x188] sm:$0xff]
        %v991 = vld [vmem:[#allocation9 + $0x190] sm:$0xff]
        %v992 = vld [vmem:[#allocation9 + $0x198] sm:$0xff]
        %v993 = vld [vmem:[#allocation9 + $0x1a0] sm:$0xff]
        %v994 = vld [vmem:[#allocation9 + $0x1a8] sm:$0xff]
        %v995 = vld [vmem:[#allocation9 + $0x1b0] sm:$0xff]
        %v996 = vld [vmem:[#allocation9 + $0x1b8] sm:$0xff]
        %v997 = vld [vmem:[#allocation9 + $0x1c0] sm:$0xff]
        %v998 = vld [vmem:[#allocation9 + $0x1c8] sm:$0xff]
        %v999 = vld [vmem:[#allocation9 + $0x1d0] sm:$0xff]
        %v1000 = vld [vmem:[#allocation9 + $0x1d8] sm:$0xff]
        %v1001 = vld [vmem:[#allocation9 + $0x1e0] sm:$0xff]
        %v1002 = vld [vmem:[#allocation9 + $0x1e8] sm:$0xff]
        %v1003 = vld [vmem:[#allocation9 + $0x1f0] sm:$0xff]
        %v1004 = vld [vmem:[#allocation9 + $0x1f8] sm:$0xff]
        %v1006 = vunpack.c.l.b16 %v940
        %v1007 = vunpack.c.h.b16 %v940
        %v1008 = vpack.c.b16 %v1006, %v1006
        %v1009 = vpack.c.b16 %v1007, %v1007
        %v1076 = vunpack.c.l.b16 %v941
        %v1077 = vunpack.c.h.b16 %v941
        %v1078 = vunpack.c.l.b16 %v942
        %v1079 = vunpack.c.h.b16 %v942
        %v1080 = vunpack.c.l.b16 %v943
        %v1081 = vunpack.c.h.b16 %v943
        %v1082 = vunpack.c.l.b16 %v944
        %v1083 = vunpack.c.h.b16 %v944
        %v1084 = vunpack.c.l.b16 %v945
        %v1085 = vunpack.c.h.b16 %v945
        %v1086 = vunpack.c.l.b16 %v946
        %v1087 = vunpack.c.h.b16 %v946
        %v1088 = vunpack.c.l.b16 %v947
        %v1089 = vunpack.c.h.b16 %v947
        %v1090 = vunpack.c.l.b16 %v948
        %v1091 = vunpack.c.h.b16 %v948
        %v1092 = vunpack.c.l.b16 %v949
        %v1093 = vunpack.c.h.b16 %v949
        %v1094 = vunpack.c.l.b16 %v950
        %v1095 = vunpack.c.h.b16 %v950
        %v1096 = vunpack.c.l.b16 %v951
        %v1097 = vunpack.c.h.b16 %v951
        %v1098 = vunpack.c.l.b16 %v952
        %v1099 = vunpack.c.h.b16 %v952
        %v1100 = vunpack.c.l.b16 %v953
        %v1101 = vunpack.c.h.b16 %v953
        %v1102 = vunpack.c.l.b16 %v954
        %v1103 = vunpack.c.h.b16 %v954
        %v1104 = vunpack.c.l.b16 %v955
        %v1105 = vunpack.c.h.b16 %v955
        %v1106 = vunpack.c.l.b16 %v956
        %v1107 = vunpack.c.h.b16 %v956
        %v1108 = vunpack.c.l.b16 %v957
        %v1109 = vunpack.c.h.b16 %v957
        %v1110 = vunpack.c.l.b16 %v958
        %v1111 = vunpack.c.h.b16 %v958
        %v1112 = vunpack.c.l.b16 %v959
        %v1113 = vunpack.c.h.b16 %v959
        %v1114 = vunpack.c.l.b16 %v960
        %v1115 = vunpack.c.h.b16 %v960
        %v1116 = vunpack.c.l.b16 %v961
        %v1117 = vunpack.c.h.b16 %v961
        %v1118 = vunpack.c.l.b16 %v962
        %v1119 = vunpack.c.h.b16 %v962
        %v1120 = vunpack.c.l.b16 %v963
        %v1121 = vunpack.c.h.b16 %v963
        %v1122 = vunpack.c.l.b16 %v964
        %v1123 = vunpack.c.h.b16 %v964
        %v1124 = vunpack.c.l.b16 %v965
        %v1125 = vunpack.c.h.b16 %v965
        %v1126 = vunpack.c.l.b16 %v966
        %v1127 = vunpack.c.h.b16 %v966
        %v1128 = vunpack.c.l.b16 %v967
        %v1129 = vunpack.c.h.b16 %v967
        %v1130 = vunpack.c.l.b16 %v968
        %v1131 = vunpack.c.h.b16 %v968
        %v1132 = vunpack.c.l.b16 %v969
        %v1133 = vunpack.c.h.b16 %v969
        %v1134 = vunpack.c.l.b16 %v970
        %v1135 = vunpack.c.h.b16 %v970
        %v1136 = vunpack.c.l.b16 %v971
        %v1137 = vunpack.c.h.b16 %v971
        %v1138 = vunpack.c.l.b16 %v972
        %v1139 = vunpack.c.h.b16 %v972
        %v1140 = vunpack.c.l.b16 %v973
        %v1141 = vunpack.c.h.b16 %v973
        %v1142 = vunpack.c.l.b16 %v974
        %v1143 = vunpack.c.h.b16 %v974
        %v1144 = vunpack.c.l.b16 %v975
        %v1145 = vunpack.c.h.b16 %v975
        %v1146 = vunpack.c.l.b16 %v976
        %v1147 = vunpack.c.h.b16 %v976
        %v1148 = vunpack.c.l.b16 %v977
        %v1149 = vunpack.c.h.b16 %v977
        %v1150 = vunpack.c.l.b16 %v978
        %v1151 = vunpack.c.h.b16 %v978
        %v1152 = vunpack.c.l.b16 %v979
        %v1153 = vunpack.c.h.b16 %v979
        %v1154 = vunpack.c.l.b16 %v980
        %v1155 = vunpack.c.h.b16 %v980
        %v1156 = vunpack.c.l.b16 %v981
        %v1157 = vunpack.c.h.b16 %v981
        %v1158 = vunpack.c.l.b16 %v982
        %v1159 = vunpack.c.h.b16 %v982
        %v1160 = vunpack.c.l.b16 %v983
        %v1161 = vunpack.c.h.b16 %v983
        %v1162 = vunpack.c.l.b16 %v984
        %v1163 = vunpack.c.h.b16 %v984
        %v1164 = vunpack.c.l.b16 %v985
        %v1165 = vunpack.c.h.b16 %v985
        %v1166 = vunpack.c.l.b16 %v986
        %v1167 = vunpack.c.h.b16 %v986
        %v1168 = vunpack.c.l.b16 %v987
        %v1169 = vunpack.c.h.b16 %v987
        %v1170 = vunpack.c.l.b16 %v988
        %v1171 = vunpack.c.h.b16 %v988
        %v1172 = vunpack.c.l.b16 %v989
        %v1173 = vunpack.c.h.b16 %v989
        %v1174 = vunpack.c.l.b16 %v990
        %v1175 = vunpack.c.h.b16 %v990
        %v1176 = vunpack.c.l.b16 %v991
        %v1177 = vunpack.c.h.b16 %v991
        %v1178 = vunpack.c.l.b16 %v992
        %v1179 = vunpack.c.h.b16 %v992
        %v1180 = vunpack.c.l.b16 %v993
        %v1181 = vunpack.c.h.b16 %v993
        %v1182 = vunpack.c.l.b16 %v994
        %v1183 = vunpack.c.h.b16 %v994
        %v1184 = vunpack.c.l.b16 %v995
        %v1185 = vunpack.c.h.b16 %v995
        %v1186 = vunpack.c.l.b16 %v996
        %v1187 = vunpack.c.h.b16 %v996
        %v1188 = vunpack.c.l.b16 %v997
        %v1189 = vunpack.c.h.b16 %v997
        %v1190 = vunpack.c.l.b16 %v998
        %v1191 = vunpack.c.h.b16 %v998
        %v1192 = vunpack.c.l.b16 %v999
        %v1193 = vunpack.c.h.b16 %v999
        %v1194 = vunpack.c.l.b16 %v1000
        %v1195 = vunpack.c.h.b16 %v1000
        %v1196 = vunpack.c.l.b16 %v1001
        %v1197 = vunpack.c.h.b16 %v1001
        %v1198 = vunpack.c.l.b16 %v1002
        %v1199 = vunpack.c.h.b16 %v1002
        %v1200 = vunpack.c.l.b16 %v1003
        %v1201 = vunpack.c.h.b16 %v1003
        %v1202 = vunpack.c.l.b16 %v1004
        %v1203 = vunpack.c.h.b16 %v1004
        %v1204 = vpack.c.b16 %v1080, %v1076
        %v1205 = vpack.c.b16 %v1081, %v1077
        %v1206 = vpack.c.b16 %v1082, %v1078
        %v1207 = vpack.c.b16 %v1083, %v1079
        %v1208 = vpack.c.b16 %v1088, %v1084
        %v1209 = vpack.c.b16 %v1089, %v1085
        %v1210 = vpack.c.b16 %v1090, %v1086
        %v1211 = vpack.c.b16 %v1091, %v1087
        %v1212 = vpack.c.b16 %v1096, %v1092
        %v1213 = vpack.c.b16 %v1097, %v1093
        %v1214 = vpack.c.b16 %v1098, %v1094
        %v1215 = vpack.c.b16 %v1099, %v1095
        %v1216 = vpack.c.b16 %v1104, %v1100
        %v1217 = vpack.c.b16 %v1105, %v1101
        %v1218 = vpack.c.b16 %v1106, %v1102
        %v1219 = vpack.c.b16 %v1107, %v1103
        %v1220 = vpack.c.b16 %v1112, %v1108
        %v1221 = vpack.c.b16 %v1113, %v1109
        %v1222 = vpack.c.b16 %v1114, %v1110
        %v1223 = vpack.c.b16 %v1115, %v1111
        %v1224 = vpack.c.b16 %v1120, %v1116
        %v1225 = vpack.c.b16 %v1121, %v1117
        %v1226 = vpack.c.b16 %v1122, %v1118
        %v1227 = vpack.c.b16 %v1123, %v1119
        %v1228 = vpack.c.b16 %v1128, %v1124
        %v1229 = vpack.c.b16 %v1129, %v1125
        %v1230 = vpack.c.b16 %v1130, %v1126
        %v1231 = vpack.c.b16 %v1131, %v1127
        %v1232 = vpack.c.b16 %v1136, %v1132
        %v1233 = vpack.c.b16 %v1137, %v1133
        %v1234 = vpack.c.b16 %v1138, %v1134
        %v1235 = vpack.c.b16 %v1139, %v1135
        %v1236 = vpack.c.b16 %v1144, %v1140
        %v1237 = vpack.c.b16 %v1145, %v1141
        %v1238 = vpack.c.b16 %v1146, %v1142
        %v1239 = vpack.c.b16 %v1147, %v1143
        %v1240 = vpack.c.b16 %v1152, %v1148
        %v1241 = vpack.c.b16 %v1153, %v1149
        %v1242 = vpack.c.b16 %v1154, %v1150
        %v1243 = vpack.c.b16 %v1155, %v1151
        %v1244 = vpack.c.b16 %v1160, %v1156
        %v1245 = vpack.c.b16 %v1161, %v1157
        %v1246 = vpack.c.b16 %v1162, %v1158
        %v1247 = vpack.c.b16 %v1163, %v1159
        %v1248 = vpack.c.b16 %v1168, %v1164
        %v1249 = vpack.c.b16 %v1169, %v1165
        %v1250 = vpack.c.b16 %v1170, %v1166
        %v1251 = vpack.c.b16 %v1171, %v1167
        %v1252 = vpack.c.b16 %v1176, %v1172
        %v1253 = vpack.c.b16 %v1177, %v1173
        %v1254 = vpack.c.b16 %v1178, %v1174
        %v1255 = vpack.c.b16 %v1179, %v1175
        %v1256 = vpack.c.b16 %v1184, %v1180
        %v1257 = vpack.c.b16 %v1185, %v1181
        %v1258 = vpack.c.b16 %v1186, %v1182
        %v1259 = vpack.c.b16 %v1187, %v1183
        %v1260 = vpack.c.b16 %v1192, %v1188
        %v1261 = vpack.c.b16 %v1193, %v1189
        %v1262 = vpack.c.b16 %v1194, %v1190
        %v1263 = vpack.c.b16 %v1195, %v1191
        %v1264 = vpack.c.b16 %v1200, %v1196
        %v1265 = vpack.c.b16 %v1201, %v1197
        %v1266 = vpack.c.b16 %v1202, %v1198
        %v1267 = vpack.c.b16 %v1203, %v1199
        %1332 = vmatprep.subr.bf16.mxu0 %v1205
        %1333 = vmatpush1.bf16.msra.mxu0 %v1204
        %1334 = vmatprep.subr.bf16.mxu0 %v1209
        %1335 = vmatpush1.bf16.msra.mxu0 %v1208
        %1336 = vmatprep.subr.bf16.mxu0 %v1213
        %1337 = vmatpush1.bf16.msra.mxu0 %v1212
        %1338 = vmatprep.subr.bf16.mxu0 %v1217
        %1339 = vmatpush1.bf16.msra.mxu0 %v1216
        %1340 = vmatprep.subr.bf16.mxu0 %v1221
        %1341 = vmatpush1.bf16.msra.mxu0 %v1220
        %1342 = vmatprep.subr.bf16.mxu0 %v1225
        %1343 = vmatpush1.bf16.msra.mxu0 %v1224
        %1344 = vmatprep.subr.bf16.mxu0 %v1229
        %1345 = vmatpush1.bf16.msra.mxu0 %v1228
        %1346 = vmatprep.subr.bf16.mxu0 %v1233
        %1347 = vmatpush1.bf16.msra.mxu0 %v1232
        %1348 = vmatprep.subr.bf16.mxu0 %v1237
        %1349 = vmatpush1.bf16.msra.mxu0 %v1236
        %1350 = vmatprep.subr.bf16.mxu0 %v1241
        %1351 = vmatpush1.bf16.msra.mxu0 %v1240
        %1352 = vmatprep.subr.bf16.mxu0 %v1245
        %1353 = vmatpush1.bf16.msra.mxu0 %v1244
        %1354 = vmatprep.subr.bf16.mxu0 %v1249
        %1355 = vmatpush1.bf16.msra.mxu0 %v1248
        %1356 = vmatprep.subr.bf16.mxu0 %v1253
        %1357 = vmatpush1.bf16.msra.mxu0 %v1252
        %1358 = vmatprep.subr.bf16.mxu0 %v1257
        %1359 = vmatpush1.bf16.msra.mxu0 %v1256
        %1360 = vmatprep.subr.bf16.mxu0 %v1261
        %1361 = vmatpush1.bf16.msra.mxu0 %v1260
        %1362 = vmatprep.subr.bf16.mxu0 %v1265
        %1363 = vmatpush1.bf16.msra.mxu0 %v1264
        %1364 = vmatprep.mubr.bf16.mxu0 %v1009
        %1365 = vmatmul.mubr.bf16.gmra.mrb[0].mxu0 %v1008
        %v1366 = vpop.f32.mrb[0].mxu0
        %v1367 = vadd.f32 %v610, %v1366
        %v1368 = vpop.f32.mrb[0].mxu0
        %v1369 = vadd.f32 %v614, %v1368
        %v1370 = vpop.f32.mrb[0].mxu0
        %v1371 = vpop.f32.mrb[0].mxu0
        %1372 = vdwg.mxu0
        %1373 = vmatprep.subr.bf16.mxu0 %v1207
        %1374 = vmatpush1.bf16.msra.mxu0 %v1206
        %1375 = vmatprep.subr.bf16.mxu0 %v1211
        %1376 = vmatpush1.bf16.msra.mxu0 %v1210
        %1377 = vmatprep.subr.bf16.mxu0 %v1215
        %1378 = vmatpush1.bf16.msra.mxu0 %v1214
        %1379 = vmatprep.subr.bf16.mxu0 %v1219
        %1380 = vmatpush1.bf16.msra.mxu0 %v1218
        %1381 = vmatprep.subr.bf16.mxu0 %v1223
        %1382 = vmatpush1.bf16.msra.mxu0 %v1222
        %1383 = vmatprep.subr.bf16.mxu0 %v1227
        %1384 = vmatpush1.bf16.msra.mxu0 %v1226
        %1385 = vmatprep.subr.bf16.mxu0 %v1231
        %1386 = vmatpush1.bf16.msra.mxu0 %v1230
        %1387 = vmatprep.subr.bf16.mxu0 %v1235
        %1388 = vmatpush1.bf16.msra.mxu0 %v1234
        %1389 = vmatprep.subr.bf16.mxu0 %v1239
        %1390 = vmatpush1.bf16.msra.mxu0 %v1238
        %1391 = vmatprep.subr.bf16.mxu0 %v1243
        %1392 = vmatpush1.bf16.msra.mxu0 %v1242
        %1393 = vmatprep.subr.bf16.mxu0 %v1247
        %1394 = vmatpush1.bf16.msra.mxu0 %v1246
        %1395 = vmatprep.subr.bf16.mxu0 %v1251
        %1396 = vmatpush1.bf16.msra.mxu0 %v1250
        %1397 = vmatprep.subr.bf16.mxu0 %v1255
        %1398 = vmatpush1.bf16.msra.mxu0 %v1254
        %1399 = vmatprep.subr.bf16.mxu0 %v1259
        %1400 = vmatpush1.bf16.msra.mxu0 %v1258
        %1401 = vmatprep.subr.bf16.mxu0 %v1263
        %1402 = vmatpush1.bf16.msra.mxu0 %v1262
        %1403 = vmatprep.subr.bf16.mxu0 %v1267
        %1404 = vmatpush1.bf16.msra.mxu0 %v1266
        %1405 = vmatprep.mubr.bf16.mxu0 %v1009
        %1406 = vmatmul.mubr.bf16.gmra.mrb[0].mxu0 %v1008
        %v1407 = vpop.f32.mrb[0].mxu0
        %v1408 = vadd.f32 %v618, %v1407
        %v1409 = vpop.f32.mrb[0].mxu0
        %v1410 = vadd.f32 %v622, %v1409
        %v1411 = vpop.f32.mrb[0].mxu0
        %v1412 = vpop.f32.mrb[0].mxu0
        %1413 = vdwg.mxu0
        %v1414 = vxor.u32 %v1367, 2147483648
        %v1415 = vmul.f32 %v1414, 1.442695
        %v1416 = vpow.pop %v1415
        %v1417 = vadd.f32 %v1416, 1.0
        %v1418 = vrcp.pop %v1417
        %v1419 = vmul.f32 1.0, %v1418
        %v1420 = vxor.u32 %v1369, 2147483648
        %v1421 = vmul.f32 %v1420, 1.442695
        %v1422 = vpow.pop %v1421
        %v1423 = vadd.f32 %v1422, 1.0
        %v1424 = vrcp.pop %v1423
        %v1425 = vmul.f32 1.0, %v1424
        %v1426 = vtanh.pop %v1408
        %v1427 = vxor.u32 %v1410, 2147483648
        %v1428 = vmul.f32 %v1427, 1.442695
        %v1429 = vpow.pop %v1428
        %v1430 = vadd.f32 %v1429, 1.0
        %v1431 = vrcp.pop %v1430
        %v1432 = vmul.f32 1.0, %v1431
        %v1433 = vmul.f32 %v1425, %v628
        %v1434 = vmul.f32 %v1419, %v1426
        %v1435 = vadd.f32 %v1433, %v1434
        %v1436 = vtanh.pop %v1435
        %v1437 = vmul.f32 %v1432, %v1436
        %v1438 = vpack.c.bf16 %v1437, %v1437
        %1439 = vst [vmem:[#allocation3 + $0x4] sm:$0xf] %v1438
        %s1440 = scalar_lea.vmem [#allocation2], 16
        %v1441 = vld [vmem:[%s1440] sm:$0xff]
        %v1442 = vld [vmem:[%s1440 + $0x8] sm:$0xff]
        %v1443 = vunpack.c.l.bf16 %v1441
        %v1444 = vunpack.c.h.bf16 %v1441
        %v1445 = vunpack.c.l.bf16 %v1442
        %v1446 = vunpack.c.h.bf16 %v1442
        %v1447 = vld [vmem:[#allocation3] sm:$0xf]
        %v1448 = vld [vmem:[#allocation6] sm:$0xff]
        %v1449 = vld [vmem:[#allocation6 + $0x8] sm:$0xff]
        %v1450 = vld [vmem:[#allocation6 + $0x10] sm:$0xff]
        %v1451 = vld [vmem:[#allocation6 + $0x18] sm:$0xff]
        %v1452 = vld [vmem:[#allocation6 + $0x20] sm:$0xff]
        %v1453 = vld [vmem:[#allocation6 + $0x28] sm:$0xff]
        %v1454 = vld [vmem:[#allocation6 + $0x30] sm:$0xff]
        %v1455 = vld [vmem:[#allocation6 + $0x38] sm:$0xff]
        %v1456 = vld [vmem:[#allocation6 + $0x40] sm:$0xff]
        %v1457 = vld [vmem:[#allocation6 + $0x48] sm:$0xff]
        %v1458 = vld [vmem:[#allocation6 + $0x50] sm:$0xff]
        %v1459 = vld [vmem:[#allocation6 + $0x58] sm:$0xff]
        %v1460 = vld [vmem:[#allocation6 + $0x60] sm:$0xff]
        %v1461 = vld [vmem:[#allocation6 + $0x68] sm:$0xff]
        %v1462 = vld [vmem:[#allocation6 + $0x70] sm:$0xff]
        %v1463 = vld [vmem:[#allocation6 + $0x78] sm:$0xff]
        %v1464 = vld [vmem:[#allocation6 + $0x80] sm:$0xff]
        %v1465 = vld [vmem:[#allocation6 + $0x88] sm:$0xff]
        %v1466 = vld [vmem:[#allocation6 + $0x90] sm:$0xff]
        %v1467 = vld [vmem:[#allocation6 + $0x98] sm:$0xff]
        %v1468 = vld [vmem:[#allocation6 + $0xa0] sm:$0xff]
        %v1469 = vld [vmem:[#allocation6 + $0xa8] sm:$0xff]
        %v1470 = vld [vmem:[#allocation6 + $0xb0] sm:$0xff]
        %v1471 = vld [vmem:[#allocation6 + $0xb8] sm:$0xff]
        %v1472 = vld [vmem:[#allocation6 + $0xc0] sm:$0xff]
        %v1473 = vld [vmem:[#allocation6 + $0xc8] sm:$0xff]
        %v1474 = vld [vmem:[#allocation6 + $0xd0] sm:$0xff]
        %v1475 = vld [vmem:[#allocation6 + $0xd8] sm:$0xff]
        %v1476 = vld [vmem:[#allocation6 + $0xe0] sm:$0xff]
        %v1477 = vld [vmem:[#allocation6 + $0xe8] sm:$0xff]
        %v1478 = vld [vmem:[#allocation6 + $0xf0] sm:$0xff]
        %v1479 = vld [vmem:[#allocation6 + $0xf8] sm:$0xff]
        %v1512 = vunpack.c.l.b16 %v1448
        %v1513 = vunpack.c.h.b16 %v1448
        %v1514 = vunpack.c.l.b16 %v1449
        %v1515 = vunpack.c.h.b16 %v1449
        %v1516 = vunpack.c.l.b16 %v1450
        %v1517 = vunpack.c.h.b16 %v1450
        %v1518 = vunpack.c.l.b16 %v1451
        %v1519 = vunpack.c.h.b16 %v1451
        %v1520 = vunpack.c.l.b16 %v1452
        %v1521 = vunpack.c.h.b16 %v1452
        %v1522 = vunpack.c.l.b16 %v1453
        %v1523 = vunpack.c.h.b16 %v1453
        %v1524 = vunpack.c.l.b16 %v1454
        %v1525 = vunpack.c.h.b16 %v1454
        %v1526 = vunpack.c.l.b16 %v1455
        %v1527 = vunpack.c.h.b16 %v1455
        %v1528 = vunpack.c.l.b16 %v1456
        %v1529 = vunpack.c.h.b16 %v1456
        %v1530 = vunpack.c.l.b16 %v1457
        %v1531 = vunpack.c.h.b16 %v1457
        %v1532 = vunpack.c.l.b16 %v1458
        %v1533 = vunpack.c.h.b16 %v1458
        %v1534 = vunpack.c.l.b16 %v1459
        %v1535 = vunpack.c.h.b16 %v1459
        %v1536 = vunpack.c.l.b16 %v1460
        %v1537 = vunpack.c.h.b16 %v1460
        %v1538 = vunpack.c.l.b16 %v1461
        %v1539 = vunpack.c.h.b16 %v1461
        %v1540 = vunpack.c.l.b16 %v1462
        %v1541 = vunpack.c.h.b16 %v1462
        %v1542 = vunpack.c.l.b16 %v1463
        %v1543 = vunpack.c.h.b16 %v1463
        %v1544 = vunpack.c.l.b16 %v1464
        %v1545 = vunpack.c.h.b16 %v1464
        %v1546 = vunpack.c.l.b16 %v1465
        %v1547 = vunpack.c.h.b16 %v1465
        %v1548 = vunpack.c.l.b16 %v1466
        %v1549 = vunpack.c.h.b16 %v1466
        %v1550 = vunpack.c.l.b16 %v1467
        %v1551 = vunpack.c.h.b16 %v1467
        %v1552 = vunpack.c.l.b16 %v1468
        %v1553 = vunpack.c.h.b16 %v1468
        %v1554 = vunpack.c.l.b16 %v1469
        %v1555 = vunpack.c.h.b16 %v1469
        %v1556 = vunpack.c.l.b16 %v1470
        %v1557 = vunpack.c.h.b16 %v1470
        %v1558 = vunpack.c.l.b16 %v1471
        %v1559 = vunpack.c.h.b16 %v1471
        %v1560 = vunpack.c.l.b16 %v1472
        %v1561 = vunpack.c.h.b16 %v1472
        %v1562 = vunpack.c.l.b16 %v1473
        %v1563 = vunpack.c.h.b16 %v1473
        %v1564 = vunpack.c.l.b16 %v1474
        %v1565 = vunpack.c.h.b16 %v1474
        %v1566 = vunpack.c.l.b16 %v1475
        %v1567 = vunpack.c.h.b16 %v1475
        %v1568 = vunpack.c.l.b16 %v1476
        %v1569 = vunpack.c.h.b16 %v1476
        %v1570 = vunpack.c.l.b16 %v1477
        %v1571 = vunpack.c.h.b16 %v1477
        %v1572 = vunpack.c.l.b16 %v1478
        %v1573 = vunpack.c.h.b16 %v1478
        %v1574 = vunpack.c.l.b16 %v1479
        %v1575 = vunpack.c.h.b16 %v1479
        %v1576 = vpack.c.b16 %v1516, %v1512
        %v1577 = vpack.c.b16 %v1517, %v1513
        %v1578 = vpack.c.b16 %v1518, %v1514
        %v1579 = vpack.c.b16 %v1519, %v1515
        %v1580 = vpack.c.b16 %v1524, %v1520
        %v1581 = vpack.c.b16 %v1525, %v1521
        %v1582 = vpack.c.b16 %v1526, %v1522
        %v1583 = vpack.c.b16 %v1527, %v1523
        %v1584 = vpack.c.b16 %v1532, %v1528
        %v1585 = vpack.c.b16 %v1533, %v1529
        %v1586 = vpack.c.b16 %v1534, %v1530
        %v1587 = vpack.c.b16 %v1535, %v1531
        %v1588 = vpack.c.b16 %v1540, %v1536
        %v1589 = vpack.c.b16 %v1541, %v1537
        %v1590 = vpack.c.b16 %v1542, %v1538
        %v1591 = vpack.c.b16 %v1543, %v1539
        %v1592 = vpack.c.b16 %v1548, %v1544
        %v1593 = vpack.c.b16 %v1549, %v1545
        %v1594 = vpack.c.b16 %v1550, %v1546
        %v1595 = vpack.c.b16 %v1551, %v1547
        %v1596 = vpack.c.b16 %v1556, %v1552
        %v1597 = vpack.c.b16 %v1557, %v1553
        %v1598 = vpack.c.b16 %v1558, %v1554
        %v1599 = vpack.c.b16 %v1559, %v1555
        %v1600 = vpack.c.b16 %v1564, %v1560
        %v1601 = vpack.c.b16 %v1565, %v1561
        %v1602 = vpack.c.b16 %v1566, %v1562
        %v1603 = vpack.c.b16 %v1567, %v1563
        %v1604 = vpack.c.b16 %v1572, %v1568
        %v1605 = vpack.c.b16 %v1573, %v1569
        %v1606 = vpack.c.b16 %v1574, %v1570
        %v1607 = vpack.c.b16 %v1575, %v1571
        %1640 = vmatprep.subr.bf16.mxu0 %v1577
        %1641 = vmatpush1.bf16.msra.mxu0 %v1576
        %1642 = vmatprep.subr.bf16.mxu0 %v1581
        %1643 = vmatpush1.bf16.msra.mxu0 %v1580
        %1644 = vmatprep.subr.bf16.mxu0 %v1585
        %1645 = vmatpush1.bf16.msra.mxu0 %v1584
        %1646 = vmatprep.subr.bf16.mxu0 %v1589
        %1647 = vmatpush1.bf16.msra.mxu0 %v1588
        %1648 = vmatprep.subr.bf16.mxu0 %v1593
        %1649 = vmatpush1.bf16.msra.mxu0 %v1592
        %1650 = vmatprep.subr.bf16.mxu0 %v1597
        %1651 = vmatpush1.bf16.msra.mxu0 %v1596
        %1652 = vmatprep.subr.bf16.mxu0 %v1601
        %1653 = vmatpush1.bf16.msra.mxu0 %v1600
        %1654 = vmatprep.subr.bf16.mxu0 %v1605
        %1655 = vmatpush1.bf16.msra.mxu0 %v1604
        %1656 = vmatprep.subr.bf16.mxu0 0
        %1657 = vmatpush1.bf16.msra.mxu0 0
        %1658 = vmatprep.subr.bf16.mxu0 0
        %1659 = vmatpush1.bf16.msra.mxu0 0
        %1660 = vmatprep.subr.bf16.mxu0 0
        %1661 = vmatpush1.bf16.msra.mxu0 0
        %1662 = vmatprep.subr.bf16.mxu0 0
        %1663 = vmatpush1.bf16.msra.mxu0 0
        %1664 = vmatprep.subr.bf16.mxu0 0
        %1665 = vmatpush1.bf16.msra.mxu0 0
        %1666 = vmatprep.subr.bf16.mxu0 0
        %1667 = vmatpush1.bf16.msra.mxu0 0
        %1668 = vmatprep.subr.bf16.mxu0 0
        %1669 = vmatpush1.bf16.msra.mxu0 0
        %1670 = vmatprep.subr.bf16.mxu0 0
        %1671 = vmatpush1.bf16.msra.mxu0 0
        %1672 = vmatprep.mubr.bf16.mxu0 0
        %1673 = vmatmul.mubr.bf16.gmra.mrb[0].mxu0 %v1447
        %v1674 = vpop.f32.mrb[0].mxu0
        %v1675 = vadd.f32 0.0, %v1674
        %v1676 = vpop.f32.mrb[0].mxu0
        %v1677 = vadd.f32 0.0, %v1676
        %v1678 = vpop.f32.mrb[0].mxu0
        %v1679 = vpop.f32.mrb[0].mxu0
        %1680 = vdwg.mxu0
        %1681 = vmatprep.subr.bf16.mxu0 %v1579
        %1682 = vmatpush1.bf16.msra.mxu0 %v1578
        %1683 = vmatprep.subr.bf16.mxu0 %v1583
        %1684 = vmatpush1.bf16.msra.mxu0 %v1582
        %1685 = vmatprep.subr.bf16.mxu0 %v1587
        %1686 = vmatpush1.bf16.msra.mxu0 %v1586
        %1687 = vmatprep.subr.bf16.mxu0 %v1591
        %1688 = vmatpush1.bf16.msra.mxu0 %v1590
        %1689 = vmatprep.subr.bf16.mxu0 %v1595
        %1690 = vmatpush1.bf16.msra.mxu0 %v1594
        %1691 = vmatprep.subr.bf16.mxu0 %v1599
        %1692 = vmatpush1.bf16.msra.mxu0 %v1598
        %1693 = vmatprep.subr.bf16.mxu0 %v1603
        %1694 = vmatpush1.bf16.msra.mxu0 %v1602
        %1695 = vmatprep.subr.bf16.mxu0 %v1607
        %1696 = vmatpush1.bf16.msra.mxu0 %v1606
        %1697 = vmatprep.subr.bf16.mxu0 0
        %1698 = vmatpush1.bf16.msra.mxu0 0
        %1699 = vmatprep.subr.bf16.mxu0 0
        %1700 = vmatpush1.bf16.msra.mxu0 0
        %1701 = vmatprep.subr.bf16.mxu0 0
        %1702 = vmatpush1.bf16.msra.mxu0 0
        %1703 = vmatprep.subr.bf16.mxu0 0
        %1704 = vmatpush1.bf16.msra.mxu0 0
        %1705 = vmatprep.subr.bf16.mxu0 0
        %1706 = vmatpush1.bf16.msra.mxu0 0
        %1707 = vmatprep.subr.bf16.mxu0 0
        %1708 = vmatpush1.bf16.msra.mxu0 0
        %1709 = vmatprep.subr.bf16.mxu0 0
        %1710 = vmatpush1.bf16.msra.mxu0 0
        %1711 = vmatprep.subr.bf16.mxu0 0
        %1712 = vmatpush1.bf16.msra.mxu0 0
        %1713 = vmatprep.mubr.bf16.mxu0 0
        %1714 = vmatmul.mubr.bf16.gmra.mrb[0].mxu0 %v1447
        %v1715 = vpop.f32.mrb[0].mxu0
        %v1716 = vadd.f32 0.0, %v1715
        %v1717 = vpop.f32.mrb[0].mxu0
        %v1718 = vadd.f32 0.0, %v1717
        %v1719 = vpop.f32.mrb[0].mxu0
        %v1720 = vpop.f32.mrb[0].mxu0
        %1721 = vdwg.mxu0
        %v1722 = vadd.f32 %v1443, %v1675
        %v1723 = vadd.f32 %v1444, %v1677
        %v1724 = vadd.f32 %v1445, %v1716
        %v1725 = vadd.f32 %v1446, %v1718
        %v1726 = vxor.u32 %v1722, 2147483648
        %v1727 = vmul.f32 %v1726, 1.442695
        %v1728 = vpow.pop %v1727
        %v1729 = vadd.f32 %v1728, 1.0
        %v1730 = vrcp.pop %v1729
        %v1731 = vmul.f32 1.0, %v1730
        %v1732 = vxor.u32 %v1723, 2147483648
        %v1733 = vmul.f32 %v1732, 1.442695
        %v1734 = vpow.pop %v1733
        %v1735 = vadd.f32 %v1734, 1.0
        %v1736 = vrcp.pop %v1735
        %v1737 = vmul.f32 1.0, %v1736
        %v1738 = vtanh.pop %v1724
        %v1739 = vxor.u32 %v1725, 2147483648
        %v1740 = vmul.f32 %v1739, 1.442695
        %v1741 = vpow.pop %v1740
        %v1742 = vadd.f32 %v1741, 1.0
        %v1743 = vrcp.pop %v1742
        %v1744 = vmul.f32 1.0, %v1743
        %v1745 = vmul.f32 %v1737, %v935
        %v1746 = vmul.f32 %v1731, %v1738
        %v1747 = vadd.f32 %v1745, %v1746
        %v1748 = vtanh.pop %v1747
        %v1749 = vmul.f32 %v1744, %v1748
        %v1750 = vpack.c.bf16 %v1749, %v1749
        %1751 = vst [vmem:[#allocation3] sm:$0xf] %v1750
        %v1752 = vld [vmem:[#allocation3] sm:$0xff]
        %v1753 = vld [vmem:[#allocation9] sm:$0xff]
        %v1754 = vld [vmem:[#allocation9 + $0x8] sm:$0xff]
        %v1755 = vld [vmem:[#allocation9 + $0x10] sm:$0xff]
        %v1756 = vld [vmem:[#allocation9 + $0x18] sm:$0xff]
        %v1757 = vld [vmem:[#allocation9 + $0x20] sm:$0xff]
        %v1758 = vld [vmem:[#allocation9 + $0x28] sm:$0xff]
        %v1759 = vld [vmem:[#allocation9 + $0x30] sm:$0xff]
        %v1760 = vld [vmem:[#allocation9 + $0x38] sm:$0xff]
        %v1761 = vld [vmem:[#allocation9 + $0x40] sm:$0xff]
        %v1762 = vld [vmem:[#allocation9 + $0x48] sm:$0xff]
        %v1763 = vld [vmem:[#allocation9 + $0x50] sm:$0xff]
        %v1764 = vld [vmem:[#allocation9 + $0x58] sm:$0xff]
        %v1765 = vld [vmem:[#allocation9 + $0x60] sm:$0xff]
        %v1766 = vld [vmem:[#allocation9 + $0x68] sm:$0xff]
        %v1767 = vld [vmem:[#allocation9 + $0x70] sm:$0xff]
        %v1768 = vld [vmem:[#allocation9 + $0x78] sm:$0xff]
        %v1769 = vld [vmem:[#allocation9 + $0x80] sm:$0xff]
        %v1770 = vld [vmem:[#allocation9 + $0x88] sm:$0xff]
        %v1771 = vld [vmem:[#allocation9 + $0x90] sm:$0xff]
        %v1772 = vld [vmem:[#allocation9 + $0x98] sm:$0xff]
        %v1773 = vld [vmem:[#allocation9 + $0xa0] sm:$0xff]
        %v1774 = vld [vmem:[#allocation9 + $0xa8] sm:$0xff]
        %v1775 = vld [vmem:[#allocation9 + $0xb0] sm:$0xff]
        %v1776 = vld [vmem:[#allocation9 + $0xb8] sm:$0xff]
        %v1777 = vld [vmem:[#allocation9 + $0xc0] sm:$0xff]
        %v1778 = vld [vmem:[#allocation9 + $0xc8] sm:$0xff]
        %v1779 = vld [vmem:[#allocation9 + $0xd0] sm:$0xff]
        %v1780 = vld [vmem:[#allocation9 + $0xd8] sm:$0xff]
        %v1781 = vld [vmem:[#allocation9 + $0xe0] sm:$0xff]
        %v1782 = vld [vmem:[#allocation9 + $0xe8] sm:$0xff]
        %v1783 = vld [vmem:[#allocation9 + $0xf0] sm:$0xff]
        %v1784 = vld [vmem:[#allocation9 + $0xf8] sm:$0xff]
        %v1785 = vld [vmem:[#allocation9 + $0x100] sm:$0xff]
        %v1786 = vld [vmem:[#allocation9 + $0x108] sm:$0xff]
        %v1787 = vld [vmem:[#allocation9 + $0x110] sm:$0xff]
        %v1788 = vld [vmem:[#allocation9 + $0x118] sm:$0xff]
        %v1789 = vld [vmem:[#allocation9 + $0x120] sm:$0xff]
        %v1790 = vld [vmem:[#allocation9 + $0x128] sm:$0xff]
        %v1791 = vld [vmem:[#allocation9 + $0x130] sm:$0xff]
        %v1792 = vld [vmem:[#allocation9 + $0x138] sm:$0xff]
        %v1793 = vld [vmem:[#allocation9 + $0x140] sm:$0xff]
        %v1794 = vld [vmem:[#allocation9 + $0x148] sm:$0xff]
        %v1795 = vld [vmem:[#allocation9 + $0x150] sm:$0xff]
        %v1796 = vld [vmem:[#allocation9 + $0x158] sm:$0xff]
        %v1797 = vld [vmem:[#allocation9 + $0x160] sm:$0xff]
        %v1798 = vld [vmem:[#allocation9 + $0x168] sm:$0xff]
        %v1799 = vld [vmem:[#allocation9 + $0x170] sm:$0xff]
        %v1800 = vld [vmem:[#allocation9 + $0x178] sm:$0xff]
        %v1801 = vld [vmem:[#allocation9 + $0x180] sm:$0xff]
        %v1802 = vld [vmem:[#allocation9 + $0x188] sm:$0xff]
        %v1803 = vld [vmem:[#allocation9 + $0x190] sm:$0xff]
        %v1804 = vld [vmem:[#allocation9 + $0x198] sm:$0xff]
        %v1805 = vld [vmem:[#allocation9 + $0x1a0] sm:$0xff]
        %v1806 = vld [vmem:[#allocation9 + $0x1a8] sm:$0xff]
        %v1807 = vld [vmem:[#allocation9 + $0x1b0] sm:$0xff]
        %v1808 = vld [vmem:[#allocation9 + $0x1b8] sm:$0xff]
        %v1809 = vld [vmem:[#allocation9 + $0x1c0] sm:$0xff]
        %v1810 = vld [vmem:[#allocation9 + $0x1c8] sm:$0xff]
        %v1811 = vld [vmem:[#allocation9 + $0x1d0] sm:$0xff]
        %v1812 = vld [vmem:[#allocation9 + $0x1d8] sm:$0xff]
        %v1813 = vld [vmem:[#allocation9 + $0x1e0] sm:$0xff]
        %v1814 = vld [vmem:[#allocation9 + $0x1e8] sm:$0xff]
        %v1815 = vld [vmem:[#allocation9 + $0x1f0] sm:$0xff]
        %v1816 = vld [vmem:[#allocation9 + $0x1f8] sm:$0xff]
        %v1818 = vunpack.c.l.b16 %v1752
        %v1819 = vunpack.c.h.b16 %v1752
        %v1820 = vpack.c.b16 %v1818, %v1818
        %v1821 = vpack.c.b16 %v1819, %v1819
        %v1888 = vunpack.c.l.b16 %v1753
        %v1889 = vunpack.c.h.b16 %v1753
        %v1890 = vunpack.c.l.b16 %v1754
        %v1891 = vunpack.c.h.b16 %v1754
        %v1892 = vunpack.c.l.b16 %v1755
        %v1893 = vunpack.c.h.b16 %v1755
        %v1894 = vunpack.c.l.b16 %v1756
        %v1895 = vunpack.c.h.b16 %v1756
        %v1896 = vunpack.c.l.b16 %v1757
        %v1897 = vunpack.c.h.b16 %v1757
        %v1898 = vunpack.c.l.b16 %v1758
        %v1899 = vunpack.c.h.b16 %v1758
        %v1900 = vunpack.c.l.b16 %v1759
        %v1901 = vunpack.c.h.b16 %v1759
        %v1902 = vunpack.c.l.b16 %v1760
        %v1903 = vunpack.c.h.b16 %v1760
        %v1904 = vunpack.c.l.b16 %v1761
        %v1905 = vunpack.c.h.b16 %v1761
        %v1906 = vunpack.c.l.b16 %v1762
        %v1907 = vunpack.c.h.b16 %v1762
        %v1908 = vunpack.c.l.b16 %v1763
        %v1909 = vunpack.c.h.b16 %v1763
        %v1910 = vunpack.c.l.b16 %v1764
        %v1911 = vunpack.c.h.b16 %v1764
        %v1912 = vunpack.c.l.b16 %v1765
        %v1913 = vunpack.c.h.b16 %v1765
        %v1914 = vunpack.c.l.b16 %v1766
        %v1915 = vunpack.c.h.b16 %v1766
        %v1916 = vunpack.c.l.b16 %v1767
        %v1917 = vunpack.c.h.b16 %v1767
        %v1918 = vunpack.c.l.b16 %v1768
        %v1919 = vunpack.c.h.b16 %v1768
        %v1920 = vunpack.c.l.b16 %v1769
        %v1921 = vunpack.c.h.b16 %v1769
        %v1922 = vunpack.c.l.b16 %v1770
        %v1923 = vunpack.c.h.b16 %v1770
        %v1924 = vunpack.c.l.b16 %v1771
        %v1925 = vunpack.c.h.b16 %v1771
        %v1926 = vunpack.c.l.b16 %v1772
        %v1927 = vunpack.c.h.b16 %v1772
        %v1928 = vunpack.c.l.b16 %v1773
        %v1929 = vunpack.c.h.b16 %v1773
        %v1930 = vunpack.c.l.b16 %v1774
        %v1931 = vunpack.c.h.b16 %v1774
        %v1932 = vunpack.c.l.b16 %v1775
        %v1933 = vunpack.c.h.b16 %v1775
        %v1934 = vunpack.c.l.b16 %v1776
        %v1935 = vunpack.c.h.b16 %v1776
        %v1936 = vunpack.c.l.b16 %v1777
        %v1937 = vunpack.c.h.b16 %v1777
        %v1938 = vunpack.c.l.b16 %v1778
        %v1939 = vunpack.c.h.b16 %v1778
        %v1940 = vunpack.c.l.b16 %v1779
        %v1941 = vunpack.c.h.b16 %v1779
        %v1942 = vunpack.c.l.b16 %v1780
        %v1943 = vunpack.c.h.b16 %v1780
        %v1944 = vunpack.c.l.b16 %v1781
        %v1945 = vunpack.c.h.b16 %v1781
        %v1946 = vunpack.c.l.b16 %v1782
        %v1947 = vunpack.c.h.b16 %v1782
        %v1948 = vunpack.c.l.b16 %v1783
        %v1949 = vunpack.c.h.b16 %v1783
        %v1950 = vunpack.c.l.b16 %v1784
        %v1951 = vunpack.c.h.b16 %v1784
        %v1952 = vunpack.c.l.b16 %v1785
        %v1953 = vunpack.c.h.b16 %v1785
        %v1954 = vunpack.c.l.b16 %v1786
        %v1955 = vunpack.c.h.b16 %v1786
        %v1956 = vunpack.c.l.b16 %v1787
        %v1957 = vunpack.c.h.b16 %v1787
        %v1958 = vunpack.c.l.b16 %v1788
        %v1959 = vunpack.c.h.b16 %v1788
        %v1960 = vunpack.c.l.b16 %v1789
        %v1961 = vunpack.c.h.b16 %v1789
        %v1962 = vunpack.c.l.b16 %v1790
        %v1963 = vunpack.c.h.b16 %v1790
        %v1964 = vunpack.c.l.b16 %v1791
        %v1965 = vunpack.c.h.b16 %v1791
        %v1966 = vunpack.c.l.b16 %v1792
        %v1967 = vunpack.c.h.b16 %v1792
        %v1968 = vunpack.c.l.b16 %v1793
        %v1969 = vunpack.c.h.b16 %v1793
        %v1970 = vunpack.c.l.b16 %v1794
        %v1971 = vunpack.c.h.b16 %v1794
        %v1972 = vunpack.c.l.b16 %v1795
        %v1973 = vunpack.c.h.b16 %v1795
        %v1974 = vunpack.c.l.b16 %v1796
        %v1975 = vunpack.c.h.b16 %v1796
        %v1976 = vunpack.c.l.b16 %v1797
        %v1977 = vunpack.c.h.b16 %v1797
        %v1978 = vunpack.c.l.b16 %v1798
        %v1979 = vunpack.c.h.b16 %v1798
        %v1980 = vunpack.c.l.b16 %v1799
        %v1981 = vunpack.c.h.b16 %v1799
        %v1982 = vunpack.c.l.b16 %v1800
        %v1983 = vunpack.c.h.b16 %v1800
        %v1984 = vunpack.c.l.b16 %v1801
        %v1985 = vunpack.c.h.b16 %v1801
        %v1986 = vunpack.c.l.b16 %v1802
        %v1987 = vunpack.c.h.b16 %v1802
        %v1988 = vunpack.c.l.b16 %v1803
        %v1989 = vunpack.c.h.b16 %v1803
        %v1990 = vunpack.c.l.b16 %v1804
        %v1991 = vunpack.c.h.b16 %v1804
        %v1992 = vunpack.c.l.b16 %v1805
        %v1993 = vunpack.c.h.b16 %v1805
        %v1994 = vunpack.c.l.b16 %v1806
        %v1995 = vunpack.c.h.b16 %v1806
        %v1996 = vunpack.c.l.b16 %v1807
        %v1997 = vunpack.c.h.b16 %v1807
        %v1998 = vunpack.c.l.b16 %v1808
        %v1999 = vunpack.c.h.b16 %v1808
        %v2000 = vunpack.c.l.b16 %v1809
        %v2001 = vunpack.c.h.b16 %v1809
        %v2002 = vunpack.c.l.b16 %v1810
        %v2003 = vunpack.c.h.b16 %v1810
        %v2004 = vunpack.c.l.b16 %v1811
        %v2005 = vunpack.c.h.b16 %v1811
        %v2006 = vunpack.c.l.b16 %v1812
        %v2007 = vunpack.c.h.b16 %v1812
        %v2008 = vunpack.c.l.b16 %v1813
        %v2009 = vunpack.c.h.b16 %v1813
        %v2010 = vunpack.c.l.b16 %v1814
        %v2011 = vunpack.c.h.b16 %v1814
        %v2012 = vunpack.c.l.b16 %v1815
        %v2013 = vunpack.c.h.b16 %v1815
        %v2014 = vunpack.c.l.b16 %v1816
        %v2015 = vunpack.c.h.b16 %v1816
        %v2016 = vpack.c.b16 %v1892, %v1888
        %v2017 = vpack.c.b16 %v1893, %v1889
        %v2018 = vpack.c.b16 %v1894, %v1890
        %v2019 = vpack.c.b16 %v1895, %v1891
        %v2020 = vpack.c.b16 %v1900, %v1896
        %v2021 = vpack.c.b16 %v1901, %v1897
        %v2022 = vpack.c.b16 %v1902, %v1898
        %v2023 = vpack.c.b16 %v1903, %v1899
        %v2024 = vpack.c.b16 %v1908, %v1904
        %v2025 = vpack.c.b16 %v1909, %v1905
        %v2026 = vpack.c.b16 %v1910, %v1906
        %v2027 = vpack.c.b16 %v1911, %v1907
        %v2028 = vpack.c.b16 %v1916, %v1912
        %v2029 = vpack.c.b16 %v1917, %v1913
        %v2030 = vpack.c.b16 %v1918, %v1914
        %v2031 = vpack.c.b16 %v1919, %v1915
        %v2032 = vpack.c.b16 %v1924, %v1920
        %v2033 = vpack.c.b16 %v1925, %v1921
        %v2034 = vpack.c.b16 %v1926, %v1922
        %v2035 = vpack.c.b16 %v1927, %v1923
        %v2036 = vpack.c.b16 %v1932, %v1928
        %v2037 = vpack.c.b16 %v1933, %v1929
        %v2038 = vpack.c.b16 %v1934, %v1930
        %v2039 = vpack.c.b16 %v1935, %v1931
        %v2040 = vpack.c.b16 %v1940, %v1936
        %v2041 = vpack.c.b16 %v1941, %v1937
        %v2042 = vpack.c.b16 %v1942, %v1938
        %v2043 = vpack.c.b16 %v1943, %v1939
        %v2044 = vpack.c.b16 %v1948, %v1944
        %v2045 = vpack.c.b16 %v1949, %v1945
        %v2046 = vpack.c.b16 %v1950, %v1946
        %v2047 = vpack.c.b16 %v1951, %v1947
        %v2048 = vpack.c.b16 %v1956, %v1952
        %v2049 = vpack.c.b16 %v1957, %v1953
        %v2050 = vpack.c.b16 %v1958, %v1954
        %v2051 = vpack.c.b16 %v1959, %v1955
        %v2052 = vpack.c.b16 %v1964, %v1960
        %v2053 = vpack.c.b16 %v1965, %v1961
        %v2054 = vpack.c.b16 %v1966, %v1962
        %v2055 = vpack.c.b16 %v1967, %v1963
        %v2056 = vpack.c.b16 %v1972, %v1968
        %v2057 = vpack.c.b16 %v1973, %v1969
        %v2058 = vpack.c.b16 %v1974, %v1970
        %v2059 = vpack.c.b16 %v1975, %v1971
        %v2060 = vpack.c.b16 %v1980, %v1976
        %v2061 = vpack.c.b16 %v1981, %v1977
        %v2062 = vpack.c.b16 %v1982, %v1978
        %v2063 = vpack.c.b16 %v1983, %v1979
        %v2064 = vpack.c.b16 %v1988, %v1984
        %v2065 = vpack.c.b16 %v1989, %v1985
        %v2066 = vpack.c.b16 %v1990, %v1986
        %v2067 = vpack.c.b16 %v1991, %v1987
        %v2068 = vpack.c.b16 %v1996, %v1992
        %v2069 = vpack.c.b16 %v1997, %v1993
        %v2070 = vpack.c.b16 %v1998, %v1994
        %v2071 = vpack.c.b16 %v1999, %v1995
        %v2072 = vpack.c.b16 %v2004, %v2000
        %v2073 = vpack.c.b16 %v2005, %v2001
        %v2074 = vpack.c.b16 %v2006, %v2002
        %v2075 = vpack.c.b16 %v2007, %v2003
        %v2076 = vpack.c.b16 %v2012, %v2008
        %v2077 = vpack.c.b16 %v2013, %v2009
        %v2078 = vpack.c.b16 %v2014, %v2010
        %v2079 = vpack.c.b16 %v2015, %v2011
        %2144 = vmatprep.subr.bf16.mxu0 %v2017
        %2145 = vmatpush1.bf16.msra.mxu0 %v2016
        %2146 = vmatprep.subr.bf16.mxu0 %v2021
        %2147 = vmatpush1.bf16.msra.mxu0 %v2020
        %2148 = vmatprep.subr.bf16.mxu0 %v2025
        %2149 = vmatpush1.bf16.msra.mxu0 %v2024
        %2150 = vmatprep.subr.bf16.mxu0 %v2029
        %2151 = vmatpush1.bf16.msra.mxu0 %v2028
        %2152 = vmatprep.subr.bf16.mxu0 %v2033
        %2153 = vmatpush1.bf16.msra.mxu0 %v2032
        %2154 = vmatprep.subr.bf16.mxu0 %v2037
        %2155 = vmatpush1.bf16.msra.mxu0 %v2036
        %2156 = vmatprep.subr.bf16.mxu0 %v2041
        %2157 = vmatpush1.bf16.msra.mxu0 %v2040
        %2158 = vmatprep.subr.bf16.mxu0 %v2045
        %2159 = vmatpush1.bf16.msra.mxu0 %v2044
        %2160 = vmatprep.subr.bf16.mxu0 %v2049
        %2161 = vmatpush1.bf16.msra.mxu0 %v2048
        %2162 = vmatprep.subr.bf16.mxu0 %v2053
        %2163 = vmatpush1.bf16.msra.mxu0 %v2052
        %2164 = vmatprep.subr.bf16.mxu0 %v2057
        %2165 = vmatpush1.bf16.msra.mxu0 %v2056
        %2166 = vmatprep.subr.bf16.mxu0 %v2061
        %2167 = vmatpush1.bf16.msra.mxu0 %v2060
        %2168 = vmatprep.subr.bf16.mxu0 %v2065
        %2169 = vmatpush1.bf16.msra.mxu0 %v2064
        %2170 = vmatprep.subr.bf16.mxu0 %v2069
        %2171 = vmatpush1.bf16.msra.mxu0 %v2068
        %2172 = vmatprep.subr.bf16.mxu0 %v2073
        %2173 = vmatpush1.bf16.msra.mxu0 %v2072
        %2174 = vmatprep.subr.bf16.mxu0 %v2077
        %2175 = vmatpush1.bf16.msra.mxu0 %v2076
        %2176 = vmatprep.mubr.bf16.mxu0 %v1821
        %2177 = vmatmul.mubr.bf16.gmra.mrb[0].mxu0 %v1820
        %v2178 = vpop.f32.mrb[0].mxu0
        %v2179 = vadd.f32 %v610, %v2178
        %v2180 = vpop.f32.mrb[0].mxu0
        %v2181 = vadd.f32 %v614, %v2180
        %v2182 = vpop.f32.mrb[0].mxu0
        %v2183 = vpop.f32.mrb[0].mxu0
        %2184 = vdwg.mxu0
        %2185 = vmatprep.subr.bf16.mxu0 %v2019
        %2186 = vmatpush1.bf16.msra.mxu0 %v2018
        %2187 = vmatprep.subr.bf16.mxu0 %v2023
        %2188 = vmatpush1.bf16.msra.mxu0 %v2022
        %2189 = vmatprep.subr.bf16.mxu0 %v2027
        %2190 = vmatpush1.bf16.msra.mxu0 %v2026
        %2191 = vmatprep.subr.bf16.mxu0 %v2031
        %2192 = vmatpush1.bf16.msra.mxu0 %v2030
        %2193 = vmatprep.subr.bf16.mxu0 %v2035
        %2194 = vmatpush1.bf16.msra.mxu0 %v2034
        %2195 = vmatprep.subr.bf16.mxu0 %v2039
        %2196 = vmatpush1.bf16.msra.mxu0 %v2038
        %2197 = vmatprep.subr.bf16.mxu0 %v2043
        %2198 = vmatpush1.bf16.msra.mxu0 %v2042
        %2199 = vmatprep.subr.bf16.mxu0 %v2047
        %2200 = vmatpush1.bf16.msra.mxu0 %v2046
        %2201 = vmatprep.subr.bf16.mxu0 %v2051
        %2202 = vmatpush1.bf16.msra.mxu0 %v2050
        %2203 = vmatprep.subr.bf16.mxu0 %v2055
        %2204 = vmatpush1.bf16.msra.mxu0 %v2054
        %2205 = vmatprep.subr.bf16.mxu0 %v2059
        %2206 = vmatpush1.bf16.msra.mxu0 %v2058
        %2207 = vmatprep.subr.bf16.mxu0 %v2063
        %2208 = vmatpush1.bf16.msra.mxu0 %v2062
        %2209 = vmatprep.subr.bf16.mxu0 %v2067
        %2210 = vmatpush1.bf16.msra.mxu0 %v2066
        %2211 = vmatprep.subr.bf16.mxu0 %v2071
        %2212 = vmatpush1.bf16.msra.mxu0 %v2070
        %2213 = vmatprep.subr.bf16.mxu0 %v2075
        %2214 = vmatpush1.bf16.msra.mxu0 %v2074
        %2215 = vmatprep.subr.bf16.mxu0 %v2079
        %2216 = vmatpush1.bf16.msra.mxu0 %v2078
        %2217 = vmatprep.mubr.bf16.mxu0 %v1821
        %2218 = vmatmul.mubr.bf16.gmra.mrb[0].mxu0 %v1820
        %v2219 = vpop.f32.mrb[0].mxu0
        %v2220 = vadd.f32 %v618, %v2219
        %v2221 = vpop.f32.mrb[0].mxu0
        %v2222 = vadd.f32 %v622, %v2221
        %v2223 = vpop.f32.mrb[0].mxu0
        %v2224 = vpop.f32.mrb[0].mxu0
        %2225 = vdwg.mxu0
        %v2226 = vxor.u32 %v2179, 2147483648
        %v2227 = vmul.f32 %v2226, 1.442695
        %v2228 = vpow.pop %v2227
        %v2229 = vadd.f32 %v2228, 1.0
        %v2230 = vrcp.pop %v2229
        %v2231 = vmul.f32 1.0, %v2230
        %v2232 = vxor.u32 %v2181, 2147483648
        %v2233 = vmul.f32 %v2232, 1.442695
        %v2234 = vpow.pop %v2233
        %v2235 = vadd.f32 %v2234, 1.0
        %v2236 = vrcp.pop %v2235
        %v2237 = vmul.f32 1.0, %v2236
        %v2238 = vtanh.pop %v2220
        %v2239 = vxor.u32 %v2222, 2147483648
        %v2240 = vmul.f32 %v2239, 1.442695
        %v2241 = vpow.pop %v2240
        %v2242 = vadd.f32 %v2241, 1.0
        %v2243 = vrcp.pop %v2242
        %v2244 = vmul.f32 1.0, %v2243
        %v2245 = vmul.f32 %v2237, %v1435
        %v2246 = vmul.f32 %v2231, %v2238
        %v2247 = vadd.f32 %v2245, %v2246
        %v2248 = vtanh.pop %v2247
        %v2249 = vmul.f32 %v2244, %v2248
        %v2250 = vpack.c.bf16 %v2249, %v2249
        %2251 = vst [vmem:[#allocation3 + $0x4] sm:$0xf] %v2250
        %s2252 = scalar_lea.vmem [#allocation2], 32
        %v2253 = vld [vmem:[%s2252] sm:$0xff]
        %v2254 = vld [vmem:[%s2252 + $0x8] sm:$0xff]
        %v2255 = vunpack.c.l.bf16 %v2253
        %v2256 = vunpack.c.h.bf16 %v2253
        %v2257 = vunpack.c.l.bf16 %v2254
        %v2258 = vunpack.c.h.bf16 %v2254
        %v2259 = vld [vmem:[#allocation3] sm:$0xf]
        %v2260 = vld [vmem:[#allocation6] sm:$0xff]
        %v2261 = vld [vmem:[#allocation6 + $0x8] sm:$0xff]
        %v2262 = vld [vmem:[#allocation6 + $0x10] sm:$0xff]
        %v2263 = vld [vmem:[#allocation6 + $0x18] sm:$0xff]
        %v2264 = vld [vmem:[#allocation6 + $0x20] sm:$0xff]
        %v2265 = vld [vmem:[#allocation6 + $0x28] sm:$0xff]
        %v2266 = vld [vmem:[#allocation6 + $0x30] sm:$0xff]
        %v2267 = vld [vmem:[#allocation6 + $0x38] sm:$0xff]
        %v2268 = vld [vmem:[#allocation6 + $0x40] sm:$0xff]
        %v2269 = vld [vmem:[#allocation6 + $0x48] sm:$0xff]
        %v2270 = vld [vmem:[#allocation6 + $0x50] sm:$0xff]
        %v2271 = vld [vmem:[#allocation6 + $0x58] sm:$0xff]
        %v2272 = vld [vmem:[#allocation6 + $0x60] sm:$0xff]
        %v2273 = vld [vmem:[#allocation6 + $0x68] sm:$0xff]
        %v2274 = vld [vmem:[#allocation6 + $0x70] sm:$0xff]
        %v2275 = vld [vmem:[#allocation6 + $0x78] sm:$0xff]
        %v2276 = vld [vmem:[#allocation6 + $0x80] sm:$0xff]
        %v2277 = vld [vmem:[#allocation6 + $0x88] sm:$0xff]
        %v2278 = vld [vmem:[#allocation6 + $0x90] sm:$0xff]
        %v2279 = vld [vmem:[#allocation6 + $0x98] sm:$0xff]
        %v2280 = vld [vmem:[#allocation6 + $0xa0] sm:$0xff]
        %v2281 = vld [vmem:[#allocation6 + $0xa8] sm:$0xff]
        %v2282 = vld [vmem:[#allocation6 + $0xb0] sm:$0xff]
        %v2283 = vld [vmem:[#allocation6 + $0xb8] sm:$0xff]
        %v2284 = vld [vmem:[#allocation6 + $0xc0] sm:$0xff]
        %v2285 = vld [vmem:[#allocation6 + $0xc8] sm:$0xff]
        %v2286 = vld [vmem:[#allocation6 + $0xd0] sm:$0xff]
        %v2287 = vld [vmem:[#allocation6 + $0xd8] sm:$0xff]
        %v2288 = vld [vmem:[#allocation6 + $0xe0] sm:$0xff]
        %v2289 = vld [vmem:[#allocation6 + $0xe8] sm:$0xff]
        %v2290 = vld [vmem:[#allocation6 + $0xf0] sm:$0xff]
        %v2291 = vld [vmem:[#allocation6 + $0xf8] sm:$0xff]
        %v2324 = vunpack.c.l.b16 %v2260
        %v2325 = vunpack.c.h.b16 %v2260
        %v2326 = vunpack.c.l.b16 %v2261
        %v2327 = vunpack.c.h.b16 %v2261
        %v2328 = vunpack.c.l.b16 %v2262
        %v2329 = vunpack.c.h.b16 %v2262
        %v2330 = vunpack.c.l.b16 %v2263
        %v2331 = vunpack.c.h.b16 %v2263
        %v2332 = vunpack.c.l.b16 %v2264
        %v2333 = vunpack.c.h.b16 %v2264
        %v2334 = vunpack.c.l.b16 %v2265
        %v2335 = vunpack.c.h.b16 %v2265
        %v2336 = vunpack.c.l.b16 %v2266
        %v2337 = vunpack.c.h.b16 %v2266
        %v2338 = vunpack.c.l.b16 %v2267
        %v2339 = vunpack.c.h.b16 %v2267
        %v2340 = vunpack.c.l.b16 %v2268
        %v2341 = vunpack.c.h.b16 %v2268
        %v2342 = vunpack.c.l.b16 %v2269
        %v2343 = vunpack.c.h.b16 %v2269
        %v2344 = vunpack.c.l.b16 %v2270
        %v2345 = vunpack.c.h.b16 %v2270
        %v2346 = vunpack.c.l.b16 %v2271
        %v2347 = vunpack.c.h.b16 %v2271
        %v2348 = vunpack.c.l.b16 %v2272
        %v2349 = vunpack.c.h.b16 %v2272
        %v2350 = vunpack.c.l.b16 %v2273
        %v2351 = vunpack.c.h.b16 %v2273
        %v2352 = vunpack.c.l.b16 %v2274
        %v2353 = vunpack.c.h.b16 %v2274
        %v2354 = vunpack.c.l.b16 %v2275
        %v2355 = vunpack.c.h.b16 %v2275
        %v2356 = vunpack.c.l.b16 %v2276
        %v2357 = vunpack.c.h.b16 %v2276
        %v2358 = vunpack.c.l.b16 %v2277
        %v2359 = vunpack.c.h.b16 %v2277
        %v2360 = vunpack.c.l.b16 %v2278
        %v2361 = vunpack.c.h.b16 %v2278
        %v2362 = vunpack.c.l.b16 %v2279
        %v2363 = vunpack.c.h.b16 %v2279
        %v2364 = vunpack.c.l.b16 %v2280
        %v2365 = vunpack.c.h.b16 %v2280
        %v2366 = vunpack.c.l.b16 %v2281
        %v2367 = vunpack.c.h.b16 %v2281
        %v2368 = vunpack.c.l.b16 %v2282
        %v2369 = vunpack.c.h.b16 %v2282
        %v2370 = vunpack.c.l.b16 %v2283
        %v2371 = vunpack.c.h.b16 %v2283
        %v2372 = vunpack.c.l.b16 %v2284
        %v2373 = vunpack.c.h.b16 %v2284
        %v2374 = vunpack.c.l.b16 %v2285
        %v2375 = vunpack.c.h.b16 %v2285
        %v2376 = vunpack.c.l.b16 %v2286
        %v2377 = vunpack.c.h.b16 %v2286
        %v2378 = vunpack.c.l.b16 %v2287
        %v2379 = vunpack.c.h.b16 %v2287
        %v2380 = vunpack.c.l.b16 %v2288
        %v2381 = vunpack.c.h.b16 %v2288
        %v2382 = vunpack.c.l.b16 %v2289
        %v2383 = vunpack.c.h.b16 %v2289
        %v2384 = vunpack.c.l.b16 %v2290
        %v2385 = vunpack.c.h.b16 %v2290
        %v2386 = vunpack.c.l.b16 %v2291
        %v2387 = vunpack.c.h.b16 %v2291
        %v2388 = vpack.c.b16 %v2328, %v2324
        %v2389 = vpack.c.b16 %v2329, %v2325
        %v2390 = vpack.c.b16 %v2330, %v2326
        %v2391 = vpack.c.b16 %v2331, %v2327
        %v2392 = vpack.c.b16 %v2336, %v2332
        %v2393 = vpack.c.b16 %v2337, %v2333
        %v2394 = vpack.c.b16 %v2338, %v2334
        %v2395 = vpack.c.b16 %v2339, %v2335
        %v2396 = vpack.c.b16 %v2344, %v2340
        %v2397 = vpack.c.b16 %v2345, %v2341
        %v2398 = vpack.c.b16 %v2346, %v2342
        %v2399 = vpack.c.b16 %v2347, %v2343
        %v2400 = vpack.c.b16 %v2352, %v2348
        %v2401 = vpack.c.b16 %v2353, %v2349
        %v2402 = vpack.c.b16 %v2354, %v2350
        %v2403 = vpack.c.b16 %v2355, %v2351
        %v2404 = vpack.c.b16 %v2360, %v2356
        %v2405 = vpack.c.b16 %v2361, %v2357
        %v2406 = vpack.c.b16 %v2362, %v2358
        %v2407 = vpack.c.b16 %v2363, %v2359
        %v2408 = vpack.c.b16 %v2368, %v2364
        %v2409 = vpack.c.b16 %v2369, %v2365
        %v2410 = vpack.c.b16 %v2370, %v2366
        %v2411 = vpack.c.b16 %v2371, %v2367
        %v2412 = vpack.c.b16 %v2376, %v2372
        %v2413 = vpack.c.b16 %v2377, %v2373
        %v2414 = vpack.c.b16 %v2378, %v2374
        %v2415 = vpack.c.b16 %v2379, %v2375
        %v2416 = vpack.c.b16 %v2384, %v2380
        %v2417 = vpack.c.b16 %v2385, %v2381
        %v2418 = vpack.c.b16 %v2386, %v2382
        %v2419 = vpack.c.b16 %v2387, %v2383
        %2452 = vmatprep.subr.bf16.mxu0 %v2389
        %2453 = vmatpush1.bf16.msra.mxu0 %v2388
        %2454 = vmatprep.subr.bf16.mxu0 %v2393
        %2455 = vmatpush1.bf16.msra.mxu0 %v2392
        %2456 = vmatprep.subr.bf16.mxu0 %v2397
        %2457 = vmatpush1.bf16.msra.mxu0 %v2396
        %2458 = vmatprep.subr.bf16.mxu0 %v2401
        %2459 = vmatpush1.bf16.msra.mxu0 %v2400
        %2460 = vmatprep.subr.bf16.mxu0 %v2405
        %2461 = vmatpush1.bf16.msra.mxu0 %v2404
        %2462 = vmatprep.subr.bf16.mxu0 %v2409
        %2463 = vmatpush1.bf16.msra.mxu0 %v2408
        %2464 = vmatprep.subr.bf16.mxu0 %v2413
        %2465 = vmatpush1.bf16.msra.mxu0 %v2412
        %2466 = vmatprep.subr.bf16.mxu0 %v2417
        %2467 = vmatpush1.bf16.msra.mxu0 %v2416
        %2468 = vmatprep.subr.bf16.mxu0 0
        %2469 = vmatpush1.bf16.msra.mxu0 0
        %2470 = vmatprep.subr.bf16.mxu0 0
        %2471 = vmatpush1.bf16.msra.mxu0 0
        %2472 = vmatprep.subr.bf16.mxu0 0
        %2473 = vmatpush1.bf16.msra.mxu0 0
        %2474 = vmatprep.subr.bf16.mxu0 0
        %2475 = vmatpush1.bf16.msra.mxu0 0
        %2476 = vmatprep.subr.bf16.mxu0 0
        %2477 = vmatpush1.bf16.msra.mxu0 0
        %2478 = vmatprep.subr.bf16.mxu0 0
        %2479 = vmatpush1.bf16.msra.mxu0 0
        %2480 = vmatprep.subr.bf16.mxu0 0
        %2481 = vmatpush1.bf16.msra.mxu0 0
        %2482 = vmatprep.subr.bf16.mxu0 0
        %2483 = vmatpush1.bf16.msra.mxu0 0
        %2484 = vmatprep.mubr.bf16.mxu0 0
        %2485 = vmatmul.mubr.bf16.gmra.mrb[0].mxu0 %v2259
        %v2486 = vpop.f32.mrb[0].mxu0
        %v2487 = vadd.f32 0.0, %v2486
        %v2488 = vpop.f32.mrb[0].mxu0
        %v2489 = vadd.f32 0.0, %v2488
        %v2490 = vpop.f32.mrb[0].mxu0
        %v2491 = vpop.f32.mrb[0].mxu0
        %2492 = vdwg.mxu0
        %2493 = vmatprep.subr.bf16.mxu0 %v2391
        %2494 = vmatpush1.bf16.msra.mxu0 %v2390
        %2495 = vmatprep.subr.bf16.mxu0 %v2395
        %2496 = vmatpush1.bf16.msra.mxu0 %v2394
        %2497 = vmatprep.subr.bf16.mxu0 %v2399
        %2498 = vmatpush1.bf16.msra.mxu0 %v2398
        %2499 = vmatprep.subr.bf16.mxu0 %v2403
        %2500 = vmatpush1.bf16.msra.mxu0 %v2402
        %2501 = vmatprep.subr.bf16.mxu0 %v2407
        %2502 = vmatpush1.bf16.msra.mxu0 %v2406
        %2503 = vmatprep.subr.bf16.mxu0 %v2411
        %2504 = vmatpush1.bf16.msra.mxu0 %v2410
        %2505 = vmatprep.subr.bf16.mxu0 %v2415
        %2506 = vmatpush1.bf16.msra.mxu0 %v2414
        %2507 = vmatprep.subr.bf16.mxu0 %v2419
        %2508 = vmatpush1.bf16.msra.mxu0 %v2418
        %2509 = vmatprep.subr.bf16.mxu0 0
        %2510 = vmatpush1.bf16.msra.mxu0 0
        %2511 = vmatprep.subr.bf16.mxu0 0
        %2512 = vmatpush1.bf16.msra.mxu0 0
        %2513 = vmatprep.subr.bf16.mxu0 0
        %2514 = vmatpush1.bf16.msra.mxu0 0
        %2515 = vmatprep.subr.bf16.mxu0 0
        %2516 = vmatpush1.bf16.msra.mxu0 0
        %2517 = vmatprep.subr.bf16.mxu0 0
        %2518 = vmatpush1.bf16.msra.mxu0 0
        %2519 = vmatprep.subr.bf16.mxu0 0
        %2520 = vmatpush1.bf16.msra.mxu0 0
        %2521 = vmatprep.subr.bf16.mxu0 0
        %2522 = vmatpush1.bf16.msra.mxu0 0
        %2523 = vmatprep.subr.bf16.mxu0 0
        %2524 = vmatpush1.bf16.msra.mxu0 0
        %2525 = vmatprep.mubr.bf16.mxu0 0
        %2526 = vmatmul.mubr.bf16.gmra.mrb[0].mxu0 %v2259
        %v2527 = vpop.f32.mrb[0].mxu0
        %v2528 = vadd.f32 0.0, %v2527
        %v2529 = vpop.f32.mrb[0].mxu0
        %v2530 = vadd.f32 0.0, %v2529
        %v2531 = vpop.f32.mrb[0].mxu0
        %v2532 = vpop.f32.mrb[0].mxu0
        %2533 = vdwg.mxu0
        %v2534 = vadd.f32 %v2255, %v2487
        %v2535 = vadd.f32 %v2256, %v2489
        %v2536 = vadd.f32 %v2257, %v2528
        %v2537 = vadd.f32 %v2258, %v2530
        %v2538 = vxor.u32 %v2534, 2147483648
        %v2539 = vmul.f32 %v2538, 1.442695
        %v2540 = vpow.pop %v2539
        %v2541 = vadd.f32 %v2540, 1.0
        %v2542 = vrcp.pop %v2541
        %v2543 = vmul.f32 1.0, %v2542
        %v2544 = vxor.u32 %v2535, 2147483648
        %v2545 = vmul.f32 %v2544, 1.442695
        %v2546 = vpow.pop %v2545
        %v2547 = vadd.f32 %v2546, 1.0
        %v2548 = vrcp.pop %v2547
        %v2549 = vmul.f32 1.0, %v2548
        %v2550 = vtanh.pop %v2536
        %v2551 = vxor.u32 %v2537, 2147483648
        %v2552 = vmul.f32 %v2551, 1.442695
        %v2553 = vpow.pop %v2552
        %v2554 = vadd.f32 %v2553, 1.0
        %v2555 = vrcp.pop %v2554
        %v2556 = vmul.f32 1.0, %v2555
        %v2557 = vmul.f32 %v2549, %v1747
        %v2558 = vmul.f32 %v2543, %v2550
        %v2559 = vadd.f32 %v2557, %v2558
        %v2560 = vtanh.pop %v2559
        %v2561 = vmul.f32 %v2556, %v2560
        %v2562 = vpack.c.bf16 %v2561, %v2561
        %2563 = vst [vmem:[#allocation3] sm:$0xf] %v2562
        %v2564 = vld [vmem:[#allocation3] sm:$0xff]
        %v2565 = vld [vmem:[#allocation9] sm:$0xff]
        %v2566 = vld [vmem:[#allocation9 + $0x8] sm:$0xff]
        %v2567 = vld [vmem:[#allocation9 + $0x10] sm:$0xff]
        %v2568 = vld [vmem:[#allocation9 + $0x18] sm:$0xff]
        %v2569 = vld [vmem:[#allocation9 + $0x20] sm:$0xff]
        %v2570 = vld [vmem:[#allocation9 + $0x28] sm:$0xff]
        %v2571 = vld [vmem:[#allocation9 + $0x30] sm:$0xff]
        %v2572 = vld [vmem:[#allocation9 + $0x38] sm:$0xff]
        %v2573 = vld [vmem:[#allocation9 + $0x40] sm:$0xff]
        %v2574 = vld [vmem:[#allocation9 + $0x48] sm:$0xff]
        %v2575 = vld [vmem:[#allocation9 + $0x50] sm:$0xff]
        %v2576 = vld [vmem:[#allocation9 + $0x58] sm:$0xff]
        %v2577 = vld [vmem:[#allocation9 + $0x60] sm:$0xff]
        %v2578 = vld [vmem:[#allocation9 + $0x68] sm:$0xff]
        %v2579 = vld [vmem:[#allocation9 + $0x70] sm:$0xff]
        %v2580 = vld [vmem:[#allocation9 + $0x78] sm:$0xff]
        %v2581 = vld [vmem:[#allocation9 + $0x80] sm:$0xff]
        %v2582 = vld [vmem:[#allocation9 + $0x88] sm:$0xff]
        %v2583 = vld [vmem:[#allocation9 + $0x90] sm:$0xff]
        %v2584 = vld [vmem:[#allocation9 + $0x98] sm:$0xff]
        %v2585 = vld [vmem:[#allocation9 + $0xa0] sm:$0xff]
        %v2586 = vld [vmem:[#allocation9 + $0xa8] sm:$0xff]
        %v2587 = vld [vmem:[#allocation9 + $0xb0] sm:$0xff]
        %v2588 = vld [vmem:[#allocation9 + $0xb8] sm:$0xff]
        %v2589 = vld [vmem:[#allocation9 + $0xc0] sm:$0xff]
        %v2590 = vld [vmem:[#allocation9 + $0xc8] sm:$0xff]
        %v2591 = vld [vmem:[#allocation9 + $0xd0] sm:$0xff]
        %v2592 = vld [vmem:[#allocation9 + $0xd8] sm:$0xff]
        %v2593 = vld [vmem:[#allocation9 + $0xe0] sm:$0xff]
        %v2594 = vld [vmem:[#allocation9 + $0xe8] sm:$0xff]
        %v2595 = vld [vmem:[#allocation9 + $0xf0] sm:$0xff]
        %v2596 = vld [vmem:[#allocation9 + $0xf8] sm:$0xff]
        %v2597 = vld [vmem:[#allocation9 + $0x100] sm:$0xff]
        %v2598 = vld [vmem:[#allocation9 + $0x108] sm:$0xff]
        %v2599 = vld [vmem:[#allocation9 + $0x110] sm:$0xff]
        %v2600 = vld [vmem:[#allocation9 + $0x118] sm:$0xff]
        %v2601 = vld [vmem:[#allocation9 + $0x120] sm:$0xff]
        %v2602 = vld [vmem:[#allocation9 + $0x128] sm:$0xff]
        %v2603 = vld [vmem:[#allocation9 + $0x130] sm:$0xff]
        %v2604 = vld [vmem:[#allocation9 + $0x138] sm:$0xff]
        %v2605 = vld [vmem:[#allocation9 + $0x140] sm:$0xff]
        %v2606 = vld [vmem:[#allocation9 + $0x148] sm:$0xff]
        %v2607 = vld [vmem:[#allocation9 + $0x150] sm:$0xff]
        %v2608 = vld [vmem:[#allocation9 + $0x158] sm:$0xff]
        %v2609 = vld [vmem:[#allocation9 + $0x160] sm:$0xff]
        %v2610 = vld [vmem:[#allocation9 + $0x168] sm:$0xff]
        %v2611 = vld [vmem:[#allocation9 + $0x170] sm:$0xff]
        %v2612 = vld [vmem:[#allocation9 + $0x178] sm:$0xff]
        %v2613 = vld [vmem:[#allocation9 + $0x180] sm:$0xff]
        %v2614 = vld [vmem:[#allocation9 + $0x188] sm:$0xff]
        %v2615 = vld [vmem:[#allocation9 + $0x190] sm:$0xff]
        %v2616 = vld [vmem:[#allocation9 + $0x198] sm:$0xff]
        %v2617 = vld [vmem:[#allocation9 + $0x1a0] sm:$0xff]
        %v2618 = vld [vmem:[#allocation9 + $0x1a8] sm:$0xff]
        %v2619 = vld [vmem:[#allocation9 + $0x1b0] sm:$0xff]
        %v2620 = vld [vmem:[#allocation9 + $0x1b8] sm:$0xff]
        %v2621 = vld [vmem:[#allocation9 + $0x1c0] sm:$0xff]
        %v2622 = vld [vmem:[#allocation9 + $0x1c8] sm:$0xff]
        %v2623 = vld [vmem:[#allocation9 + $0x1d0] sm:$0xff]
        %v2624 = vld [vmem:[#allocation9 + $0x1d8] sm:$0xff]
        %v2625 = vld [vmem:[#allocation9 + $0x1e0] sm:$0xff]
        %v2626 = vld [vmem:[#allocation9 + $0x1e8] sm:$0xff]
        %v2627 = vld [vmem:[#allocation9 + $0x1f0] sm:$0xff]
        %v2628 = vld [vmem:[#allocation9 + $0x1f8] sm:$0xff]
        %v2630 = vunpack.c.l.b16 %v2564
        %v2631 = vunpack.c.h.b16 %v2564
        %v2632 = vpack.c.b16 %v2630, %v2630
        %v2633 = vpack.c.b16 %v2631, %v2631
        %v2700 = vunpack.c.l.b16 %v2565
        %v2701 = vunpack.c.h.b16 %v2565
        %v2702 = vunpack.c.l.b16 %v2566
        %v2703 = vunpack.c.h.b16 %v2566
        %v2704 = vunpack.c.l.b16 %v2567
        %v2705 = vunpack.c.h.b16 %v2567
        %v2706 = vunpack.c.l.b16 %v2568
        %v2707 = vunpack.c.h.b16 %v2568
        %v2708 = vunpack.c.l.b16 %v2569
        %v2709 = vunpack.c.h.b16 %v2569
        %v2710 = vunpack.c.l.b16 %v2570
        %v2711 = vunpack.c.h.b16 %v2570
        %v2712 = vunpack.c.l.b16 %v2571
        %v2713 = vunpack.c.h.b16 %v2571
        %v2714 = vunpack.c.l.b16 %v2572
        %v2715 = vunpack.c.h.b16 %v2572
        %v2716 = vunpack.c.l.b16 %v2573
        %v2717 = vunpack.c.h.b16 %v2573
        %v2718 = vunpack.c.l.b16 %v2574
        %v2719 = vunpack.c.h.b16 %v2574
        %v2720 = vunpack.c.l.b16 %v2575
        %v2721 = vunpack.c.h.b16 %v2575
        %v2722 = vunpack.c.l.b16 %v2576
        %v2723 = vunpack.c.h.b16 %v2576
        %v2724 = vunpack.c.l.b16 %v2577
        %v2725 = vunpack.c.h.b16 %v2577
        %v2726 = vunpack.c.l.b16 %v2578
        %v2727 = vunpack.c.h.b16 %v2578
        %v2728 = vunpack.c.l.b16 %v2579
        %v2729 = vunpack.c.h.b16 %v2579
        %v2730 = vunpack.c.l.b16 %v2580
        %v2731 = vunpack.c.h.b16 %v2580
        %v2732 = vunpack.c.l.b16 %v2581
        %v2733 = vunpack.c.h.b16 %v2581
        %v2734 = vunpack.c.l.b16 %v2582
        %v2735 = vunpack.c.h.b16 %v2582
        %v2736 = vunpack.c.l.b16 %v2583
        %v2737 = vunpack.c.h.b16 %v2583
        %v2738 = vunpack.c.l.b16 %v2584
        %v2739 = vunpack.c.h.b16 %v2584
        %v2740 = vunpack.c.l.b16 %v2585
        %v2741 = vunpack.c.h.b16 %v2585
        %v2742 = vunpack.c.l.b16 %v2586
        %v2743 = vunpack.c.h.b16 %v2586
        %v2744 = vunpack.c.l.b16 %v2587
        %v2745 = vunpack.c.h.b16 %v2587
        %v2746 = vunpack.c.l.b16 %v2588
        %v2747 = vunpack.c.h.b16 %v2588
        %v2748 = vunpack.c.l.b16 %v2589
        %v2749 = vunpack.c.h.b16 %v2589
        %v2750 = vunpack.c.l.b16 %v2590
        %v2751 = vunpack.c.h.b16 %v2590
        %v2752 = vunpack.c.l.b16 %v2591
        %v2753 = vunpack.c.h.b16 %v2591
        %v2754 = vunpack.c.l.b16 %v2592
        %v2755 = vunpack.c.h.b16 %v2592
        %v2756 = vunpack.c.l.b16 %v2593
        %v2757 = vunpack.c.h.b16 %v2593
        %v2758 = vunpack.c.l.b16 %v2594
        %v2759 = vunpack.c.h.b16 %v2594
        %v2760 = vunpack.c.l.b16 %v2595
        %v2761 = vunpack.c.h.b16 %v2595
        %v2762 = vunpack.c.l.b16 %v2596
        %v2763 = vunpack.c.h.b16 %v2596
        %v2764 = vunpack.c.l.b16 %v2597
        %v2765 = vunpack.c.h.b16 %v2597
        %v2766 = vunpack.c.l.b16 %v2598
        %v2767 = vunpack.c.h.b16 %v2598
        %v2768 = vunpack.c.l.b16 %v2599
        %v2769 = vunpack.c.h.b16 %v2599
        %v2770 = vunpack.c.l.b16 %v2600
        %v2771 = vunpack.c.h.b16 %v2600
        %v2772 = vunpack.c.l.b16 %v2601
        %v2773 = vunpack.c.h.b16 %v2601
        %v2774 = vunpack.c.l.b16 %v2602
        %v2775 = vunpack.c.h.b16 %v2602
        %v2776 = vunpack.c.l.b16 %v2603
        %v2777 = vunpack.c.h.b16 %v2603
        %v2778 = vunpack.c.l.b16 %v2604
        %v2779 = vunpack.c.h.b16 %v2604
        %v2780 = vunpack.c.l.b16 %v2605
        %v2781 = vunpack.c.h.b16 %v2605
        %v2782 = vunpack.c.l.b16 %v2606
        %v2783 = vunpack.c.h.b16 %v2606
        %v2784 = vunpack.c.l.b16 %v2607
        %v2785 = vunpack.c.h.b16 %v2607
        %v2786 = vunpack.c.l.b16 %v2608
        %v2787 = vunpack.c.h.b16 %v2608
        %v2788 = vunpack.c.l.b16 %v2609
        %v2789 = vunpack.c.h.b16 %v2609
        %v2790 = vunpack.c.l.b16 %v2610
        %v2791 = vunpack.c.h.b16 %v2610
        %v2792 = vunpack.c.l.b16 %v2611
        %v2793 = vunpack.c.h.b16 %v2611
        %v2794 = vunpack.c.l.b16 %v2612
        %v2795 = vunpack.c.h.b16 %v2612
        %v2796 = vunpack.c.l.b16 %v2613
        %v2797 = vunpack.c.h.b16 %v2613
        %v2798 = vunpack.c.l.b16 %v2614
        %v2799 = vunpack.c.h.b16 %v2614
        %v2800 = vunpack.c.l.b16 %v2615
        %v2801 = vunpack.c.h.b16 %v2615
        %v2802 = vunpack.c.l.b16 %v2616
        %v2803 = vunpack.c.h.b16 %v2616
        %v2804 = vunpack.c.l.b16 %v2617
        %v2805 = vunpack.c.h.b16 %v2617
        %v2806 = vunpack.c.l.b16 %v2618
        %v2807 = vunpack.c.h.b16 %v2618
        %v2808 = vunpack.c.l.b16 %v2619
        %v2809 = vunpack.c.h.b16 %v2619
        %v2810 = vunpack.c.l.b16 %v2620
        %v2811 = vunpack.c.h.b16 %v2620
        %v2812 = vunpack.c.l.b16 %v2621
        %v2813 = vunpack.c.h.b16 %v2621
        %v2814 = vunpack.c.l.b16 %v2622
        %v2815 = vunpack.c.h.b16 %v2622
        %v2816 = vunpack.c.l.b16 %v2623
        %v2817 = vunpack.c.h.b16 %v2623
        %v2818 = vunpack.c.l.b16 %v2624
        %v2819 = vunpack.c.h.b16 %v2624
        %v2820 = vunpack.c.l.b16 %v2625
        %v2821 = vunpack.c.h.b16 %v2625
        %v2822 = vunpack.c.l.b16 %v2626
        %v2823 = vunpack.c.h.b16 %v2626
        %v2824 = vunpack.c.l.b16 %v2627
        %v2825 = vunpack.c.h.b16 %v2627
        %v2826 = vunpack.c.l.b16 %v2628
        %v2827 = vunpack.c.h.b16 %v2628
        %v2828 = vpack.c.b16 %v2704, %v2700
        %v2829 = vpack.c.b16 %v2705, %v2701
        %v2830 = vpack.c.b16 %v2706, %v2702
        %v2831 = vpack.c.b16 %v2707, %v2703
        %v2832 = vpack.c.b16 %v2712, %v2708
        %v2833 = vpack.c.b16 %v2713, %v2709
        %v2834 = vpack.c.b16 %v2714, %v2710
        %v2835 = vpack.c.b16 %v2715, %v2711
        %v2836 = vpack.c.b16 %v2720, %v2716
        %v2837 = vpack.c.b16 %v2721, %v2717
        %v2838 = vpack.c.b16 %v2722, %v2718
        %v2839 = vpack.c.b16 %v2723, %v2719
        %v2840 = vpack.c.b16 %v2728, %v2724
        %v2841 = vpack.c.b16 %v2729, %v2725
        %v2842 = vpack.c.b16 %v2730, %v2726
        %v2843 = vpack.c.b16 %v2731, %v2727
        %v2844 = vpack.c.b16 %v2736, %v2732
        %v2845 = vpack.c.b16 %v2737, %v2733
        %v2846 = vpack.c.b16 %v2738, %v2734
        %v2847 = vpack.c.b16 %v2739, %v2735
        %v2848 = vpack.c.b16 %v2744, %v2740
        %v2849 = vpack.c.b16 %v2745, %v2741
        %v2850 = vpack.c.b16 %v2746, %v2742
        %v2851 = vpack.c.b16 %v2747, %v2743
        %v2852 = vpack.c.b16 %v2752, %v2748
        %v2853 = vpack.c.b16 %v2753, %v2749
        %v2854 = vpack.c.b16 %v2754, %v2750
        %v2855 = vpack.c.b16 %v2755, %v2751
        %v2856 = vpack.c.b16 %v2760, %v2756
        %v2857 = vpack.c.b16 %v2761, %v2757
        %v2858 = vpack.c.b16 %v2762, %v2758
        %v2859 = vpack.c.b16 %v2763, %v2759
        %v2860 = vpack.c.b16 %v2768, %v2764
        %v2861 = vpack.c.b16 %v2769, %v2765
        %v2862 = vpack.c.b16 %v2770, %v2766
        %v2863 = vpack.c.b16 %v2771, %v2767
        %v2864 = vpack.c.b16 %v2776, %v2772
        %v2865 = vpack.c.b16 %v2777, %v2773
        %v2866 = vpack.c.b16 %v2778, %v2774
        %v2867 = vpack.c.b16 %v2779, %v2775
        %v2868 = vpack.c.b16 %v2784, %v2780
        %v2869 = vpack.c.b16 %v2785, %v2781
        %v2870 = vpack.c.b16 %v2786, %v2782
        %v2871 = vpack.c.b16 %v2787, %v2783
        %v2872 = vpack.c.b16 %v2792, %v2788
        %v2873 = vpack.c.b16 %v2793, %v2789
        %v2874 = vpack.c.b16 %v2794, %v2790
        %v2875 = vpack.c.b16 %v2795, %v2791
        %v2876 = vpack.c.b16 %v2800, %v2796
        %v2877 = vpack.c.b16 %v2801, %v2797
        %v2878 = vpack.c.b16 %v2802, %v2798
        %v2879 = vpack.c.b16 %v2803, %v2799
        %v2880 = vpack.c.b16 %v2808, %v2804
        %v2881 = vpack.c.b16 %v2809, %v2805
        %v2882 = vpack.c.b16 %v2810, %v2806
        %v2883 = vpack.c.b16 %v2811, %v2807
        %v2884 = vpack.c.b16 %v2816, %v2812
        %v2885 = vpack.c.b16 %v2817, %v2813
        %v2886 = vpack.c.b16 %v2818, %v2814
        %v2887 = vpack.c.b16 %v2819, %v2815
        %v2888 = vpack.c.b16 %v2824, %v2820
        %v2889 = vpack.c.b16 %v2825, %v2821
        %v2890 = vpack.c.b16 %v2826, %v2822
        %v2891 = vpack.c.b16 %v2827, %v2823
        %2956 = vmatprep.subr.bf16.mxu0 %v2829
        %2957 = vmatpush1.bf16.msra.mxu0 %v2828
        %2958 = vmatprep.subr.bf16.mxu0 %v2833
        %2959 = vmatpush1.bf16.msra.mxu0 %v2832
        %2960 = vmatprep.subr.bf16.mxu0 %v2837
        %2961 = vmatpush1.bf16.msra.mxu0 %v2836
        %2962 = vmatprep.subr.bf16.mxu0 %v2841
        %2963 = vmatpush1.bf16.msra.mxu0 %v2840
        %2964 = vmatprep.subr.bf16.mxu0 %v2845
        %2965 = vmatpush1.bf16.msra.mxu0 %v2844
        %2966 = vmatprep.subr.bf16.mxu0 %v2849
        %2967 = vmatpush1.bf16.msra.mxu0 %v2848
        %2968 = vmatprep.subr.bf16.mxu0 %v2853
        %2969 = vmatpush1.bf16.msra.mxu0 %v2852
        %2970 = vmatprep.subr.bf16.mxu0 %v2857
        %2971 = vmatpush1.bf16.msra.mxu0 %v2856
        %2972 = vmatprep.subr.bf16.mxu0 %v2861
        %2973 = vmatpush1.bf16.msra.mxu0 %v2860
        %2974 = vmatprep.subr.bf16.mxu0 %v2865
        %2975 = vmatpush1.bf16.msra.mxu0 %v2864
        %2976 = vmatprep.subr.bf16.mxu0 %v2869
        %2977 = vmatpush1.bf16.msra.mxu0 %v2868
        %2978 = vmatprep.subr.bf16.mxu0 %v2873
        %2979 = vmatpush1.bf16.msra.mxu0 %v2872
        %2980 = vmatprep.subr.bf16.mxu0 %v2877
        %2981 = vmatpush1.bf16.msra.mxu0 %v2876
        %2982 = vmatprep.subr.bf16.mxu0 %v2881
        %2983 = vmatpush1.bf16.msra.mxu0 %v2880
        %2984 = vmatprep.subr.bf16.mxu0 %v2885
        %2985 = vmatpush1.bf16.msra.mxu0 %v2884
        %2986 = vmatprep.subr.bf16.mxu0 %v2889
        %2987 = vmatpush1.bf16.msra.mxu0 %v2888
        %2988 = vmatprep.mubr.bf16.mxu0 %v2633
        %2989 = vmatmul.mubr.bf16.gmra.mrb[0].mxu0 %v2632
        %v2990 = vpop.f32.mrb[0].mxu0
        %v2991 = vadd.f32 %v610, %v2990
        %v2992 = vpop.f32.mrb[0].mxu0
        %v2993 = vadd.f32 %v614, %v2992
        %v2994 = vpop.f32.mrb[0].mxu0
        %v2995 = vpop.f32.mrb[0].mxu0
        %2996 = vdwg.mxu0
        %2997 = vmatprep.subr.bf16.mxu0 %v2831
        %2998 = vmatpush1.bf16.msra.mxu0 %v2830
        %2999 = vmatprep.subr.bf16.mxu0 %v2835
        %3000 = vmatpush1.bf16.msra.mxu0 %v2834
        %3001 = vmatprep.subr.bf16.mxu0 %v2839
        %3002 = vmatpush1.bf16.msra.mxu0 %v2838
        %3003 = vmatprep.subr.bf16.mxu0 %v2843
        %3004 = vmatpush1.bf16.msra.mxu0 %v2842
        %3005 = vmatprep.subr.bf16.mxu0 %v2847
        %3006 = vmatpush1.bf16.msra.mxu0 %v2846
        %3007 = vmatprep.subr.bf16.mxu0 %v2851
        %3008 = vmatpush1.bf16.msra.mxu0 %v2850
        %3009 = vmatprep.subr.bf16.mxu0 %v2855
        %3010 = vmatpush1.bf16.msra.mxu0 %v2854
        %3011 = vmatprep.subr.bf16.mxu0 %v2859
        %3012 = vmatpush1.bf16.msra.mxu0 %v2858
        %3013 = vmatprep.subr.bf16.mxu0 %v2863
        %3014 = vmatpush1.bf16.msra.mxu0 %v2862
        %3015 = vmatprep.subr.bf16.mxu0 %v2867
        %3016 = vmatpush1.bf16.msra.mxu0 %v2866
        %3017 = vmatprep.subr.bf16.mxu0 %v2871
        %3018 = vmatpush1.bf16.msra.mxu0 %v2870
        %3019 = vmatprep.subr.bf16.mxu0 %v2875
        %3020 = vmatpush1.bf16.msra.mxu0 %v2874
        %3021 = vmatprep.subr.bf16.mxu0 %v2879
        %3022 = vmatpush1.bf16.msra.mxu0 %v2878
        %3023 = vmatprep.subr.bf16.mxu0 %v2883
        %3024 = vmatpush1.bf16.msra.mxu0 %v2882
        %3025 = vmatprep.subr.bf16.mxu0 %v2887
        %3026 = vmatpush1.bf16.msra.mxu0 %v2886
        %3027 = vmatprep.subr.bf16.mxu0 %v2891
        %3028 = vmatpush1.bf16.msra.mxu0 %v2890
        %3029 = vmatprep.mubr.bf16.mxu0 %v2633
        %3030 = vmatmul.mubr.bf16.gmra.mrb[0].mxu0 %v2632
        %v3031 = vpop.f32.mrb[0].mxu0
        %v3032 = vadd.f32 %v618, %v3031
        %v3033 = vpop.f32.mrb[0].mxu0
        %v3034 = vadd.f32 %v622, %v3033
        %v3035 = vpop.f32.mrb[0].mxu0
        %v3036 = vpop.f32.mrb[0].mxu0
        %3037 = vdwg.mxu0
        %v3038 = vxor.u32 %v2991, 2147483648
        %v3039 = vmul.f32 %v3038, 1.442695
        %v3040 = vpow.pop %v3039
        %v3041 = vadd.f32 %v3040, 1.0
        %v3042 = vrcp.pop %v3041
        %v3043 = vmul.f32 1.0, %v3042
        %v3044 = vxor.u32 %v2993, 2147483648
        %v3045 = vmul.f32 %v3044, 1.442695
        %v3046 = vpow.pop %v3045
        %v3047 = vadd.f32 %v3046, 1.0
        %v3048 = vrcp.pop %v3047
        %v3049 = vmul.f32 1.0, %v3048
        %v3050 = vtanh.pop %v3032
        %v3051 = vxor.u32 %v3034, 2147483648
        %v3052 = vmul.f32 %v3051, 1.442695
        %v3053 = vpow.pop %v3052
        %v3054 = vadd.f32 %v3053, 1.0
        %v3055 = vrcp.pop %v3054
        %v3056 = vmul.f32 1.0, %v3055
        %v3057 = vmul.f32 %v3049, %v2247
        %v3058 = vmul.f32 %v3043, %v3050
        %v3059 = vadd.f32 %v3057, %v3058
        %v3060 = vtanh.pop %v3059
        %v3061 = vmul.f32 %v3056, %v3060
        %v3062 = vpack.c.bf16 %v3061, %v3061
        %3063 = vst [vmem:[#allocation3 + $0x4] sm:$0xf] %v3062
        %s3064 = scalar_lea.vmem [#allocation2], 48
        %v3065 = vld [vmem:[%s3064] sm:$0xff]
        %v3066 = vld [vmem:[%s3064 + $0x8] sm:$0xff]
        %v3067 = vunpack.c.l.bf16 %v3065
        %v3068 = vunpack.c.h.bf16 %v3065
        %v3069 = vunpack.c.l.bf16 %v3066
        %v3070 = vunpack.c.h.bf16 %v3066
        %v3071 = vld [vmem:[#allocation3] sm:$0xf]
        %v3072 = vld [vmem:[#allocation6] sm:$0xff]
        %v3073 = vld [vmem:[#allocation6 + $0x8] sm:$0xff]
        %v3074 = vld [vmem:[#allocation6 + $0x10] sm:$0xff]
        %v3075 = vld [vmem:[#allocation6 + $0x18] sm:$0xff]
        %v3076 = vld [vmem:[#allocation6 + $0x20] sm:$0xff]
        %v3077 = vld [vmem:[#allocation6 + $0x28] sm:$0xff]
        %v3078 = vld [vmem:[#allocation6 + $0x30] sm:$0xff]
        %v3079 = vld [vmem:[#allocation6 + $0x38] sm:$0xff]
        %v3080 = vld [vmem:[#allocation6 + $0x40] sm:$0xff]
        %v3081 = vld [vmem:[#allocation6 + $0x48] sm:$0xff]
        %v3082 = vld [vmem:[#allocation6 + $0x50] sm:$0xff]
        %v3083 = vld [vmem:[#allocation6 + $0x58] sm:$0xff]
        %v3084 = vld [vmem:[#allocation6 + $0x60] sm:$0xff]
        %v3085 = vld [vmem:[#allocation6 + $0x68] sm:$0xff]
        %v3086 = vld [vmem:[#allocation6 + $0x70] sm:$0xff]
        %v3087 = vld [vmem:[#allocation6 + $0x78] sm:$0xff]
        %v3088 = vld [vmem:[#allocation6 + $0x80] sm:$0xff]
        %v3089 = vld [vmem:[#allocation6 + $0x88] sm:$0xff]
        %v3090 = vld [vmem:[#allocation6 + $0x90] sm:$0xff]
        %v3091 = vld [vmem:[#allocation6 + $0x98] sm:$0xff]
        %v3092 = vld [vmem:[#allocation6 + $0xa0] sm:$0xff]
        %v3093 = vld [vmem:[#allocation6 + $0xa8] sm:$0xff]
        %v3094 = vld [vmem:[#allocation6 + $0xb0] sm:$0xff]
        %v3095 = vld [vmem:[#allocation6 + $0xb8] sm:$0xff]
        %v3096 = vld [vmem:[#allocation6 + $0xc0] sm:$0xff]
        %v3097 = vld [vmem:[#allocation6 + $0xc8] sm:$0xff]
        %v3098 = vld [vmem:[#allocation6 + $0xd0] sm:$0xff]
        %v3099 = vld [vmem:[#allocation6 + $0xd8] sm:$0xff]
        %v3100 = vld [vmem:[#allocation6 + $0xe0] sm:$0xff]
        %v3101 = vld [vmem:[#allocation6 + $0xe8] sm:$0xff]
        %v3102 = vld [vmem:[#allocation6 + $0xf0] sm:$0xff]
        %v3103 = vld [vmem:[#allocation6 + $0xf8] sm:$0xff]
        %v3136 = vunpack.c.l.b16 %v3072
        %v3137 = vunpack.c.h.b16 %v3072
        %v3138 = vunpack.c.l.b16 %v3073
        %v3139 = vunpack.c.h.b16 %v3073
        %v3140 = vunpack.c.l.b16 %v3074
        %v3141 = vunpack.c.h.b16 %v3074
        %v3142 = vunpack.c.l.b16 %v3075
        %v3143 = vunpack.c.h.b16 %v3075
        %v3144 = vunpack.c.l.b16 %v3076
        %v3145 = vunpack.c.h.b16 %v3076
        %v3146 = vunpack.c.l.b16 %v3077
        %v3147 = vunpack.c.h.b16 %v3077
        %v3148 = vunpack.c.l.b16 %v3078
        %v3149 = vunpack.c.h.b16 %v3078
        %v3150 = vunpack.c.l.b16 %v3079
        %v3151 = vunpack.c.h.b16 %v3079
        %v3152 = vunpack.c.l.b16 %v3080
        %v3153 = vunpack.c.h.b16 %v3080
        %v3154 = vunpack.c.l.b16 %v3081
        %v3155 = vunpack.c.h.b16 %v3081
        %v3156 = vunpack.c.l.b16 %v3082
        %v3157 = vunpack.c.h.b16 %v3082
        %v3158 = vunpack.c.l.b16 %v3083
        %v3159 = vunpack.c.h.b16 %v3083
        %v3160 = vunpack.c.l.b16 %v3084
        %v3161 = vunpack.c.h.b16 %v3084
        %v3162 = vunpack.c.l.b16 %v3085
        %v3163 = vunpack.c.h.b16 %v3085
        %v3164 = vunpack.c.l.b16 %v3086
        %v3165 = vunpack.c.h.b16 %v3086
        %v3166 = vunpack.c.l.b16 %v3087
        %v3167 = vunpack.c.h.b16 %v3087
        %v3168 = vunpack.c.l.b16 %v3088
        %v3169 = vunpack.c.h.b16 %v3088
        %v3170 = vunpack.c.l.b16 %v3089
        %v3171 = vunpack.c.h.b16 %v3089
        %v3172 = vunpack.c.l.b16 %v3090
        %v3173 = vunpack.c.h.b16 %v3090
        %v3174 = vunpack.c.l.b16 %v3091
        %v3175 = vunpack.c.h.b16 %v3091
        %v3176 = vunpack.c.l.b16 %v3092
        %v3177 = vunpack.c.h.b16 %v3092
        %v3178 = vunpack.c.l.b16 %v3093
        %v3179 = vunpack.c.h.b16 %v3093
        %v3180 = vunpack.c.l.b16 %v3094
        %v3181 = vunpack.c.h.b16 %v3094
        %v3182 = vunpack.c.l.b16 %v3095
        %v3183 = vunpack.c.h.b16 %v3095
        %v3184 = vunpack.c.l.b16 %v3096
        %v3185 = vunpack.c.h.b16 %v3096
        %v3186 = vunpack.c.l.b16 %v3097
        %v3187 = vunpack.c.h.b16 %v3097
        %v3188 = vunpack.c.l.b16 %v3098
        %v3189 = vunpack.c.h.b16 %v3098
        %v3190 = vunpack.c.l.b16 %v3099
        %v3191 = vunpack.c.h.b16 %v3099
        %v3192 = vunpack.c.l.b16 %v3100
        %v3193 = vunpack.c.h.b16 %v3100
        %v3194 = vunpack.c.l.b16 %v3101
        %v3195 = vunpack.c.h.b16 %v3101
        %v3196 = vunpack.c.l.b16 %v3102
        %v3197 = vunpack.c.h.b16 %v3102
        %v3198 = vunpack.c.l.b16 %v3103
        %v3199 = vunpack.c.h.b16 %v3103
        %v3200 = vpack.c.b16 %v3140, %v3136
        %v3201 = vpack.c.b16 %v3141, %v3137
        %v3202 = vpack.c.b16 %v3142, %v3138
        %v3203 = vpack.c.b16 %v3143, %v3139
        %v3204 = vpack.c.b16 %v3148, %v3144
        %v3205 = vpack.c.b16 %v3149, %v3145
        %v3206 = vpack.c.b16 %v3150, %v3146
        %v3207 = vpack.c.b16 %v3151, %v3147
        %v3208 = vpack.c.b16 %v3156, %v3152
        %v3209 = vpack.c.b16 %v3157, %v3153
        %v3210 = vpack.c.b16 %v3158, %v3154
        %v3211 = vpack.c.b16 %v3159, %v3155
        %v3212 = vpack.c.b16 %v3164, %v3160
        %v3213 = vpack.c.b16 %v3165, %v3161
        %v3214 = vpack.c.b16 %v3166, %v3162
        %v3215 = vpack.c.b16 %v3167, %v3163
        %v3216 = vpack.c.b16 %v3172, %v3168
        %v3217 = vpack.c.b16 %v3173, %v3169
        %v3218 = vpack.c.b16 %v3174, %v3170
        %v3219 = vpack.c.b16 %v3175, %v3171
        %v3220 = vpack.c.b16 %v3180, %v3176
        %v3221 = vpack.c.b16 %v3181, %v3177
        %v3222 = vpack.c.b16 %v3182, %v3178
        %v3223 = vpack.c.b16 %v3183, %v3179
        %v3224 = vpack.c.b16 %v3188, %v3184
        %v3225 = vpack.c.b16 %v3189, %v3185
        %v3226 = vpack.c.b16 %v3190, %v3186
        %v3227 = vpack.c.b16 %v3191, %v3187
        %v3228 = vpack.c.b16 %v3196, %v3192
        %v3229 = vpack.c.b16 %v3197, %v3193
        %v3230 = vpack.c.b16 %v3198, %v3194
        %v3231 = vpack.c.b16 %v3199, %v3195
        %3264 = vmatprep.subr.bf16.mxu0 %v3201
        %3265 = vmatpush1.bf16.msra.mxu0 %v3200
        %3266 = vmatprep.subr.bf16.mxu0 %v3205
        %3267 = vmatpush1.bf16.msra.mxu0 %v3204
        %3268 = vmatprep.subr.bf16.mxu0 %v3209
        %3269 = vmatpush1.bf16.msra.mxu0 %v3208
        %3270 = vmatprep.subr.bf16.mxu0 %v3213
        %3271 = vmatpush1.bf16.msra.mxu0 %v3212
        %3272 = vmatprep.subr.bf16.mxu0 %v3217
        %3273 = vmatpush1.bf16.msra.mxu0 %v3216
        %3274 = vmatprep.subr.bf16.mxu0 %v3221
        %3275 = vmatpush1.bf16.msra.mxu0 %v3220
        %3276 = vmatprep.subr.bf16.mxu0 %v3225
        %3277 = vmatpush1.bf16.msra.mxu0 %v3224
        %3278 = vmatprep.subr.bf16.mxu0 %v3229
        %3279 = vmatpush1.bf16.msra.mxu0 %v3228
        %3280 = vmatprep.subr.bf16.mxu0 0
        %3281 = vmatpush1.bf16.msra.mxu0 0
        %3282 = vmatprep.subr.bf16.mxu0 0
        %3283 = vmatpush1.bf16.msra.mxu0 0
        %3284 = vmatprep.subr.bf16.mxu0 0
        %3285 = vmatpush1.bf16.msra.mxu0 0
        %3286 = vmatprep.subr.bf16.mxu0 0
        %3287 = vmatpush1.bf16.msra.mxu0 0
        %3288 = vmatprep.subr.bf16.mxu0 0
        %3289 = vmatpush1.bf16.msra.mxu0 0
        %3290 = vmatprep.subr.bf16.mxu0 0
        %3291 = vmatpush1.bf16.msra.mxu0 0
        %3292 = vmatprep.subr.bf16.mxu0 0
        %3293 = vmatpush1.bf16.msra.mxu0 0
        %3294 = vmatprep.subr.bf16.mxu0 0
        %3295 = vmatpush1.bf16.msra.mxu0 0
        %3296 = vmatprep.mubr.bf16.mxu0 0
        %3297 = vmatmul.mubr.bf16.gmra.mrb[0].mxu0 %v3071
        %v3298 = vpop.f32.mrb[0].mxu0
        %v3299 = vadd.f32 0.0, %v3298
        %v3300 = vpop.f32.mrb[0].mxu0
        %v3301 = vadd.f32 0.0, %v3300
        %v3302 = vpop.f32.mrb[0].mxu0
        %v3303 = vpop.f32.mrb[0].mxu0
        %3304 = vdwg.mxu0
        %3305 = vmatprep.subr.bf16.mxu0 %v3203
        %3306 = vmatpush1.bf16.msra.mxu0 %v3202
        %3307 = vmatprep.subr.bf16.mxu0 %v3207
        %3308 = vmatpush1.bf16.msra.mxu0 %v3206
        %3309 = vmatprep.subr.bf16.mxu0 %v3211
        %3310 = vmatpush1.bf16.msra.mxu0 %v3210
        %3311 = vmatprep.subr.bf16.mxu0 %v3215
        %3312 = vmatpush1.bf16.msra.mxu0 %v3214
        %3313 = vmatprep.subr.bf16.mxu0 %v3219
        %3314 = vmatpush1.bf16.msra.mxu0 %v3218
        %3315 = vmatprep.subr.bf16.mxu0 %v3223
        %3316 = vmatpush1.bf16.msra.mxu0 %v3222
        %3317 = vmatprep.subr.bf16.mxu0 %v3227
        %3318 = vmatpush1.bf16.msra.mxu0 %v3226
        %3319 = vmatprep.subr.bf16.mxu0 %v3231
        %3320 = vmatpush1.bf16.msra.mxu0 %v3230
        %3321 = vmatprep.subr.bf16.mxu0 0
        %3322 = vmatpush1.bf16.msra.mxu0 0
        %3323 = vmatprep.subr.bf16.mxu0 0
        %3324 = vmatpush1.bf16.msra.mxu0 0
        %3325 = vmatprep.subr.bf16.mxu0 0
        %3326 = vmatpush1.bf16.msra.mxu0 0
        %3327 = vmatprep.subr.bf16.mxu0 0
        %3328 = vmatpush1.bf16.msra.mxu0 0
        %3329 = vmatprep.subr.bf16.mxu0 0
        %3330 = vmatpush1.bf16.msra.mxu0 0
        %3331 = vmatprep.subr.bf16.mxu0 0
        %3332 = vmatpush1.bf16.msra.mxu0 0
        %3333 = vmatprep.subr.bf16.mxu0 0
        %3334 = vmatpush1.bf16.msra.mxu0 0
        %3335 = vmatprep.subr.bf16.mxu0 0
        %3336 = vmatpush1.bf16.msra.mxu0 0
        %3337 = vmatprep.mubr.bf16.mxu0 0
        %3338 = vmatmul.mubr.bf16.gmra.mrb[0].mxu0 %v3071
        %v3339 = vpop.f32.mrb[0].mxu0
        %v3340 = vadd.f32 0.0, %v3339
        %v3341 = vpop.f32.mrb[0].mxu0
        %v3342 = vadd.f32 0.0, %v3341
        %v3343 = vpop.f32.mrb[0].mxu0
        %v3344 = vpop.f32.mrb[0].mxu0
        %3345 = vdwg.mxu0
        %v3346 = vadd.f32 %v3067, %v3299
        %v3347 = vadd.f32 %v3068, %v3301
        %v3348 = vadd.f32 %v3069, %v3340
        %v3349 = vadd.f32 %v3070, %v3342
        %v3350 = vxor.u32 %v3346, 2147483648
        %v3351 = vmul.f32 %v3350, 1.442695
        %v3352 = vpow.pop %v3351
        %v3353 = vadd.f32 %v3352, 1.0
        %v3354 = vrcp.pop %v3353
        %v3355 = vmul.f32 1.0, %v3354
        %v3356 = vxor.u32 %v3347, 2147483648
        %v3357 = vmul.f32 %v3356, 1.442695
        %v3358 = vpow.pop %v3357
        %v3359 = vadd.f32 %v3358, 1.0
        %v3360 = vrcp.pop %v3359
        %v3361 = vmul.f32 1.0, %v3360
        %v3362 = vtanh.pop %v3348
        %v3363 = vxor.u32 %v3349, 2147483648
        %v3364 = vmul.f32 %v3363, 1.442695
        %v3365 = vpow.pop %v3364
        %v3366 = vadd.f32 %v3365, 1.0
        %v3367 = vrcp.pop %v3366
        %v3368 = vmul.f32 1.0, %v3367
        %v3369 = vmul.f32 %v3361, %v2559
        %v3370 = vmul.f32 %v3355, %v3362
        %v3371 = vadd.f32 %v3369, %v3370
        %v3372 = vtanh.pop %v3371
        %v3373 = vmul.f32 %v3368, %v3372
        %v3374 = vpack.c.bf16 %v3373, %v3373
        %3375 = vst [vmem:[#allocation3] sm:$0xf] %v3374
        %v3376 = vld [vmem:[#allocation3] sm:$0xff]
        %v3377 = vld [vmem:[#allocation9] sm:$0xff]
        %v3378 = vld [vmem:[#allocation9 + $0x8] sm:$0xff]
        %v3379 = vld [vmem:[#allocation9 + $0x10] sm:$0xff]
        %v3380 = vld [vmem:[#allocation9 + $0x18] sm:$0xff]
        %v3381 = vld [vmem:[#allocation9 + $0x20] sm:$0xff]
        %v3382 = vld [vmem:[#allocation9 + $0x28] sm:$0xff]
        %v3383 = vld [vmem:[#allocation9 + $0x30] sm:$0xff]
        %v3384 = vld [vmem:[#allocation9 + $0x38] sm:$0xff]
        %v3385 = vld [vmem:[#allocation9 + $0x40] sm:$0xff]
        %v3386 = vld [vmem:[#allocation9 + $0x48] sm:$0xff]
        %v3387 = vld [vmem:[#allocation9 + $0x50] sm:$0xff]
        %v3388 = vld [vmem:[#allocation9 + $0x58] sm:$0xff]
        %v3389 = vld [vmem:[#allocation9 + $0x60] sm:$0xff]
        %v3390 = vld [vmem:[#allocation9 + $0x68] sm:$0xff]
        %v3391 = vld [vmem:[#allocation9 + $0x70] sm:$0xff]
        %v3392 = vld [vmem:[#allocation9 + $0x78] sm:$0xff]
        %v3393 = vld [vmem:[#allocation9 + $0x80] sm:$0xff]
        %v3394 = vld [vmem:[#allocation9 + $0x88] sm:$0xff]
        %v3395 = vld [vmem:[#allocation9 + $0x90] sm:$0xff]
        %v3396 = vld [vmem:[#allocation9 + $0x98] sm:$0xff]
        %v3397 = vld [vmem:[#allocation9 + $0xa0] sm:$0xff]
        %v3398 = vld [vmem:[#allocation9 + $0xa8] sm:$0xff]
        %v3399 = vld [vmem:[#allocation9 + $0xb0] sm:$0xff]
        %v3400 = vld [vmem:[#allocation9 + $0xb8] sm:$0xff]
        %v3401 = vld [vmem:[#allocation9 + $0xc0] sm:$0xff]
        %v3402 = vld [vmem:[#allocation9 + $0xc8] sm:$0xff]
        %v3403 = vld [vmem:[#allocation9 + $0xd0] sm:$0xff]
        %v3404 = vld [vmem:[#allocation9 + $0xd8] sm:$0xff]
        %v3405 = vld [vmem:[#allocation9 + $0xe0] sm:$0xff]
        %v3406 = vld [vmem:[#allocation9 + $0xe8] sm:$0xff]
        %v3407 = vld [vmem:[#allocation9 + $0xf0] sm:$0xff]
        %v3408 = vld [vmem:[#allocation9 + $0xf8] sm:$0xff]
        %v3409 = vld [vmem:[#allocation9 + $0x100] sm:$0xff]
        %v3410 = vld [vmem:[#allocation9 + $0x108] sm:$0xff]
        %v3411 = vld [vmem:[#allocation9 + $0x110] sm:$0xff]
        %v3412 = vld [vmem:[#allocation9 + $0x118] sm:$0xff]
        %v3413 = vld [vmem:[#allocation9 + $0x120] sm:$0xff]
        %v3414 = vld [vmem:[#allocation9 + $0x128] sm:$0xff]
        %v3415 = vld [vmem:[#allocation9 + $0x130] sm:$0xff]
        %v3416 = vld [vmem:[#allocation9 + $0x138] sm:$0xff]
        %v3417 = vld [vmem:[#allocation9 + $0x140] sm:$0xff]
        %v3418 = vld [vmem:[#allocation9 + $0x148] sm:$0xff]
        %v3419 = vld [vmem:[#allocation9 + $0x150] sm:$0xff]
        %v3420 = vld [vmem:[#allocation9 + $0x158] sm:$0xff]
        %v3421 = vld [vmem:[#allocation9 + $0x160] sm:$0xff]
        %v3422 = vld [vmem:[#allocation9 + $0x168] sm:$0xff]
        %v3423 = vld [vmem:[#allocation9 + $0x170] sm:$0xff]
        %v3424 = vld [vmem:[#allocation9 + $0x178] sm:$0xff]
        %v3425 = vld [vmem:[#allocation9 + $0x180] sm:$0xff]
        %v3426 = vld [vmem:[#allocation9 + $0x188] sm:$0xff]
        %v3427 = vld [vmem:[#allocation9 + $0x190] sm:$0xff]
        %v3428 = vld [vmem:[#allocation9 + $0x198] sm:$0xff]
        %v3429 = vld [vmem:[#allocation9 + $0x1a0] sm:$0xff]
        %v3430 = vld [vmem:[#allocation9 + $0x1a8] sm:$0xff]
        %v3431 = vld [vmem:[#allocation9 + $0x1b0] sm:$0xff]
        %v3432 = vld [vmem:[#allocation9 + $0x1b8] sm:$0xff]
        %v3433 = vld [vmem:[#allocation9 + $0x1c0] sm:$0xff]
        %v3434 = vld [vmem:[#allocation9 + $0x1c8] sm:$0xff]
        %v3435 = vld [vmem:[#allocation9 + $0x1d0] sm:$0xff]
        %v3436 = vld [vmem:[#allocation9 + $0x1d8] sm:$0xff]
        %v3437 = vld [vmem:[#allocation9 + $0x1e0] sm:$0xff]
        %v3438 = vld [vmem:[#allocation9 + $0x1e8] sm:$0xff]
        %v3439 = vld [vmem:[#allocation9 + $0x1f0] sm:$0xff]
        %v3440 = vld [vmem:[#allocation9 + $0x1f8] sm:$0xff]
        %v3442 = vunpack.c.l.b16 %v3376
        %v3443 = vunpack.c.h.b16 %v3376
        %v3444 = vpack.c.b16 %v3442, %v3442
        %v3445 = vpack.c.b16 %v3443, %v3443
        %v3512 = vunpack.c.l.b16 %v3377
        %v3513 = vunpack.c.h.b16 %v3377
        %v3514 = vunpack.c.l.b16 %v3378
        %v3515 = vunpack.c.h.b16 %v3378
        %v3516 = vunpack.c.l.b16 %v3379
        %v3517 = vunpack.c.h.b16 %v3379
        %v3518 = vunpack.c.l.b16 %v3380
        %v3519 = vunpack.c.h.b16 %v3380
        %v3520 = vunpack.c.l.b16 %v3381
        %v3521 = vunpack.c.h.b16 %v3381
        %v3522 = vunpack.c.l.b16 %v3382
        %v3523 = vunpack.c.h.b16 %v3382
        %v3524 = vunpack.c.l.b16 %v3383
        %v3525 = vunpack.c.h.b16 %v3383
        %v3526 = vunpack.c.l.b16 %v3384
        %v3527 = vunpack.c.h.b16 %v3384
        %v3528 = vunpack.c.l.b16 %v3385
        %v3529 = vunpack.c.h.b16 %v3385
        %v3530 = vunpack.c.l.b16 %v3386
        %v3531 = vunpack.c.h.b16 %v3386
        %v3532 = vunpack.c.l.b16 %v3387
        %v3533 = vunpack.c.h.b16 %v3387
        %v3534 = vunpack.c.l.b16 %v3388
        %v3535 = vunpack.c.h.b16 %v3388
        %v3536 = vunpack.c.l.b16 %v3389
        %v3537 = vunpack.c.h.b16 %v3389
        %v3538 = vunpack.c.l.b16 %v3390
        %v3539 = vunpack.c.h.b16 %v3390
        %v3540 = vunpack.c.l.b16 %v3391
        %v3541 = vunpack.c.h.b16 %v3391
        %v3542 = vunpack.c.l.b16 %v3392
        %v3543 = vunpack.c.h.b16 %v3392
        %v3544 = vunpack.c.l.b16 %v3393
        %v3545 = vunpack.c.h.b16 %v3393
        %v3546 = vunpack.c.l.b16 %v3394
        %v3547 = vunpack.c.h.b16 %v3394
        %v3548 = vunpack.c.l.b16 %v3395
        %v3549 = vunpack.c.h.b16 %v3395
        %v3550 = vunpack.c.l.b16 %v3396
        %v3551 = vunpack.c.h.b16 %v3396
        %v3552 = vunpack.c.l.b16 %v3397
        %v3553 = vunpack.c.h.b16 %v3397
        %v3554 = vunpack.c.l.b16 %v3398
        %v3555 = vunpack.c.h.b16 %v3398
        %v3556 = vunpack.c.l.b16 %v3399
        %v3557 = vunpack.c.h.b16 %v3399
        %v3558 = vunpack.c.l.b16 %v3400
        %v3559 = vunpack.c.h.b16 %v3400
        %v3560 = vunpack.c.l.b16 %v3401
        %v3561 = vunpack.c.h.b16 %v3401
        %v3562 = vunpack.c.l.b16 %v3402
        %v3563 = vunpack.c.h.b16 %v3402
        %v3564 = vunpack.c.l.b16 %v3403
        %v3565 = vunpack.c.h.b16 %v3403
        %v3566 = vunpack.c.l.b16 %v3404
        %v3567 = vunpack.c.h.b16 %v3404
        %v3568 = vunpack.c.l.b16 %v3405
        %v3569 = vunpack.c.h.b16 %v3405
        %v3570 = vunpack.c.l.b16 %v3406
        %v3571 = vunpack.c.h.b16 %v3406
        %v3572 = vunpack.c.l.b16 %v3407
        %v3573 = vunpack.c.h.b16 %v3407
        %v3574 = vunpack.c.l.b16 %v3408
        %v3575 = vunpack.c.h.b16 %v3408
        %v3576 = vunpack.c.l.b16 %v3409
        %v3577 = vunpack.c.h.b16 %v3409
        %v3578 = vunpack.c.l.b16 %v3410
        %v3579 = vunpack.c.h.b16 %v3410
        %v3580 = vunpack.c.l.b16 %v3411
        %v3581 = vunpack.c.h.b16 %v3411
        %v3582 = vunpack.c.l.b16 %v3412
        %v3583 = vunpack.c.h.b16 %v3412
        %v3584 = vunpack.c.l.b16 %v3413
        %v3585 = vunpack.c.h.b16 %v3413
        %v3586 = vunpack.c.l.b16 %v3414
        %v3587 = vunpack.c.h.b16 %v3414
        %v3588 = vunpack.c.l.b16 %v3415
        %v3589 = vunpack.c.h.b16 %v3415
        %v3590 = vunpack.c.l.b16 %v3416
        %v3591 = vunpack.c.h.b16 %v3416
        %v3592 = vunpack.c.l.b16 %v3417
        %v3593 = vunpack.c.h.b16 %v3417
        %v3594 = vunpack.c.l.b16 %v3418
        %v3595 = vunpack.c.h.b16 %v3418
        %v3596 = vunpack.c.l.b16 %v3419
        %v3597 = vunpack.c.h.b16 %v3419
        %v3598 = vunpack.c.l.b16 %v3420
        %v3599 = vunpack.c.h.b16 %v3420
        %v3600 = vunpack.c.l.b16 %v3421
        %v3601 = vunpack.c.h.b16 %v3421
        %v3602 = vunpack.c.l.b16 %v3422
        %v3603 = vunpack.c.h.b16 %v3422
        %v3604 = vunpack.c.l.b16 %v3423
        %v3605 = vunpack.c.h.b16 %v3423
        %v3606 = vunpack.c.l.b16 %v3424
        %v3607 = vunpack.c.h.b16 %v3424
        %v3608 = vunpack.c.l.b16 %v3425
        %v3609 = vunpack.c.h.b16 %v3425
        %v3610 = vunpack.c.l.b16 %v3426
        %v3611 = vunpack.c.h.b16 %v3426
        %v3612 = vunpack.c.l.b16 %v3427
        %v3613 = vunpack.c.h.b16 %v3427
        %v3614 = vunpack.c.l.b16 %v3428
        %v3615 = vunpack.c.h.b16 %v3428
        %v3616 = vunpack.c.l.b16 %v3429
        %v3617 = vunpack.c.h.b16 %v3429
        %v3618 = vunpack.c.l.b16 %v3430
        %v3619 = vunpack.c.h.b16 %v3430
        %v3620 = vunpack.c.l.b16 %v3431
        %v3621 = vunpack.c.h.b16 %v3431
        %v3622 = vunpack.c.l.b16 %v3432
        %v3623 = vunpack.c.h.b16 %v3432
        %v3624 = vunpack.c.l.b16 %v3433
        %v3625 = vunpack.c.h.b16 %v3433
        %v3626 = vunpack.c.l.b16 %v3434
        %v3627 = vunpack.c.h.b16 %v3434
        %v3628 = vunpack.c.l.b16 %v3435
        %v3629 = vunpack.c.h.b16 %v3435
        %v3630 = vunpack.c.l.b16 %v3436
        %v3631 = vunpack.c.h.b16 %v3436
        %v3632 = vunpack.c.l.b16 %v3437
        %v3633 = vunpack.c.h.b16 %v3437
        %v3634 = vunpack.c.l.b16 %v3438
        %v3635 = vunpack.c.h.b16 %v3438
        %v3636 = vunpack.c.l.b16 %v3439
        %v3637 = vunpack.c.h.b16 %v3439
        %v3638 = vunpack.c.l.b16 %v3440
        %v3639 = vunpack.c.h.b16 %v3440
        %v3640 = vpack.c.b16 %v3516, %v3512
        %v3641 = vpack.c.b16 %v3517, %v3513
        %v3642 = vpack.c.b16 %v3518, %v3514
        %v3643 = vpack.c.b16 %v3519, %v3515
        %v3644 = vpack.c.b16 %v3524, %v3520
        %v3645 = vpack.c.b16 %v3525, %v3521
        %v3646 = vpack.c.b16 %v3526, %v3522
        %v3647 = vpack.c.b16 %v3527, %v3523
        %v3648 = vpack.c.b16 %v3532, %v3528
        %v3649 = vpack.c.b16 %v3533, %v3529
        %v3650 = vpack.c.b16 %v3534, %v3530
        %v3651 = vpack.c.b16 %v3535, %v3531
        %v3652 = vpack.c.b16 %v3540, %v3536
        %v3653 = vpack.c.b16 %v3541, %v3537
        %v3654 = vpack.c.b16 %v3542, %v3538
        %v3655 = vpack.c.b16 %v3543, %v3539
        %v3656 = vpack.c.b16 %v3548, %v3544
        %v3657 = vpack.c.b16 %v3549, %v3545
        %v3658 = vpack.c.b16 %v3550, %v3546
        %v3659 = vpack.c.b16 %v3551, %v3547
        %v3660 = vpack.c.b16 %v3556, %v3552
        %v3661 = vpack.c.b16 %v3557, %v3553
        %v3662 = vpack.c.b16 %v3558, %v3554
        %v3663 = vpack.c.b16 %v3559, %v3555
        %v3664 = vpack.c.b16 %v3564, %v3560
        %v3665 = vpack.c.b16 %v3565, %v3561
        %v3666 = vpack.c.b16 %v3566, %v3562
        %v3667 = vpack.c.b16 %v3567, %v3563
        %v3668 = vpack.c.b16 %v3572, %v3568
        %v3669 = vpack.c.b16 %v3573, %v3569
        %v3670 = vpack.c.b16 %v3574, %v3570
        %v3671 = vpack.c.b16 %v3575, %v3571
        %v3672 = vpack.c.b16 %v3580, %v3576
        %v3673 = vpack.c.b16 %v3581, %v3577
        %v3674 = vpack.c.b16 %v3582, %v3578
        %v3675 = vpack.c.b16 %v3583, %v3579
        %v3676 = vpack.c.b16 %v3588, %v3584
        %v3677 = vpack.c.b16 %v3589, %v3585
        %v3678 = vpack.c.b16 %v3590, %v3586
        %v3679 = vpack.c.b16 %v3591, %v3587
        %v3680 = vpack.c.b16 %v3596, %v3592
        %v3681 = vpack.c.b16 %v3597, %v3593
        %v3682 = vpack.c.b16 %v3598, %v3594
        %v3683 = vpack.c.b16 %v3599, %v3595
        %v3684 = vpack.c.b16 %v3604, %v3600
        %v3685 = vpack.c.b16 %v3605, %v3601
        %v3686 = vpack.c.b16 %v3606, %v3602
        %v3687 = vpack.c.b16 %v3607, %v3603
        %v3688 = vpack.c.b16 %v3612, %v3608
        %v3689 = vpack.c.b16 %v3613, %v3609
        %v3690 = vpack.c.b16 %v3614, %v3610
        %v3691 = vpack.c.b16 %v3615, %v3611
        %v3692 = vpack.c.b16 %v3620, %v3616
        %v3693 = vpack.c.b16 %v3621, %v3617
        %v3694 = vpack.c.b16 %v3622, %v3618
        %v3695 = vpack.c.b16 %v3623, %v3619
        %v3696 = vpack.c.b16 %v3628, %v3624
        %v3697 = vpack.c.b16 %v3629, %v3625
        %v3698 = vpack.c.b16 %v3630, %v3626
        %v3699 = vpack.c.b16 %v3631, %v3627
        %v3700 = vpack.c.b16 %v3636, %v3632
        %v3701 = vpack.c.b16 %v3637, %v3633
        %v3702 = vpack.c.b16 %v3638, %v3634
        %v3703 = vpack.c.b16 %v3639, %v3635
        %3768 = vmatprep.subr.bf16.mxu0 %v3641
        %3769 = vmatpush1.bf16.msra.mxu0 %v3640
        %3770 = vmatprep.subr.bf16.mxu0 %v3645
        %3771 = vmatpush1.bf16.msra.mxu0 %v3644
        %3772 = vmatprep.subr.bf16.mxu0 %v3649
        %3773 = vmatpush1.bf16.msra.mxu0 %v3648
        %3774 = vmatprep.subr.bf16.mxu0 %v3653
        %3775 = vmatpush1.bf16.msra.mxu0 %v3652
        %3776 = vmatprep.subr.bf16.mxu0 %v3657
        %3777 = vmatpush1.bf16.msra.mxu0 %v3656
        %3778 = vmatprep.subr.bf16.mxu0 %v3661
        %3779 = vmatpush1.bf16.msra.mxu0 %v3660
        %3780 = vmatprep.subr.bf16.mxu0 %v3665
        %3781 = vmatpush1.bf16.msra.mxu0 %v3664
        %3782 = vmatprep.subr.bf16.mxu0 %v3669
        %3783 = vmatpush1.bf16.msra.mxu0 %v3668
        %3784 = vmatprep.subr.bf16.mxu0 %v3673
        %3785 = vmatpush1.bf16.msra.mxu0 %v3672
        %3786 = vmatprep.subr.bf16.mxu0 %v3677
        %3787 = vmatpush1.bf16.msra.mxu0 %v3676
        %3788 = vmatprep.subr.bf16.mxu0 %v3681
        %3789 = vmatpush1.bf16.msra.mxu0 %v3680
        %3790 = vmatprep.subr.bf16.mxu0 %v3685
        %3791 = vmatpush1.bf16.msra.mxu0 %v3684
        %3792 = vmatprep.subr.bf16.mxu0 %v3689
        %3793 = vmatpush1.bf16.msra.mxu0 %v3688
        %3794 = vmatprep.subr.bf16.mxu0 %v3693
        %3795 = vmatpush1.bf16.msra.mxu0 %v3692
        %3796 = vmatprep.subr.bf16.mxu0 %v3697
        %3797 = vmatpush1.bf16.msra.mxu0 %v3696
        %3798 = vmatprep.subr.bf16.mxu0 %v3701
        %3799 = vmatpush1.bf16.msra.mxu0 %v3700
        %3800 = vmatprep.mubr.bf16.mxu0 %v3445
        %3801 = vmatmul.mubr.bf16.gmra.mrb[0].mxu0 %v3444
        %v3802 = vpop.f32.mrb[0].mxu0
        %v3803 = vadd.f32 %v610, %v3802
        %v3804 = vpop.f32.mrb[0].mxu0
        %v3805 = vadd.f32 %v614, %v3804
        %v3806 = vpop.f32.mrb[0].mxu0
        %v3807 = vpop.f32.mrb[0].mxu0
        %3808 = vdwg.mxu0
        %3809 = vmatprep.subr.bf16.mxu0 %v3643
        %3810 = vmatpush1.bf16.msra.mxu0 %v3642
        %3811 = vmatprep.subr.bf16.mxu0 %v3647
        %3812 = vmatpush1.bf16.msra.mxu0 %v3646
        %3813 = vmatprep.subr.bf16.mxu0 %v3651
        %3814 = vmatpush1.bf16.msra.mxu0 %v3650
        %3815 = vmatprep.subr.bf16.mxu0 %v3655
        %3816 = vmatpush1.bf16.msra.mxu0 %v3654
        %3817 = vmatprep.subr.bf16.mxu0 %v3659
        %3818 = vmatpush1.bf16.msra.mxu0 %v3658
        %3819 = vmatprep.subr.bf16.mxu0 %v3663
        %3820 = vmatpush1.bf16.msra.mxu0 %v3662
        %3821 = vmatprep.subr.bf16.mxu0 %v3667
        %3822 = vmatpush1.bf16.msra.mxu0 %v3666
        %3823 = vmatprep.subr.bf16.mxu0 %v3671
        %3824 = vmatpush1.bf16.msra.mxu0 %v3670
        %3825 = vmatprep.subr.bf16.mxu0 %v3675
        %3826 = vmatpush1.bf16.msra.mxu0 %v3674
        %3827 = vmatprep.subr.bf16.mxu0 %v3679
        %3828 = vmatpush1.bf16.msra.mxu0 %v3678
        %3829 = vmatprep.subr.bf16.mxu0 %v3683
        %3830 = vmatpush1.bf16.msra.mxu0 %v3682
        %3831 = vmatprep.subr.bf16.mxu0 %v3687
        %3832 = vmatpush1.bf16.msra.mxu0 %v3686
        %3833 = vmatprep.subr.bf16.mxu0 %v3691
        %3834 = vmatpush1.bf16.msra.mxu0 %v3690
        %3835 = vmatprep.subr.bf16.mxu0 %v3695
        %3836 = vmatpush1.bf16.msra.mxu0 %v3694
        %3837 = vmatprep.subr.bf16.mxu0 %v3699
        %3838 = vmatpush1.bf16.msra.mxu0 %v3698
        %3839 = vmatprep.subr.bf16.mxu0 %v3703
        %3840 = vmatpush1.bf16.msra.mxu0 %v3702
        %3841 = vmatprep.mubr.bf16.mxu0 %v3445
        %3842 = vmatmul.mubr.bf16.gmra.mrb[0].mxu0 %v3444
        %v3843 = vpop.f32.mrb[0].mxu0
        %v3844 = vadd.f32 %v618, %v3843
        %v3845 = vpop.f32.mrb[0].mxu0
        %v3846 = vadd.f32 %v622, %v3845
        %v3847 = vpop.f32.mrb[0].mxu0
        %v3848 = vpop.f32.mrb[0].mxu0
        %3849 = vdwg.mxu0
        %v3850 = vxor.u32 %v3803, 2147483648
        %v3851 = vmul.f32 %v3850, 1.442695
        %v3852 = vpow.pop %v3851
        %v3853 = vadd.f32 %v3852, 1.0
        %v3854 = vrcp.pop %v3853
        %v3855 = vmul.f32 1.0, %v3854
        %v3856 = vxor.u32 %v3805, 2147483648
        %v3857 = vmul.f32 %v3856, 1.442695
        %v3858 = vpow.pop %v3857
        %v3859 = vadd.f32 %v3858, 1.0
        %v3860 = vrcp.pop %v3859
        %v3861 = vmul.f32 1.0, %v3860
        %v3862 = vtanh.pop %v3844
        %v3863 = vxor.u32 %v3846, 2147483648
        %v3864 = vmul.f32 %v3863, 1.442695
        %v3865 = vpow.pop %v3864
        %v3866 = vadd.f32 %v3865, 1.0
        %v3867 = vrcp.pop %v3866
        %v3868 = vmul.f32 1.0, %v3867
        %v3869 = vmul.f32 %v3861, %v3059
        %v3870 = vmul.f32 %v3855, %v3862
        %v3871 = vadd.f32 %v3869, %v3870
        %v3872 = vtanh.pop %v3871
        %v3873 = vmul.f32 %v3868, %v3872
        %v3874 = vpack.c.bf16 %v3873, %v3873
        %3875 = vst [vmem:[#allocation3 + $0x4] sm:$0xf] %v3874
        %3876 = vst [vmem:[#allocation4] sm:$0xff] %v3371
        %3877 = vst [vmem:[#allocation5] sm:$0xff] %v3871
        %p3878 = scmp.eq.s32.totalorder %s27, 1
        // Predicated region
        $region65: #{tpu_custom_call.1} parent=51 // pred_check
          %p3879 = pneg %p3878
        $region66: #{tpu_custom_call.1} parent=51 // pred_check_branch
          %3881 = sbr.rel (%p3879) target = $region68
        $region67: #{tpu_custom_call.1} parent=51 // pred_region
          %v3882 = vld [vmem:[#allocation3 + $0x4] sm:$0xf]
          %v3883 = vld [vmem:[%s6] sm:$0xf]
          %v3884 = vld [vmem:[%s6 + $0x4] sm:$0xf]
          %v3885 = vld [vmem:[%s6 + $0x8] sm:$0xf]
          %v3886 = vld [vmem:[%s6 + $0xc] sm:$0xf]
          %v3887 = vld [vmem:[%s6 + $0x10] sm:$0xf]
          %v3888 = vld [vmem:[%s6 + $0x14] sm:$0xf]
          %v3889 = vld [vmem:[%s6 + $0x18] sm:$0xf]
          %v3890 = vld [vmem:[%s6 + $0x1c] sm:$0xf]
          %v3891 = vld [vmem:[%s6 + $0x20] sm:$0xf]
          %v3892 = vld [vmem:[%s6 + $0x24] sm:$0xf]
          %v3893 = vld [vmem:[%s6 + $0x28] sm:$0xf]
          %v3894 = vld [vmem:[%s6 + $0x2c] sm:$0xf]
          %v3895 = vld [vmem:[%s6 + $0x30] sm:$0xf]
          %v3896 = vld [vmem:[%s6 + $0x34] sm:$0xf]
          %v3897 = vld [vmem:[%s6 + $0x38] sm:$0xf]
          %v3898 = vld [vmem:[%s6 + $0x3c] sm:$0xf]
          %v3899 = vld [vmem:[%s7] sm:$0x1]
          %v3901 = vlaneseq
          %v3902 = vshrl.u32 %v3901, 7
          %v3903 = vsub.s32 0, %v3902
          %v3904 = vrot.slane %v3899, %v3903
          %v3922 = vunpack.c.l.b16 %v3883
          %v3923 = vunpack.c.l.b16 %v3884
          %v3924 = vunpack.c.l.b16 %v3885
          %v3925 = vunpack.c.l.b16 %v3886
          %v3926 = vunpack.c.l.b16 %v3887
          %v3927 = vunpack.c.l.b16 %v3888
          %v3928 = vunpack.c.l.b16 %v3889
          %v3929 = vunpack.c.l.b16 %v3890
          %v3930 = vunpack.c.l.b16 %v3891
          %v3931 = vunpack.c.l.b16 %v3892
          %v3932 = vunpack.c.l.b16 %v3893
          %v3933 = vunpack.c.l.b16 %v3894
          %v3934 = vunpack.c.l.b16 %v3895
          %v3935 = vunpack.c.l.b16 %v3896
          %v3936 = vunpack.c.l.b16 %v3897
          %v3937 = vunpack.c.l.b16 %v3898
          %v3938 = vpack.c.b16 %v3923, %v3922
          %v3939 = vpack.c.b16 %v3925, %v3924
          %v3940 = vpack.c.b16 %v3927, %v3926
          %v3941 = vpack.c.b16 %v3929, %v3928
          %v3942 = vpack.c.b16 %v3931, %v3930
          %v3943 = vpack.c.b16 %v3933, %v3932
          %v3944 = vpack.c.b16 %v3935, %v3934
          %v3945 = vpack.c.b16 %v3937, %v3936
          %3954 = vmatprep.subr.bf16.mxu0 0
          %3955 = vmatpush1.bf16.msra.mxu0 %v3938
          %3956 = vmatprep.subr.bf16.mxu0 0
          %3957 = vmatpush1.bf16.msra.mxu0 %v3939
          %3958 = vmatprep.subr.bf16.mxu0 0
          %3959 = vmatpush1.bf16.msra.mxu0 %v3940
          %3960 = vmatprep.subr.bf16.mxu0 0
          %3961 = vmatpush1.bf16.msra.mxu0 %v3941
          %3962 = vmatprep.subr.bf16.mxu0 0
          %3963 = vmatpush1.bf16.msra.mxu0 %v3942
          %3964 = vmatprep.subr.bf16.mxu0 0
          %3965 = vmatpush1.bf16.msra.mxu0 %v3943
          %3966 = vmatprep.subr.bf16.mxu0 0
          %3967 = vmatpush1.bf16.msra.mxu0 %v3944
          %3968 = vmatprep.subr.bf16.mxu0 0
          %3969 = vmatpush1.bf16.msra.mxu0 %v3945
          %3970 = vmatprep.subr.bf16.mxu0 0
          %3971 = vmatpush1.bf16.msra.mxu0 0
          %3972 = vmatprep.subr.bf16.mxu0 0
          %3973 = vmatpush1.bf16.msra.mxu0 0
          %3974 = vmatprep.subr.bf16.mxu0 0
          %3975 = vmatpush1.bf16.msra.mxu0 0
          %3976 = vmatprep.subr.bf16.mxu0 0
          %3977 = vmatpush1.bf16.msra.mxu0 0
          %3978 = vmatprep.subr.bf16.mxu0 0
          %3979 = vmatpush1.bf16.msra.mxu0 0
          %3980 = vmatprep.subr.bf16.mxu0 0
          %3981 = vmatpush1.bf16.msra.mxu0 0
          %3982 = vmatprep.subr.bf16.mxu0 0
          %3983 = vmatpush1.bf16.msra.mxu0 0
          %3984 = vmatprep.subr.bf16.mxu0 0
          %3985 = vmatpush1.bf16.msra.mxu0 0
          %3986 = vmatprep.mubr.bf16.mxu0 0
          %3987 = vmatmul.mubr.bf16.gmra.mrb[0].mxu0 %v3882
          %v3988 = vpop.f32.mrb[0].mxu0
          %v3989 = vadd.f32 %v3904, %v3988
          %v3990 = vpop.f32.mrb[0].mxu0
          %v3991 = vpop.f32.mrb[0].mxu0
          %v3992 = vpop.f32.mrb[0].mxu0
          %3993 = vdwg.mxu0
          %3994 = vst [vmem:[#allocation11] sm:$0xff] %v3989
        $region68: #{tpu_custom_call.1} parent=51 // pred_fallthru
          _
        // Predicated region
        $region69: #{tpu_custom_call.1} parent=51 // pred_check
          %p3995 = pneg %p227
        $region70: #{tpu_custom_call.1} parent=51 // pred_check_branch
          %3997 = sbr.rel (%p3995) target = $region72
        $region71: #{tpu_custom_call.1} parent=51 // pred_region
          %s3999 = ssub.s32 128, 128
          %4000 = vsyncadd [#allocation8], %s3999
          %s4001 = smul.addr %s26, 128
          %s4002 = scalar_lea.hbm %s8, %s4001
          %s4004 = sshll.u32 [#allocation11], 4
          %s4005 = int_to_ptr.vmem [resolvable:$true] %s4004
          %4007 = dma.vmem_to_hbm [thread:$0]  %s4005, 128, %s4002, [#allocation8]
        $region72: #{tpu_custom_call.1} parent=51 // pred_fallthru
          _
        // Predicated region
        $region73: #{tpu_custom_call.1} parent=51 // pred_check
          %p4008 = pneg %p227
        $region74: #{tpu_custom_call.1} parent=51 // pred_check_branch
          %4010 = sbr.rel (%p4008) target = $region76
        $region75: #{tpu_custom_call.1} parent=51 // pred_region
          %4011 = dma.done [#allocation8], 128
        $region76: #{tpu_custom_call.1} parent=51 // pred_fallthru
          _
      $region52: #{tpu_custom_call.1} parent=5 // pred_fallthru
        _
      %p4012 = scmp.le.s32.totalorder 2, %s17
      // Predicated region
      $region77: #{tpu_custom_call.1} parent=5 // pred_check
        %p4013 = pneg %p4012
      $region78: #{tpu_custom_call.1} parent=5 // pred_check_branch
        %4015 = sbr.rel (%p4013) target = $region80
      $region79: #{tpu_custom_call.1} parent=5 // pred_region
        %s4016 = ssub.s32 %s17, 2
      $region80: #{tpu_custom_call.1} parent=5 // pred_fallthru
        _
    $region6: #{tpu_custom_call.1} parent=1 // loop_footer
      %s21 = sadd.s32 1, %s17
    $region7: #{tpu_custom_call.1} parent=1 // loop_footer_branch
      %16 = sbr.rel target = $region3
    $region8: #{tpu_custom_call.1} parent=1 // loop_exit
      _
    %4017 = vsyncpa [#allocation7], 1
    %s4018 = scalar_lea.sflag [#allocation7], 1
    %4019 = vsyncpa %s4018, 1
    %4020 = vsyncpa [#allocation10], 1
    %4021 = vsyncpa [#allocation8], 1
    %s4022 = scalar_lea.sflag [#allocation8], 1
    %4023 = vsyncpa %s4022, 1

</llo_original>
